<compile_context>
chip_gen: v7x
topology: tpu7x:2x2x1
jax: 0.10.0
libtpu: 0.0.40
codegen_flags: <defaults>
</compile_context>

<pallas_src>
import functools

import numpy as np
import jax
import jax.numpy as jnp
from jax.experimental import pallas as pl
from jax.experimental.pallas import tpu as pltpu


# ----------------------------------------------------------------------------- kernel

def _last_pos_mask(n_rows, positions_per_seq):
    """(n_rows, 1) bool mask, True on the last position of every sequence."""
    rows = jax.lax.broadcasted_iota(jnp.int32, (n_rows, 1), 0)
    lp = positions_per_seq
    if lp & (lp - 1) == 0:                       # power of two -> cheap bitwise form
        return (rows & (lp - 1)) == (lp - 1)
    return (rows % lp) == (lp - 1)


def _conv_relu_pool(h_even, h_odd, half_len, w0_ref, w1_ref, b_ref):
    """Conv1d(k=2, stride=1, 'same') + ReLU + MaxPool1d(2, 2), even/odd formulation.

    h_even[j] = h[2p], h_odd[j] = h[2p+1] for row j <-> (sequence, pooled pos p).
    Returns the pooled activations, shape (rows, Cout) f32, in the same row order.
    """
    mh = h_even.shape[0]

    # Next tap for the odd positions: h[2p+2] == the next even row.  Roll by mh-1
    # (== shift -1) along sublanes; the wrap-around row and every cross-sequence row
    # are exactly the rows the 'same'-pad mask zeroes (PyTorch pads one zero on the
    # right for k=2), so no extra masking is needed.
    h_next = pltpu.roll(h_even, shift=mh - 1, axis=0)
    h_next = jnp.where(_last_pos_mask(mh, half_len), 0.0, h_next)

    w0, w1, b = w0_ref[...], w1_ref[...], b_ref[...]
    y_even = (jnp.dot(h_even, w0, preferred_element_type=jnp.float32)
              + jnp.dot(h_odd, w1, preferred_element_type=jnp.float32) + b)
    y_odd = (jnp.dot(h_odd, w0, preferred_element_type=jnp.float32)
             + jnp.dot(h_next, w1, preferred_element_type=jnp.float32) + b)
    # max(relu(a), relu(b)) == relu(max(a, b))
    return jnp.maximum(jnp.maximum(y_even, y_odd), 0.0)


def _cnn_kernel(x_ref,
                w1a, w1b, b1, w2a, w2b, b2, w3a, w3b, b3,
                fw1, fb1, fw2, fb2, fw3, fb3,
                o_ref, buf):
    M = x_ref.shape[0]            # TB * L rows (positions of all sequences)
    TB = o_ref.shape[0]
    L = M // TB                   # invariant: M == TB * L by construction

    # ---- layer 1: taps read straight from the input block (stride-2 sublane reads)
    h_even = x_ref[pl.ds(0, M // 2, stride=2), :]
    h_odd = x_ref[pl.ds(1, M // 2, stride=2), :]
    p1 = _conv_relu_pool(h_even, h_odd, L // 2, w1a, w1b, b1)        # (M/2, C1)

    # ---- layer 2
    c1 = p1.shape[-1]
    buf[0:M // 2, 0:c1] = p1
    h_even = buf[pl.ds(0, M // 4, stride=2), 0:c1]
    h_odd = buf[pl.ds(1, M // 4, stride=2), 0:c1]
    p2 = _conv_relu_pool(h_even, h_odd, L // 4, w2a, w2b, b2)        # (M/4, C2)

    # ---- layer 3
    c2 = p2.shape[-1]
    buf[0:M // 4, 0:c2] = p2
    h_even = buf[pl.ds(0, M // 8, stride=2), 0:c2]
    h_odd = buf[pl.ds(1, M // 8, stride=2), 0:c2]
    p3 = _conv_relu_pool(h_even, h_odd, L // 8, w3a, w3b, b3)        # (M/8, C3)

    # ---- fc block: gather per-position slabs (stride-L3 reads) into a (TB, L3*C3)
    # matrix; PyTorch's channel-major flatten order is folded into fw1 in the wrapper.
    c3 = p3.shape[-1]
    l3 = L // 8
    m3 = M // 8
    buf[0:m3, 0:c3] = p3
    pieces = [buf[pl.ds(l, TB, stride=l3), 0:c3] for l in range(l3)]
    hf = jnp.concatenate(pieces, axis=-1) if l3 > 1 else pieces[0]   # (TB, L3*C3)

    z = jnp.dot(hf, fw1[...], preferred_element_type=jnp.float32) + fb1[...]
    z = jnp.maximum(z, 0.0)
    z = jnp.dot(z, fw2[...], preferred_element_type=jnp.float32) + fb2[...]
    z = jnp.maximum(z, 0.0)
    z = jnp.dot(z, fw3[...], preferred_element_type=jnp.float32) + fb3[...]
    o_ref[...] = z.astype(o_ref.dtype)                               # (TB, 2)


# ----------------------------------------------------------------------------- params

def init_torch_like_params(key, *, n_chars=21, hidden_conv=12, hidden_fc=64,
                           pool_width=2, seq_len=64):
    """Deterministic synthetic parameters, stored in PyTorch conventions."""
    def uni(k, shape, bound):
        return jax.random.uniform(k, shape, jnp.float32, -bound, bound)

    ks = jax.random.split(key, 12)
    c1, c2, c3 = hidden_conv, hidden_conv // 2, hidden_conv // 4
    kw = pool_width

    def xavier_conv(k, cout, cin):                 # xavier_uniform, gain=1.0
        bound = float(np.sqrt(6.0 / (cin * kw + cout * kw)))
        return uni(k, (cout, cin, kw), bound)

    p = {}
    p["conv1_w"] = xavier_conv(ks[0], c1, n_chars)
    p["conv1_b"] = uni(ks[1], (c1,), 1.0 / float(np.sqrt(n_chars * kw)))
    p["conv2_w"] = xavier_conv(ks[2], c2, c1)
    p["conv2_b"] = uni(ks[3], (c2,), 1.0 / float(np.sqrt(c1 * kw)))
    p["conv3_w"] = xavier_conv(ks[4], c3, c2)
    p["conv3_b"] = uni(ks[5], (c3,), 1.0 / float(np.sqrt(c2 * kw)))

    flat = seq_len // 4 * c3 // 2                  # == c3 * seq_len // 8

    def linear(kwkey, kbkey, out_f, in_f):
        bound = 1.0 / float(np.sqrt(in_f))
        return uni(kwkey, (out_f, in_f), bound), uni(kbkey, (out_f,), bound)

    p["fc1_w"], p["fc1_b"] = linear(ks[6], ks[7], hidden_fc, flat)
    p["fc2_w"], p["fc2_b"] = linear(ks[8], ks[9], hidden_fc // 2, hidden_fc)
    p["fc3_w"], p["fc3_b"] = linear(ks[10], ks[11], 2, hidden_fc // 2)
    return p


_WEIGHT_ORDER = ["w1a", "w1b", "b1", "w2a", "w2b", "b2", "w3a", "w3b", "b3",
                 "fw1", "fb1", "fw2", "fb2", "fw3", "fb3"]


def _to_kernel_params(p, *, seq_len):
    """Re-layout PyTorch-convention weights for the (rows, channels) slab kernel."""
    kp = {}
    for i in (1, 2, 3):
        w, b = p[f"conv{i}_w"], p[f"conv{i}_b"]    # w: (Cout, Cin, 2)
        kp[f"w{i}a"] = w[:, :, 0].T.astype(jnp.float32)     # tap at t     -> (Cin, Cout)
        kp[f"w{i}b"] = w[:, :, 1].T.astype(jnp.float32)     # tap at t + 1 -> (Cin, Cout)
        kp[f"b{i}"] = b[None, :].astype(jnp.float32)

    c3 = p["conv3_w"].shape[0]
    l3 = seq_len // 8
    hfc = p["fc1_w"].shape[0]
    # PyTorch flattens (B, C3, L3) channel-major (flat idx = c*L3 + l); the kernel
    # packs columns as l*C3 + c, so reorder the fc1 weight rows accordingly.
    kp["fw1"] = (p["fc1_w"].reshape(hfc, c3, l3).transpose(2, 1, 0)
                 .reshape(l3 * c3, hfc).astype(jnp.float32))
    kp["fb1"] = p["fc1_b"][None, :].astype(jnp.float32)
    kp["fw2"] = p["fc2_w"].T.astype(jnp.float32)
    kp["fb2"] = p["fc2_b"][None, :].astype(jnp.float32)
    kp["fw3"] = p["fc3_w"].T.astype(jnp.float32)
    kp["fb3"] = p["fc3_b"][None, :].astype(jnp.float32)
    return kp


# ----------------------------------------------------------------------------- wrapper

def _round_up(a, b):
    return -(-a // b) * b


@functools.partial(jax.jit, static_argnames=("batch_tile",))
def cnn_ground_aav_forward(x, torch_params, *, batch_tile=128):
    """x: (B, seq_len, n_chars) float32  ->  (B, 2) float32."""
    B, L, n_chars = x.shape
    assert L % 8 == 0, "seq_len must be divisible by 8 (three /2 pools)"

    kp = _to_kernel_params(torch_params, seq_len=L)
    weights = [kp[name] for name in _WEIGHT_ORDER]

    # Batch tiling: keep the per-step slab around ~8K rows so the double-buffered
    # input block + scratch + value temporaries stay well within scoped VMEM on
    # v5e / v6e / v7x (v7x has only 64 MiB physical VMEM).
    row_budget = 8192
    tb_cap = max(8, (row_budget // L) // 8 * 8)
    TB = max(8, min(batch_tile, tb_cap, _round_up(B, 8)))
    Bp = _round_up(B, TB)

    xp = x.astype(jnp.float32)
    if Bp != B:
        xp = jnp.pad(xp, ((0, Bp - B), (0, 0), (0, 0)))
    xf = xp.reshape(Bp * L, n_chars)               # sequences stacked along sublanes

    in_specs = [pl.BlockSpec((TB * L, n_chars), lambda i: (i, 0))]
    in_specs += [pl.BlockSpec(w.shape, lambda i: (0, 0)) for w in weights]
    out_specs = pl.BlockSpec((TB, 2), lambda i: (i, 0))

    out = pl.pallas_call(
        _cnn_kernel,
        out_shape=jax.ShapeDtypeStruct((Bp, 2), jnp.float32),
        grid_spec=pltpu.PrefetchScalarGridSpec(
            num_scalar_prefetch=0,
            grid=(Bp // TB,),
            in_specs=in_specs,
            out_specs=out_specs,
            # Staging slab: holds the pooled output of each layer (<= TB*L/2 rows)
            # for the next layer's stride-2 reads and the fc1 position gather.
            scratch_shapes=[pltpu.VMEM((TB * L // 2, 128), jnp.float32)],
        ),
        compiler_params=pltpu.CompilerParams(
            dimension_semantics=("parallel",),     # independent batch tiles (megacore)
            vmem_limit_bytes=48 * 1024 * 1024,     # fits v5e/v6e/v7x physical VMEM
        ),
    )(xf, *weights)
    return out[:B]


# ----------------------------------------------------------------------------- reference

def reference_forward(x, p):
    """Pure-jnp reference computed directly from the PyTorch-convention params."""
    def conv_same_k2(h, w, b):                     # h: (B, L, Cin), w: (Cout, Cin, 2)
        h_next = jnp.concatenate([h[:, 1:, :], jnp.zeros_like(h[:, :1, :])], axis=1)
        return (jnp.einsum("blc,oc->blo", h, w[:, :, 0])
                + jnp.einsum("blc,oc->blo", h_next, w[:, :, 1]) + b)

    def pool(y):                                   # MaxPool1d(2, stride=2)
        B, L, C = y.shape
        return y.reshape(B, L // 2, 2, C).max(axis=2)

    h = x
    for i in (1, 2, 3):
        h = pool(jnp.maximum(conv_same_k2(h, p[f"conv{i}_w"], p[f"conv{i}_b"]), 0.0))
    B = h.shape[0]
    hf = jnp.transpose(h, (0, 2, 1)).reshape(B, -1)      # torch flatten of (B, C, L)
    z = jnp.maximum(hf @ p["fc1_w"].T + p["fc1_b"], 0.0)
    z = jnp.maximum(z @ p["fc2_w"].T + p["fc2_b"], 0.0)
    return z @ p["fc3_w"].T + p["fc3_b"]


# ----------------------------------------------------------------------------- main

if __name__ == "__main__":
    key = jax.random.PRNGKey(0)
    # Small shapes consistent with the module (seq_len divisible by 8).
    B, seq_len, n_chars = 2, 64, 21
    hidden_conv, hidden_fc = 12, 64

    pkey, xkey = jax.random.split(key)
    params = init_torch_like_params(pkey, n_chars=n_chars, hidden_conv=hidden_conv,
                                    hidden_fc=hidden_fc, pool_width=2, seq_len=seq_len)
    # Module forward expects x of shape (B, seq_len, n_chars) (it transposes internally).
    x = jax.random.normal(xkey, (B, seq_len, n_chars), jnp.float32)

    out = cnn_ground_aav_forward(x, params)
    out = jax.block_until_ready(out)
    assert out.shape == (B, 2) and out.dtype == jnp.float32

    ref = reference_forward(x, params)
    np.testing.assert_allclose(np.asarray(out), np.asarray(ref), rtol=2e-2, atol=2e-2)

    print("KERNEL_OK")
</pallas_src>

<mosaic_0001>
module attributes {stable_mosaic.version = 11 : i64} {
  func.func @_cnn_kernel(%arg0: i32, %arg1: memref<512x21xf32, #tpu.memory_space<vmem>>, %arg2: memref<21x12xf32, #tpu.memory_space<vmem>>, %arg3: memref<21x12xf32, #tpu.memory_space<vmem>>, %arg4: memref<1x12xf32, #tpu.memory_space<vmem>>, %arg5: memref<12x6xf32, #tpu.memory_space<vmem>>, %arg6: memref<12x6xf32, #tpu.memory_space<vmem>>, %arg7: memref<1x6xf32, #tpu.memory_space<vmem>>, %arg8: memref<6x3xf32, #tpu.memory_space<vmem>>, %arg9: memref<6x3xf32, #tpu.memory_space<vmem>>, %arg10: memref<1x3xf32, #tpu.memory_space<vmem>>, %arg11: memref<24x64xf32, #tpu.memory_space<vmem>>, %arg12: memref<1x64xf32, #tpu.memory_space<vmem>>, %arg13: memref<64x32xf32, #tpu.memory_space<vmem>>, %arg14: memref<1x32xf32, #tpu.memory_space<vmem>>, %arg15: memref<32x2xf32, #tpu.memory_space<vmem>>, %arg16: memref<1x2xf32, #tpu.memory_space<vmem>>, %arg17: memref<8x2xf32, #tpu.memory_space<vmem>>, %arg18: memref<256x128xf32, #tpu.memory_space<vmem>>) attributes {dimension_semantics = [#tpu.dimension_semantics<parallel>], iteration_bounds = array<i64: 1>, scalar_prefetch = 0 : i64, scratch_operands = 1 : i64, tpu.core_type = #tpu.core_type<tc>, window_params = [{transform_indices = @transform_0, window_bounds = array<i64: 512, 21>}, {pipeline_mode = #tpu.pipeline_mode<synchronous>, transform_indices = @transform_1, window_bounds = array<i64: 21, 12>}, {pipeline_mode = #tpu.pipeline_mode<synchronous>, transform_indices = @transform_2, window_bounds = array<i64: 21, 12>}, {pipeline_mode = #tpu.pipeline_mode<synchronous>, transform_indices = @transform_3, window_bounds = array<i64: 1, 12>}, {pipeline_mode = #tpu.pipeline_mode<synchronous>, transform_indices = @transform_4, window_bounds = array<i64: 12, 6>}, {pipeline_mode = #tpu.pipeline_mode<synchronous>, transform_indices = @transform_5, window_bounds = array<i64: 12, 6>}, {pipeline_mode = #tpu.pipeline_mode<synchronous>, transform_indices = @transform_6, window_bounds = array<i64: 1, 6>}, {pipeline_mode = #tpu.pipeline_mode<synchronous>, transform_indices = @transform_7, window_bounds = array<i64: 6, 3>}, {pipeline_mode = #tpu.pipeline_mode<synchronous>, transform_indices = @transform_8, window_bounds = array<i64: 6, 3>}, {pipeline_mode = #tpu.pipeline_mode<synchronous>, transform_indices = @transform_9, window_bounds = array<i64: 1, 3>}, {pipeline_mode = #tpu.pipeline_mode<synchronous>, transform_indices = @transform_10, window_bounds = array<i64: 24, 64>}, {pipeline_mode = #tpu.pipeline_mode<synchronous>, transform_indices = @transform_11, window_bounds = array<i64: 1, 64>}, {pipeline_mode = #tpu.pipeline_mode<synchronous>, transform_indices = @transform_12, window_bounds = array<i64: 64, 32>}, {pipeline_mode = #tpu.pipeline_mode<synchronous>, transform_indices = @transform_13, window_bounds = array<i64: 1, 32>}, {pipeline_mode = #tpu.pipeline_mode<synchronous>, transform_indices = @transform_14, window_bounds = array<i64: 32, 2>}, {pipeline_mode = #tpu.pipeline_mode<synchronous>, transform_indices = @transform_15, window_bounds = array<i64: 1, 2>}, {transform_indices = @transform_16, window_bounds = array<i64: 8, 2>}]} {
    %c0 = arith.constant 0 : index
    %c0_0 = arith.constant 0 : index
    %0 = tpu.strided_load %arg1[%c0, %c0_0] {strides = array<i32: 2, 1>} : memref<512x21xf32, #tpu.memory_space<vmem>>, vector<256x21xf32>
    %c1 = arith.constant 1 : index
    %c0_1 = arith.constant 0 : index
    %1 = tpu.strided_load %arg1[%c1, %c0_1] {strides = array<i32: 2, 1>} : memref<512x21xf32, #tpu.memory_space<vmem>>, vector<256x21xf32>
    %c255_i32 = arith.constant 255 : i32
    %2 = tpu.dynamic_rotate %0 by %c255_i32 dim 0 : vector<256x21xf32>, i32 -> vector<256x21xf32>
    %3 = tpu.iota {dimensions = array<i32: 0>} : vector<256x1xi32>
    %c31_i32 = arith.constant 31 : i32
    %4 = vector.broadcast %c31_i32 : i32 to vector<256x1xi32>
    %5 = arith.andi %3, %4 : vector<256x1xi32>
    %c31_i32_2 = arith.constant 31 : i32
    %6 = vector.broadcast %c31_i32_2 : i32 to vector<256x1xi32>
    %7 = arith.cmpi eq, %5, %6 : vector<256x1xi32>
    %cst = arith.constant 0.000000e+00 : f32
    %8 = vector.shape_cast %7 : vector<256x1xi1> to vector<256x1xi1>
    %9 = vector.broadcast %8 : vector<256x1xi1> to vector<256x21xi1>
    %10 = vector.broadcast %cst : f32 to vector<256x21xf32>
    %11 = arith.select %9, %10, %2 : vector<256x21xi1>, vector<256x21xf32>
    %c0_3 = arith.constant 0 : index
    %c0_4 = arith.constant 0 : index
    %12 = vector.load %arg2[%c0_3, %c0_4] : memref<21x12xf32, #tpu.memory_space<vmem>>, vector<21x12xf32>
    %c0_5 = arith.constant 0 : index
    %c0_6 = arith.constant 0 : index
    %13 = vector.load %arg3[%c0_5, %c0_6] : memref<21x12xf32, #tpu.memory_space<vmem>>, vector<21x12xf32>
    %c0_7 = arith.constant 0 : index
    %c0_8 = arith.constant 0 : index
    %14 = vector.load %arg4[%c0_7, %c0_8] : memref<1x12xf32, #tpu.memory_space<vmem>>, vector<1x12xf32>
    %cst_9 = arith.constant dense<0.000000e+00> : vector<256x12xf32>
    %15 = tpu.matmul %0, %12, %cst_9 {dimension_numbers = #tpu.dot_dimension_numbers<[1], [0], [0], [1], [0, 0, 1, 1], [], []>} : vector<256x21xf32>, vector<21x12xf32>, vector<256x12xf32> -> vector<256x12xf32>
    %cst_10 = arith.constant dense<0.000000e+00> : vector<256x12xf32>
    %16 = tpu.matmul %1, %13, %cst_10 {dimension_numbers = #tpu.dot_dimension_numbers<[1], [0], [0], [1], [0, 0, 1, 1], [], []>} : vector<256x21xf32>, vector<21x12xf32>, vector<256x12xf32> -> vector<256x12xf32>
    %17 = arith.addf %15, %16 : vector<256x12xf32>
    %18 = vector.broadcast %14 : vector<1x12xf32> to vector<256x12xf32>
    %19 = arith.addf %17, %18 : vector<256x12xf32>
    %cst_11 = arith.constant dense<0.000000e+00> : vector<256x12xf32>
    %20 = tpu.matmul %1, %12, %cst_11 {dimension_numbers = #tpu.dot_dimension_numbers<[1], [0], [0], [1], [0, 0, 1, 1], [], []>} : vector<256x21xf32>, vector<21x12xf32>, vector<256x12xf32> -> vector<256x12xf32>
    %cst_12 = arith.constant dense<0.000000e+00> : vector<256x12xf32>
    %21 = tpu.matmul %11, %13, %cst_12 {dimension_numbers = #tpu.dot_dimension_numbers<[1], [0], [0], [1], [0, 0, 1, 1], [], []>} : vector<256x21xf32>, vector<21x12xf32>, vector<256x12xf32> -> vector<256x12xf32>
    %22 = arith.addf %20, %21 : vector<256x12xf32>
    %23 = vector.broadcast %14 : vector<1x12xf32> to vector<256x12xf32>
    %24 = arith.addf %22, %23 : vector<256x12xf32>
    %25 = arith.maximumf %19, %24 : vector<256x12xf32>
    %cst_13 = arith.constant 0.000000e+00 : f32
    %26 = vector.broadcast %cst_13 : f32 to vector<256x12xf32>
    %27 = arith.maximumf %25, %26 : vector<256x12xf32>
    %c0_14 = arith.constant 0 : index
    %c0_15 = arith.constant 0 : index
    %28 = vector.load %arg18[%c0_14, %c0_15] : memref<256x128xf32, #tpu.memory_space<vmem>>, vector<256x12xf32>
    tpu.vector_store %arg18[%c0_14, %c0_15], %27 {strides = array<i32>} : memref<256x128xf32, #tpu.memory_space<vmem>>, vector<256x12xf32>,
    %c0_16 = arith.constant 0 : index
    %c0_17 = arith.constant 0 : index
    %29 = tpu.strided_load %arg18[%c0_16, %c0_17] {strides = array<i32: 2, 1>} : memref<256x128xf32, #tpu.memory_space<vmem>>, vector<128x12xf32>
    %c1_18 = arith.constant 1 : index
    %c0_19 = arith.constant 0 : index
    %30 = tpu.strided_load %arg18[%c1_18, %c0_19] {strides = array<i32: 2, 1>} : memref<256x128xf32, #tpu.memory_space<vmem>>, vector<128x12xf32>
    %c127_i32 = arith.constant 127 : i32
    %31 = tpu.dynamic_rotate %29 by %c127_i32 dim 0 : vector<128x12xf32>, i32 -> vector<128x12xf32>
    %32 = tpu.iota {dimensions = array<i32: 0>} : vector<128x1xi32>
    %c15_i32 = arith.constant 15 : i32
    %33 = vector.broadcast %c15_i32 : i32 to vector<128x1xi32>
    %34 = arith.andi %32, %33 : vector<128x1xi32>
    %c15_i32_20 = arith.constant 15 : i32
    %35 = vector.broadcast %c15_i32_20 : i32 to vector<128x1xi32>
    %36 = arith.cmpi eq, %34, %35 : vector<128x1xi32>
    %cst_21 = arith.constant 0.000000e+00 : f32
    %37 = vector.shape_cast %36 : vector<128x1xi1> to vector<128x1xi1>
    %38 = vector.broadcast %37 : vector<128x1xi1> to vector<128x12xi1>
    %39 = vector.broadcast %cst_21 : f32 to vector<128x12xf32>
    %40 = arith.select %38, %39, %31 : vector<128x12xi1>, vector<128x12xf32>
    %c0_22 = arith.constant 0 : index
    %c0_23 = arith.constant 0 : index
    %41 = vector.load %arg5[%c0_22, %c0_23] : memref<12x6xf32, #tpu.memory_space<vmem>>, vector<12x6xf32>
    %c0_24 = arith.constant 0 : index
    %c0_25 = arith.constant 0 : index
    %42 = vector.load %arg6[%c0_24, %c0_25] : memref<12x6xf32, #tpu.memory_space<vmem>>, vector<12x6xf32>
    %c0_26 = arith.constant 0 : index
    %c0_27 = arith.constant 0 : index
    %43 = vector.load %arg7[%c0_26, %c0_27] : memref<1x6xf32, #tpu.memory_space<vmem>>, vector<1x6xf32>
    %cst_28 = arith.constant dense<0.000000e+00> : vector<128x6xf32>
    %44 = tpu.matmul %29, %41, %cst_28 {dimension_numbers = #tpu.dot_dimension_numbers<[1], [0], [0], [1], [0, 0, 1, 1], [], []>} : vector<128x12xf32>, vector<12x6xf32>, vector<128x6xf32> -> vector<128x6xf32>
    %cst_29 = arith.constant dense<0.000000e+00> : vector<128x6xf32>
    %45 = tpu.matmul %30, %42, %cst_29 {dimension_numbers = #tpu.dot_dimension_numbers<[1], [0], [0], [1], [0, 0, 1, 1], [], []>} : vector<128x12xf32>, vector<12x6xf32>, vector<128x6xf32> -> vector<128x6xf32>
    %46 = arith.addf %44, %45 : vector<128x6xf32>
    %47 = vector.broadcast %43 : vector<1x6xf32> to vector<128x6xf32>
    %48 = arith.addf %46, %47 : vector<128x6xf32>
    %cst_30 = arith.constant dense<0.000000e+00> : vector<128x6xf32>
    %49 = tpu.matmul %30, %41, %cst_30 {dimension_numbers = #tpu.dot_dimension_numbers<[1], [0], [0], [1], [0, 0, 1, 1], [], []>} : vector<128x12xf32>, vector<12x6xf32>, vector<128x6xf32> -> vector<128x6xf32>
    %cst_31 = arith.constant dense<0.000000e+00> : vector<128x6xf32>
    %50 = tpu.matmul %40, %42, %cst_31 {dimension_numbers = #tpu.dot_dimension_numbers<[1], [0], [0], [1], [0, 0, 1, 1], [], []>} : vector<128x12xf32>, vector<12x6xf32>, vector<128x6xf32> -> vector<128x6xf32>
    %51 = arith.addf %49, %50 : vector<128x6xf32>
    %52 = vector.broadcast %43 : vector<1x6xf32> to vector<128x6xf32>
    %53 = arith.addf %51, %52 : vector<128x6xf32>
    %54 = arith.maximumf %48, %53 : vector<128x6xf32>
    %cst_32 = arith.constant 0.000000e+00 : f32
    %55 = vector.broadcast %cst_32 : f32 to vector<128x6xf32>
    %56 = arith.maximumf %54, %55 : vector<128x6xf32>
    %c0_33 = arith.constant 0 : index
    %c0_34 = arith.constant 0 : index
    %57 = vector.load %arg18[%c0_33, %c0_34] : memref<256x128xf32, #tpu.memory_space<vmem>>, vector<128x6xf32>
    tpu.vector_store %arg18[%c0_33, %c0_34], %56 {strides = array<i32>} : memref<256x128xf32, #tpu.memory_space<vmem>>, vector<128x6xf32>,
    %c0_35 = arith.constant 0 : index
    %c0_36 = arith.constant 0 : index
    %58 = tpu.strided_load %arg18[%c0_35, %c0_36] {strides = array<i32: 2, 1>} : memref<256x128xf32, #tpu.memory_space<vmem>>, vector<64x6xf32>
    %c1_37 = arith.constant 1 : index
    %c0_38 = arith.constant 0 : index
    %59 = tpu.strided_load %arg18[%c1_37, %c0_38] {strides = array<i32: 2, 1>} : memref<256x128xf32, #tpu.memory_space<vmem>>, vector<64x6xf32>
    %c63_i32 = arith.constant 63 : i32
    %60 = tpu.dynamic_rotate %58 by %c63_i32 dim 0 : vector<64x6xf32>, i32 -> vector<64x6xf32>
    %61 = tpu.iota {dimensions = array<i32: 0>} : vector<64x1xi32>
    %c7_i32 = arith.constant 7 : i32
    %62 = vector.broadcast %c7_i32 : i32 to vector<64x1xi32>
    %63 = arith.andi %61, %62 : vector<64x1xi32>
    %c7_i32_39 = arith.constant 7 : i32
    %64 = vector.broadcast %c7_i32_39 : i32 to vector<64x1xi32>
    %65 = arith.cmpi eq, %63, %64 : vector<64x1xi32>
    %cst_40 = arith.constant 0.000000e+00 : f32
    %66 = vector.shape_cast %65 : vector<64x1xi1> to vector<64x1xi1>
    %67 = vector.broadcast %66 : vector<64x1xi1> to vector<64x6xi1>
    %68 = vector.broadcast %cst_40 : f32 to vector<64x6xf32>
    %69 = arith.select %67, %68, %60 : vector<64x6xi1>, vector<64x6xf32>
    %c0_41 = arith.constant 0 : index
    %c0_42 = arith.constant 0 : index
    %70 = vector.load %arg8[%c0_41, %c0_42] : memref<6x3xf32, #tpu.memory_space<vmem>>, vector<6x3xf32>
    %c0_43 = arith.constant 0 : index
    %c0_44 = arith.constant 0 : index
    %71 = vector.load %arg9[%c0_43, %c0_44] : memref<6x3xf32, #tpu.memory_space<vmem>>, vector<6x3xf32>
    %c0_45 = arith.constant 0 : index
    %c0_46 = arith.constant 0 : index
    %72 = vector.load %arg10[%c0_45, %c0_46] : memref<1x3xf32, #tpu.memory_space<vmem>>, vector<1x3xf32>
    %cst_47 = arith.constant dense<0.000000e+00> : vector<64x3xf32>
    %73 = tpu.matmul %58, %70, %cst_47 {dimension_numbers = #tpu.dot_dimension_numbers<[1], [0], [0], [1], [0, 0, 1, 1], [], []>} : vector<64x6xf32>, vector<6x3xf32>, vector<64x3xf32> -> vector<64x3xf32>
    %cst_48 = arith.constant dense<0.000000e+00> : vector<64x3xf32>
    %74 = tpu.matmul %59, %71, %cst_48 {dimension_numbers = #tpu.dot_dimension_numbers<[1], [0], [0], [1], [0, 0, 1, 1], [], []>} : vector<64x6xf32>, vector<6x3xf32>, vector<64x3xf32> -> vector<64x3xf32>
    %75 = arith.addf %73, %74 : vector<64x3xf32>
    %76 = vector.broadcast %72 : vector<1x3xf32> to vector<64x3xf32>
    %77 = arith.addf %75, %76 : vector<64x3xf32>
    %cst_49 = arith.constant dense<0.000000e+00> : vector<64x3xf32>
    %78 = tpu.matmul %59, %70, %cst_49 {dimension_numbers = #tpu.dot_dimension_numbers<[1], [0], [0], [1], [0, 0, 1, 1], [], []>} : vector<64x6xf32>, vector<6x3xf32>, vector<64x3xf32> -> vector<64x3xf32>
    %cst_50 = arith.constant dense<0.000000e+00> : vector<64x3xf32>
    %79 = tpu.matmul %69, %71, %cst_50 {dimension_numbers = #tpu.dot_dimension_numbers<[1], [0], [0], [1], [0, 0, 1, 1], [], []>} : vector<64x6xf32>, vector<6x3xf32>, vector<64x3xf32> -> vector<64x3xf32>
    %80 = arith.addf %78, %79 : vector<64x3xf32>
    %81 = vector.broadcast %72 : vector<1x3xf32> to vector<64x3xf32>
    %82 = arith.addf %80, %81 : vector<64x3xf32>
    %83 = arith.maximumf %77, %82 : vector<64x3xf32>
    %cst_51 = arith.constant 0.000000e+00 : f32
    %84 = vector.broadcast %cst_51 : f32 to vector<64x3xf32>
    %85 = arith.maximumf %83, %84 : vector<64x3xf32>
    %c0_52 = arith.constant 0 : index
    %c0_53 = arith.constant 0 : index
    %86 = vector.load %arg18[%c0_52, %c0_53] : memref<256x128xf32, #tpu.memory_space<vmem>>, vector<64x3xf32>
    tpu.vector_store %arg18[%c0_52, %c0_53], %85 {strides = array<i32>} : memref<256x128xf32, #tpu.memory_space<vmem>>, vector<64x3xf32>,
    %c0_54 = arith.constant 0 : index
    %c0_55 = arith.constant 0 : index
    %87 = tpu.strided_load %arg18[%c0_54, %c0_55] {strides = array<i32: 8, 1>} : memref<256x128xf32, #tpu.memory_space<vmem>>, vector<8x3xf32>
    %c1_56 = arith.constant 1 : index
    %c0_57 = arith.constant 0 : index
    %88 = tpu.strided_load %arg18[%c1_56, %c0_57] {strides = array<i32: 8, 1>} : memref<256x128xf32, #tpu.memory_space<vmem>>, vector<8x3xf32>
    %c2 = arith.constant 2 : index
    %c0_58 = arith.constant 0 : index
    %89 = tpu.strided_load %arg18[%c2, %c0_58] {strides = array<i32: 8, 1>} : memref<256x128xf32, #tpu.memory_space<vmem>>, vector<8x3xf32>
    %c3 = arith.constant 3 : index
    %c0_59 = arith.constant 0 : index
    %90 = tpu.strided_load %arg18[%c3, %c0_59] {strides = array<i32: 8, 1>} : memref<256x128xf32, #tpu.memory_space<vmem>>, vector<8x3xf32>
    %c4 = arith.constant 4 : index
    %c0_60 = arith.constant 0 : index
    %91 = tpu.strided_load %arg18[%c4, %c0_60] {strides = array<i32: 8, 1>} : memref<256x128xf32, #tpu.memory_space<vmem>>, vector<8x3xf32>
    %c5 = arith.constant 5 : index
    %c0_61 = arith.constant 0 : index
    %92 = tpu.strided_load %arg18[%c5, %c0_61] {strides = array<i32: 8, 1>} : memref<256x128xf32, #tpu.memory_space<vmem>>, vector<8x3xf32>
    %c6 = arith.constant 6 : index
    %c0_62 = arith.constant 0 : index
    %93 = tpu.strided_load %arg18[%c6, %c0_62] {strides = array<i32: 8, 1>} : memref<256x128xf32, #tpu.memory_space<vmem>>, vector<8x3xf32>
    %c7 = arith.constant 7 : index
    %c0_63 = arith.constant 0 : index
    %94 = tpu.strided_load %arg18[%c7, %c0_63] {strides = array<i32: 8, 1>} : memref<256x128xf32, #tpu.memory_space<vmem>>, vector<8x3xf32>
    %95 = tpu.concatenate %87, %88, %89, %90, %91, %92, %93, %94 in 1 : vector<8x3xf32>, vector<8x3xf32>, vector<8x3xf32>, vector<8x3xf32>, vector<8x3xf32>, vector<8x3xf32>, vector<8x3xf32>, vector<8x3xf32> -> vector<8x24xf32>
    %c0_64 = arith.constant 0 : index
    %c0_65 = arith.constant 0 : index
    %96 = vector.load %arg11[%c0_64, %c0_65] : memref<24x64xf32, #tpu.memory_space<vmem>>, vector<24x64xf32>
    %cst_66 = arith.constant dense<0.000000e+00> : vector<8x64xf32>
    %97 = tpu.matmul %95, %96, %cst_66 {dimension_numbers = #tpu.dot_dimension_numbers<[1], [0], [0], [1], [0, 0, 1, 1], [], []>} : vector<8x24xf32>, vector<24x64xf32>, vector<8x64xf32> -> vector<8x64xf32>
    %c0_67 = arith.constant 0 : index
    %c0_68 = arith.constant 0 : index
    %98 = vector.load %arg12[%c0_67, %c0_68] : memref<1x64xf32, #tpu.memory_space<vmem>>, vector<1x64xf32>
    %99 = vector.broadcast %98 : vector<1x64xf32> to vector<8x64xf32>
    %100 = arith.addf %97, %99 : vector<8x64xf32>
    %cst_69 = arith.constant 0.000000e+00 : f32
    %101 = vector.broadcast %cst_69 : f32 to vector<8x64xf32>
    %102 = arith.maximumf %100, %101 : vector<8x64xf32>
    %c0_70 = arith.constant 0 : index
    %c0_71 = arith.constant 0 : index
    %103 = vector.load %arg13[%c0_70, %c0_71] : memref<64x32xf32, #tpu.memory_space<vmem>>, vector<64x32xf32>
    %cst_72 = arith.constant dense<0.000000e+00> : vector<8x32xf32>
    %104 = tpu.matmul %102, %103, %cst_72 {dimension_numbers = #tpu.dot_dimension_numbers<[1], [0], [0], [1], [0, 0, 1, 1], [], []>} : vector<8x64xf32>, vector<64x32xf32>, vector<8x32xf32> -> vector<8x32xf32>
    %c0_73 = arith.constant 0 : index
    %c0_74 = arith.constant 0 : index
    %105 = vector.load %arg14[%c0_73, %c0_74] : memref<1x32xf32, #tpu.memory_space<vmem>>, vector<1x32xf32>
    %106 = vector.broadcast %105 : vector<1x32xf32> to vector<8x32xf32>
    %107 = arith.addf %104, %106 : vector<8x32xf32>
    %cst_75 = arith.constant 0.000000e+00 : f32
    %108 = vector.broadcast %cst_75 : f32 to vector<8x32xf32>
    %109 = arith.maximumf %107, %108 : vector<8x32xf32>
    %c0_76 = arith.constant 0 : index
    %c0_77 = arith.constant 0 : index
    %110 = vector.load %arg15[%c0_76, %c0_77] : memref<32x2xf32, #tpu.memory_space<vmem>>, vector<32x2xf32>
    %cst_78 = arith.constant dense<0.000000e+00> : vector<8x2xf32>
    %111 = tpu.matmul %109, %110, %cst_78 {dimension_numbers = #tpu.dot_dimension_numbers<[1], [0], [0], [1], [0, 0, 1, 1], [], []>} : vector<8x32xf32>, vector<32x2xf32>, vector<8x2xf32> -> vector<8x2xf32>
    %c0_79 = arith.constant 0 : index
    %c0_80 = arith.constant 0 : index
    %112 = vector.load %arg16[%c0_79, %c0_80] : memref<1x2xf32, #tpu.memory_space<vmem>>, vector<1x2xf32>
    %113 = vector.broadcast %112 : vector<1x2xf32> to vector<8x2xf32>
    %114 = arith.addf %111, %113 : vector<8x2xf32>
    %c0_81 = arith.constant 0 : index
    %c0_82 = arith.constant 0 : index
    %115 = vector.load %arg17[%c0_81, %c0_82] : memref<8x2xf32, #tpu.memory_space<vmem>>, vector<8x2xf32>
    tpu.vector_store %arg17[%c0_81, %c0_82], %114 {strides = array<i32>} : memref<8x2xf32, #tpu.memory_space<vmem>>, vector<8x2xf32>,
    return
  }
  func.func @transform_0(%arg0: i32) -> (i32, i32) {
    %c0_i32 = arith.constant 0 : i32
    %c0_i32_0 = arith.constant 0 : i32
    return %arg0, %c0_i32 : i32, i32
  }
  func.func @transform_1(%arg0: i32) -> (i32, i32) {
    %c0_i32 = arith.constant 0 : i32
    %c0_i32_0 = arith.constant 0 : i32
    %c0_i32_1 = arith.constant 0 : i32
    return %c0_i32, %c0_i32_0 : i32, i32
  }
  func.func @transform_2(%arg0: i32) -> (i32, i32) {
    %c0_i32 = arith.constant 0 : i32
    %c0_i32_0 = arith.constant 0 : i32
    %c0_i32_1 = arith.constant 0 : i32
    return %c0_i32, %c0_i32_0 : i32, i32
  }
  func.func @transform_3(%arg0: i32) -> (i32, i32) {
    %c0_i32 = arith.constant 0 : i32
    %c0_i32_0 = arith.constant 0 : i32
    %c0_i32_1 = arith.constant 0 : i32
    return %c0_i32, %c0_i32_0 : i32, i32
  }
  func.func @transform_4(%arg0: i32) -> (i32, i32) {
    %c0_i32 = arith.constant 0 : i32
    %c0_i32_0 = arith.constant 0 : i32
    %c0_i32_1 = arith.constant 0 : i32
    return %c0_i32, %c0_i32_0 : i32, i32
  }
  func.func @transform_5(%arg0: i32) -> (i32, i32) {
    %c0_i32 = arith.constant 0 : i32
    %c0_i32_0 = arith.constant 0 : i32
    %c0_i32_1 = arith.constant 0 : i32
    return %c0_i32, %c0_i32_0 : i32, i32
  }
  func.func @transform_6(%arg0: i32) -> (i32, i32) {
    %c0_i32 = arith.constant 0 : i32
    %c0_i32_0 = arith.constant 0 : i32
    %c0_i32_1 = arith.constant 0 : i32
    return %c0_i32, %c0_i32_0 : i32, i32
  }
  func.func @transform_7(%arg0: i32) -> (i32, i32) {
    %c0_i32 = arith.constant 0 : i32
    %c0_i32_0 = arith.constant 0 : i32
    %c0_i32_1 = arith.constant 0 : i32
    return %c0_i32, %c0_i32_0 : i32, i32
  }
  func.func @transform_8(%arg0: i32) -> (i32, i32) {
    %c0_i32 = arith.constant 0 : i32
    %c0_i32_0 = arith.constant 0 : i32
    %c0_i32_1 = arith.constant 0 : i32
    return %c0_i32, %c0_i32_0 : i32, i32
  }
  func.func @transform_9(%arg0: i32) -> (i32, i32) {
    %c0_i32 = arith.constant 0 : i32
    %c0_i32_0 = arith.constant 0 : i32
    %c0_i32_1 = arith.constant 0 : i32
    return %c0_i32, %c0_i32_0 : i32, i32
  }
  func.func @transform_10(%arg0: i32) -> (i32, i32) {
    %c0_i32 = arith.constant 0 : i32
    %c0_i32_0 = arith.constant 0 : i32
    %c0_i32_1 = arith.constant 0 : i32
    return %c0_i32, %c0_i32_0 : i32, i32
  }
  func.func @transform_11(%arg0: i32) -> (i32, i32) {
    %c0_i32 = arith.constant 0 : i32
    %c0_i32_0 = arith.constant 0 : i32
    %c0_i32_1 = arith.constant 0 : i32
    return %c0_i32, %c0_i32_0 : i32, i32
  }
  func.func @transform_12(%arg0: i32) -> (i32, i32) {
    %c0_i32 = arith.constant 0 : i32
    %c0_i32_0 = arith.constant 0 : i32
    %c0_i32_1 = arith.constant 0 : i32
    return %c0_i32, %c0_i32_0 : i32, i32
  }
  func.func @transform_13(%arg0: i32) -> (i32, i32) {
    %c0_i32 = arith.constant 0 : i32
    %c0_i32_0 = arith.constant 0 : i32
    %c0_i32_1 = arith.constant 0 : i32
    return %c0_i32, %c0_i32_0 : i32, i32
  }
  func.func @transform_14(%arg0: i32) -> (i32, i32) {
    %c0_i32 = arith.constant 0 : i32
    %c0_i32_0 = arith.constant 0 : i32
    %c0_i32_1 = arith.constant 0 : i32
    return %c0_i32, %c0_i32_0 : i32, i32
  }
  func.func @transform_15(%arg0: i32) -> (i32, i32) {
    %c0_i32 = arith.constant 0 : i32
    %c0_i32_0 = arith.constant 0 : i32
    %c0_i32_1 = arith.constant 0 : i32
    return %c0_i32, %c0_i32_0 : i32, i32
  }
  func.func @transform_16(%arg0: i32) -> (i32, i32) {
    %c0_i32 = arith.constant 0 : i32
    %c0_i32_0 = arith.constant 0 : i32
    return %arg0, %c0_i32 : i32, i32
  }
}

</mosaic_0001>

<llo_original>
// kernel: cnn_ground_aav_forward.1
$region0: #{cnn_ground_aav_forward.1}
  #allocation0 [shape = 'u32[]', space=smem, size = 0x4, offset = 0x4, fixed_abs, tag = 'smem constant byte address 0x4 - core index']
  #allocation1 [shape = 'u32[144,128]{1,0:T(1,128)}', space=vmem, size = 0x12000, scoped, tag = 'internal scratch']
  #allocation2 [shape = 'f32[256,128]{1,0:T(8,128)}', space=vmem, size = 0x20000, scoped, tag = 'scratch operand']
  %s0 = inlined_call_operand.vmem [shape: f32[512,21], index: 0, kind: input, shape index: {}]
  %s1 = inlined_call_operand.vmem [shape: f32[21,12], index: 1, kind: input, shape index: {}]
  %s2 = inlined_call_operand.vmem [shape: f32[21,12], index: 2, kind: input, shape index: {}]
  %s3 = inlined_call_operand.vmem [shape: f32[1,12], index: 3, kind: input, shape index: {}]
  %s4 = inlined_call_operand.vmem [shape: f32[12,6], index: 4, kind: input, shape index: {}]
  %s5 = inlined_call_operand.vmem [shape: f32[12,6], index: 5, kind: input, shape index: {}]
  %s6 = inlined_call_operand.vmem [shape: f32[1,6], index: 6, kind: input, shape index: {}]
  %s7 = inlined_call_operand.vmem [shape: f32[6,3], index: 7, kind: input, shape index: {}]
  %s8 = inlined_call_operand.vmem [shape: f32[6,3], index: 8, kind: input, shape index: {}]
  %s9 = inlined_call_operand.vmem [shape: f32[1,3], index: 9, kind: input, shape index: {}]
  %s10 = inlined_call_operand.vmem [shape: f32[24,64], index: 10, kind: input, shape index: {}]
  %s11 = inlined_call_operand.vmem [shape: f32[1,64], index: 11, kind: input, shape index: {}]
  %s12 = inlined_call_operand.vmem [shape: f32[64,32], index: 12, kind: input, shape index: {}]
  %s13 = inlined_call_operand.vmem [shape: f32[1,32], index: 13, kind: input, shape index: {}]
  %s14 = inlined_call_operand.vmem [shape: f32[32,2], index: 14, kind: input, shape index: {}]
  %s15 = inlined_call_operand.vmem [shape: f32[1,2], index: 15, kind: input, shape index: {}]
  %s16 = inlined_call_operand.vmem [shape: f32[8,2], index: 16, kind: output, shape index: {}]
  %s17 = sld [smem:[#allocation0]]
  $region74: #{cnn_ground_aav_forward.1} parent=0
    _
  %s19 = ssub.s32 1, %s17
  %s20 = scalar_select 0, %s19, %s17
  // Predicated region
  $region2: #{cnn_ground_aav_forward.1} parent=0 // pred_check
    _
  $region3: #{cnn_ground_aav_forward.1} parent=0 // pred_check_branch
    %22 = sbr.rel (0) target = $region5
  $region4: #{cnn_ground_aav_forward.1} parent=0 // pred_region
    _
  $region5: #{cnn_ground_aav_forward.1} parent=0 // pred_fallthru
    _
  // Predicated region
  $region6: #{cnn_ground_aav_forward.1} parent=0 // pred_check
    _
  $region7: #{cnn_ground_aav_forward.1} parent=0 // pred_check_branch
    %24 = sbr.rel (0) target = $region9
  $region8: #{cnn_ground_aav_forward.1} parent=0 // pred_region
    _
  $region9: #{cnn_ground_aav_forward.1} parent=0 // pred_fallthru
    _
  // Predicated region
  $region10: #{cnn_ground_aav_forward.1} parent=0 // pred_check
    _
  $region11: #{cnn_ground_aav_forward.1} parent=0 // pred_check_branch
    %26 = sbr.rel (0) target = $region13
  $region12: #{cnn_ground_aav_forward.1} parent=0 // pred_region
    _
  $region13: #{cnn_ground_aav_forward.1} parent=0 // pred_fallthru
    _
  // Predicated region
  $region14: #{cnn_ground_aav_forward.1} parent=0 // pred_check
    _
  $region15: #{cnn_ground_aav_forward.1} parent=0 // pred_check_branch
    %28 = sbr.rel (0) target = $region17
  $region16: #{cnn_ground_aav_forward.1} parent=0 // pred_region
    _
  $region17: #{cnn_ground_aav_forward.1} parent=0 // pred_fallthru
    _
  // Predicated region
  $region18: #{cnn_ground_aav_forward.1} parent=0 // pred_check
    _
  $region19: #{cnn_ground_aav_forward.1} parent=0 // pred_check_branch
    %30 = sbr.rel (0) target = $region21
  $region20: #{cnn_ground_aav_forward.1} parent=0 // pred_region
    _
  $region21: #{cnn_ground_aav_forward.1} parent=0 // pred_fallthru
    _
  // Predicated region
  $region22: #{cnn_ground_aav_forward.1} parent=0 // pred_check
    _
  $region23: #{cnn_ground_aav_forward.1} parent=0 // pred_check_branch
    %32 = sbr.rel (0) target = $region25
  $region24: #{cnn_ground_aav_forward.1} parent=0 // pred_region
    _
  $region25: #{cnn_ground_aav_forward.1} parent=0 // pred_fallthru
    _
  // Predicated region
  $region26: #{cnn_ground_aav_forward.1} parent=0 // pred_check
    _
  $region27: #{cnn_ground_aav_forward.1} parent=0 // pred_check_branch
    %34 = sbr.rel (0) target = $region29
  $region28: #{cnn_ground_aav_forward.1} parent=0 // pred_region
    _
  $region29: #{cnn_ground_aav_forward.1} parent=0 // pred_fallthru
    _
  // Predicated region
  $region30: #{cnn_ground_aav_forward.1} parent=0 // pred_check
    _
  $region31: #{cnn_ground_aav_forward.1} parent=0 // pred_check_branch
    %36 = sbr.rel (0) target = $region33
  $region32: #{cnn_ground_aav_forward.1} parent=0 // pred_region
    _
  $region33: #{cnn_ground_aav_forward.1} parent=0 // pred_fallthru
    _
  // Predicated region
  $region34: #{cnn_ground_aav_forward.1} parent=0 // pred_check
    _
  $region35: #{cnn_ground_aav_forward.1} parent=0 // pred_check_branch
    %38 = sbr.rel (0) target = $region37
  $region36: #{cnn_ground_aav_forward.1} parent=0 // pred_region
    _
  $region37: #{cnn_ground_aav_forward.1} parent=0 // pred_fallthru
    _
  // Predicated region
  $region38: #{cnn_ground_aav_forward.1} parent=0 // pred_check
    _
  $region39: #{cnn_ground_aav_forward.1} parent=0 // pred_check_branch
    %40 = sbr.rel (0) target = $region41
  $region40: #{cnn_ground_aav_forward.1} parent=0 // pred_region
    _
  $region41: #{cnn_ground_aav_forward.1} parent=0 // pred_fallthru
    _
  // Predicated region
  $region42: #{cnn_ground_aav_forward.1} parent=0 // pred_check
    _
  $region43: #{cnn_ground_aav_forward.1} parent=0 // pred_check_branch
    %42 = sbr.rel (0) target = $region45
  $region44: #{cnn_ground_aav_forward.1} parent=0 // pred_region
    _
  $region45: #{cnn_ground_aav_forward.1} parent=0 // pred_fallthru
    _
  // Predicated region
  $region46: #{cnn_ground_aav_forward.1} parent=0 // pred_check
    _
  $region47: #{cnn_ground_aav_forward.1} parent=0 // pred_check_branch
    %44 = sbr.rel (0) target = $region49
  $region48: #{cnn_ground_aav_forward.1} parent=0 // pred_region
    _
  $region49: #{cnn_ground_aav_forward.1} parent=0 // pred_fallthru
    _
  // Predicated region
  $region50: #{cnn_ground_aav_forward.1} parent=0 // pred_check
    _
  $region51: #{cnn_ground_aav_forward.1} parent=0 // pred_check_branch
    %46 = sbr.rel (0) target = $region53
  $region52: #{cnn_ground_aav_forward.1} parent=0 // pred_region
    _
  $region53: #{cnn_ground_aav_forward.1} parent=0 // pred_fallthru
    _
  // Predicated region
  $region54: #{cnn_ground_aav_forward.1} parent=0 // pred_check
    _
  $region55: #{cnn_ground_aav_forward.1} parent=0 // pred_check_branch
    %48 = sbr.rel (0) target = $region57
  $region56: #{cnn_ground_aav_forward.1} parent=0 // pred_region
    _
  $region57: #{cnn_ground_aav_forward.1} parent=0 // pred_fallthru
    _
  // Predicated region
  $region58: #{cnn_ground_aav_forward.1} parent=0 // pred_check
    _
  $region59: #{cnn_ground_aav_forward.1} parent=0 // pred_check_branch
    %50 = sbr.rel (0) target = $region61
  $region60: #{cnn_ground_aav_forward.1} parent=0 // pred_region
    _
  $region61: #{cnn_ground_aav_forward.1} parent=0 // pred_fallthru
    _
  // Predicated region
  $region62: #{cnn_ground_aav_forward.1} parent=0 // pred_check
    _
  $region63: #{cnn_ground_aav_forward.1} parent=0 // pred_check_branch
    %52 = sbr.rel (0) target = $region65
  $region64: #{cnn_ground_aav_forward.1} parent=0 // pred_region
    _
  $region65: #{cnn_ground_aav_forward.1} parent=0 // pred_fallthru
    _
  %v53 = vld [vmem:[%s0] ss:$2 sm:$0xff]
  %s54 = scalar_lea.vmem %s0, 16
  %v55 = vld [vmem:[%s54] ss:$2 sm:$0xff]
  %s56 = scalar_lea.vmem %s0, 32
  %v57 = vld [vmem:[%s56] ss:$2 sm:$0xff]
  %s58 = scalar_lea.vmem %s0, 48
  %v59 = vld [vmem:[%s58] ss:$2 sm:$0xff]
  %s60 = scalar_lea.vmem %s0, 64
  %v61 = vld [vmem:[%s60] ss:$2 sm:$0xff]
  %s62 = scalar_lea.vmem %s0, 80
  %v63 = vld [vmem:[%s62] ss:$2 sm:$0xff]
  %s64 = scalar_lea.vmem %s0, 96
  %v65 = vld [vmem:[%s64] ss:$2 sm:$0xff]
  %s66 = scalar_lea.vmem %s0, 112
  %v67 = vld [vmem:[%s66] ss:$2 sm:$0xff]
  %s68 = scalar_lea.vmem %s0, 128
  %v69 = vld [vmem:[%s68] ss:$2 sm:$0xff]
  %s70 = scalar_lea.vmem %s0, 144
  %v71 = vld [vmem:[%s70] ss:$2 sm:$0xff]
  %s72 = scalar_lea.vmem %s0, 160
  %v73 = vld [vmem:[%s72] ss:$2 sm:$0xff]
  %s74 = scalar_lea.vmem %s0, 176
  %v75 = vld [vmem:[%s74] ss:$2 sm:$0xff]
  %s76 = scalar_lea.vmem %s0, 192
  %v77 = vld [vmem:[%s76] ss:$2 sm:$0xff]
  %s78 = scalar_lea.vmem %s0, 208
  %v79 = vld [vmem:[%s78] ss:$2 sm:$0xff]
  %s80 = scalar_lea.vmem %s0, 224
  %v81 = vld [vmem:[%s80] ss:$2 sm:$0xff]
  %s82 = scalar_lea.vmem %s0, 240
  %v83 = vld [vmem:[%s82] ss:$2 sm:$0xff]
  %s84 = scalar_lea.vmem %s0, 256
  %v85 = vld [vmem:[%s84] ss:$2 sm:$0xff]
  %s86 = scalar_lea.vmem %s0, 272
  %v87 = vld [vmem:[%s86] ss:$2 sm:$0xff]
  %s88 = scalar_lea.vmem %s0, 288
  %v89 = vld [vmem:[%s88] ss:$2 sm:$0xff]
  %s90 = scalar_lea.vmem %s0, 304
  %v91 = vld [vmem:[%s90] ss:$2 sm:$0xff]
  %s92 = scalar_lea.vmem %s0, 320
  %v93 = vld [vmem:[%s92] ss:$2 sm:$0xff]
  %s94 = scalar_lea.vmem %s0, 336
  %v95 = vld [vmem:[%s94] ss:$2 sm:$0xff]
  %s96 = scalar_lea.vmem %s0, 352
  %v97 = vld [vmem:[%s96] ss:$2 sm:$0xff]
  %s98 = scalar_lea.vmem %s0, 368
  %v99 = vld [vmem:[%s98] ss:$2 sm:$0xff]
  %s100 = scalar_lea.vmem %s0, 384
  %v101 = vld [vmem:[%s100] ss:$2 sm:$0xff]
  %s102 = scalar_lea.vmem %s0, 400
  %v103 = vld [vmem:[%s102] ss:$2 sm:$0xff]
  %s104 = scalar_lea.vmem %s0, 416
  %v105 = vld [vmem:[%s104] ss:$2 sm:$0xff]
  %s106 = scalar_lea.vmem %s0, 432
  %v107 = vld [vmem:[%s106] ss:$2 sm:$0xff]
  %s108 = scalar_lea.vmem %s0, 448
  %v109 = vld [vmem:[%s108] ss:$2 sm:$0xff]
  %s110 = scalar_lea.vmem %s0, 464
  %v111 = vld [vmem:[%s110] ss:$2 sm:$0xff]
  %s112 = scalar_lea.vmem %s0, 480
  %v113 = vld [vmem:[%s112] ss:$2 sm:$0xff]
  %s114 = scalar_lea.vmem %s0, 496
  %v115 = vld [vmem:[%s114] ss:$2 sm:$0xff]
  %s116 = scalar_lea.vmem %s0, 1
  %v117 = vld [vmem:[%s116] ss:$2 sm:$0xff]
  %s118 = scalar_lea.vmem %s0, 17
  %v119 = vld [vmem:[%s118] ss:$2 sm:$0xff]
  %s120 = scalar_lea.vmem %s0, 33
  %v121 = vld [vmem:[%s120] ss:$2 sm:$0xff]
  %s122 = scalar_lea.vmem %s0, 49
  %v123 = vld [vmem:[%s122] ss:$2 sm:$0xff]
  %s124 = scalar_lea.vmem %s0, 65
  %v125 = vld [vmem:[%s124] ss:$2 sm:$0xff]
  %s126 = scalar_lea.vmem %s0, 81
  %v127 = vld [vmem:[%s126] ss:$2 sm:$0xff]
  %s128 = scalar_lea.vmem %s0, 97
  %v129 = vld [vmem:[%s128] ss:$2 sm:$0xff]
  %s130 = scalar_lea.vmem %s0, 113
  %v131 = vld [vmem:[%s130] ss:$2 sm:$0xff]
  %s132 = scalar_lea.vmem %s0, 129
  %v133 = vld [vmem:[%s132] ss:$2 sm:$0xff]
  %s134 = scalar_lea.vmem %s0, 145
  %v135 = vld [vmem:[%s134] ss:$2 sm:$0xff]
  %s136 = scalar_lea.vmem %s0, 161
  %v137 = vld [vmem:[%s136] ss:$2 sm:$0xff]
  %s138 = scalar_lea.vmem %s0, 177
  %v139 = vld [vmem:[%s138] ss:$2 sm:$0xff]
  %s140 = scalar_lea.vmem %s0, 193
  %v141 = vld [vmem:[%s140] ss:$2 sm:$0xff]
  %s142 = scalar_lea.vmem %s0, 209
  %v143 = vld [vmem:[%s142] ss:$2 sm:$0xff]
  %s144 = scalar_lea.vmem %s0, 225
  %v145 = vld [vmem:[%s144] ss:$2 sm:$0xff]
  %s146 = scalar_lea.vmem %s0, 241
  %v147 = vld [vmem:[%s146] ss:$2 sm:$0xff]
  %s148 = scalar_lea.vmem %s0, 257
  %v149 = vld [vmem:[%s148] ss:$2 sm:$0xff]
  %s150 = scalar_lea.vmem %s0, 273
  %v151 = vld [vmem:[%s150] ss:$2 sm:$0xff]
  %s152 = scalar_lea.vmem %s0, 289
  %v153 = vld [vmem:[%s152] ss:$2 sm:$0xff]
  %s154 = scalar_lea.vmem %s0, 305
  %v155 = vld [vmem:[%s154] ss:$2 sm:$0xff]
  %s156 = scalar_lea.vmem %s0, 321
  %v157 = vld [vmem:[%s156] ss:$2 sm:$0xff]
  %s158 = scalar_lea.vmem %s0, 337
  %v159 = vld [vmem:[%s158] ss:$2 sm:$0xff]
  %s160 = scalar_lea.vmem %s0, 353
  %v161 = vld [vmem:[%s160] ss:$2 sm:$0xff]
  %s162 = scalar_lea.vmem %s0, 369
  %v163 = vld [vmem:[%s162] ss:$2 sm:$0xff]
  %s164 = scalar_lea.vmem %s0, 385
  %v165 = vld [vmem:[%s164] ss:$2 sm:$0xff]
  %s166 = scalar_lea.vmem %s0, 401
  %v167 = vld [vmem:[%s166] ss:$2 sm:$0xff]
  %s168 = scalar_lea.vmem %s0, 417
  %v169 = vld [vmem:[%s168] ss:$2 sm:$0xff]
  %s170 = scalar_lea.vmem %s0, 433
  %v171 = vld [vmem:[%s170] ss:$2 sm:$0xff]
  %s172 = scalar_lea.vmem %s0, 449
  %v173 = vld [vmem:[%s172] ss:$2 sm:$0xff]
  %s174 = scalar_lea.vmem %s0, 465
  %v175 = vld [vmem:[%s174] ss:$2 sm:$0xff]
  %s176 = scalar_lea.vmem %s0, 481
  %v177 = vld [vmem:[%s176] ss:$2 sm:$0xff]
  %s178 = scalar_lea.vmem %s0, 497
  %v179 = vld [vmem:[%s178] ss:$2 sm:$0xff]
  %v180 = vrot.slane %v53, 1
  %v181 = vrot.slane %v55, 1
  %v182 = vrot.slane %v57, 1
  %v183 = vrot.slane %v59, 1
  %v184 = vrot.slane %v61, 1
  %v185 = vrot.slane %v63, 1
  %v186 = vrot.slane %v65, 1
  %v187 = vrot.slane %v67, 1
  %v188 = vrot.slane %v69, 1
  %v189 = vrot.slane %v71, 1
  %v190 = vrot.slane %v73, 1
  %v191 = vrot.slane %v75, 1
  %v192 = vrot.slane %v77, 1
  %v193 = vrot.slane %v79, 1
  %v194 = vrot.slane %v81, 1
  %v195 = vrot.slane %v83, 1
  %v196 = vrot.slane %v85, 1
  %v197 = vrot.slane %v87, 1
  %v198 = vrot.slane %v89, 1
  %v199 = vrot.slane %v91, 1
  %v200 = vrot.slane %v93, 1
  %v201 = vrot.slane %v95, 1
  %v202 = vrot.slane %v97, 1
  %v203 = vrot.slane %v99, 1
  %v204 = vrot.slane %v101, 1
  %v205 = vrot.slane %v103, 1
  %v206 = vrot.slane %v105, 1
  %v207 = vrot.slane %v107, 1
  %v208 = vrot.slane %v109, 1
  %v209 = vrot.slane %v111, 1
  %v210 = vrot.slane %v113, 1
  %v211 = vrot.slane %v115, 1
  %v212 = vlaneseq
  %v213 = vshrl.u32 %v212, 7
  %vm214 = vcmp.lt.s32.totalorder %v213, 7
  %v215 = vsel %vm214, %v210, %v211
  %v216 = vsel %vm214, %v209, %v210
  %v217 = vsel %vm214, %v208, %v209
  %v218 = vsel %vm214, %v207, %v208
  %v219 = vsel %vm214, %v206, %v207
  %v220 = vsel %vm214, %v205, %v206
  %v221 = vsel %vm214, %v204, %v205
  %v222 = vsel %vm214, %v203, %v204
  %v223 = vsel %vm214, %v202, %v203
  %v224 = vsel %vm214, %v201, %v202
  %v225 = vsel %vm214, %v200, %v201
  %v226 = vsel %vm214, %v199, %v200
  %v227 = vsel %vm214, %v198, %v199
  %v228 = vsel %vm214, %v197, %v198
  %v229 = vsel %vm214, %v196, %v197
  %v230 = vsel %vm214, %v195, %v196
  %v231 = vsel %vm214, %v194, %v195
  %v232 = vsel %vm214, %v193, %v194
  %v233 = vsel %vm214, %v192, %v193
  %v234 = vsel %vm214, %v191, %v192
  %v235 = vsel %vm214, %v190, %v191
  %v236 = vsel %vm214, %v189, %v190
  %v237 = vsel %vm214, %v188, %v189
  %v238 = vsel %vm214, %v187, %v188
  %v239 = vsel %vm214, %v186, %v187
  %v240 = vsel %vm214, %v185, %v186
  %v241 = vsel %vm214, %v184, %v185
  %v242 = vsel %vm214, %v183, %v184
  %v243 = vsel %vm214, %v182, %v183
  %v244 = vsel %vm214, %v181, %v182
  %v245 = vsel %vm214, %v180, %v181
  %v246 = vsel %vm214, %v211, %v180
  %v247 = vadd.s32 %v213, 8
  %v248 = vadd.s32 %v213, 16
  %v249 = vadd.s32 %v213, 24
  %v250 = vadd.s32 %v213, 32
  %v251 = vadd.s32 %v213, 40
  %v252 = vadd.s32 %v213, 48
  %v253 = vadd.s32 %v213, 56
  %v254 = vadd.s32 %v213, 64
  %v255 = vadd.s32 %v213, 72
  %v256 = vadd.s32 %v213, 80
  %v257 = vadd.s32 %v213, 88
  %v258 = vadd.s32 %v213, 96
  %v259 = vadd.s32 %v213, 104
  %v260 = vadd.s32 %v213, 112
  %v261 = vadd.s32 %v213, 120
  %v262 = vadd.s32 %v213, 128
  %v263 = vadd.s32 %v213, 136
  %v264 = vadd.s32 %v213, 144
  %v265 = vadd.s32 %v213, 152
  %v266 = vadd.s32 %v213, 160
  %v267 = vadd.s32 %v213, 168
  %v268 = vadd.s32 %v213, 176
  %v269 = vadd.s32 %v213, 184
  %v270 = vadd.s32 %v213, 192
  %v271 = vadd.s32 %v213, 200
  %v272 = vadd.s32 %v213, 208
  %v273 = vadd.s32 %v213, 216
  %v274 = vadd.s32 %v213, 224
  %v275 = vadd.s32 %v213, 232
  %v276 = vadd.s32 %v213, 240
  %v277 = vadd.s32 %v213, 248
  %v278 = vand.u32 %v213, 31
  %v279 = vand.u32 %v247, 31
  %v280 = vand.u32 %v248, 31
  %v281 = vand.u32 %v249, 31
  %v282 = vand.u32 %v250, 31
  %v283 = vand.u32 %v251, 31
  %v284 = vand.u32 %v252, 31
  %v285 = vand.u32 %v253, 31
  %v286 = vand.u32 %v254, 31
  %v287 = vand.u32 %v255, 31
  %v288 = vand.u32 %v256, 31
  %v289 = vand.u32 %v257, 31
  %v290 = vand.u32 %v258, 31
  %v291 = vand.u32 %v259, 31
  %v292 = vand.u32 %v260, 31
  %v293 = vand.u32 %v261, 31
  %v294 = vand.u32 %v262, 31
  %v295 = vand.u32 %v263, 31
  %v296 = vand.u32 %v264, 31
  %v297 = vand.u32 %v265, 31
  %v298 = vand.u32 %v266, 31
  %v299 = vand.u32 %v267, 31
  %v300 = vand.u32 %v268, 31
  %v301 = vand.u32 %v269, 31
  %v302 = vand.u32 %v270, 31
  %v303 = vand.u32 %v271, 31
  %v304 = vand.u32 %v272, 31
  %v305 = vand.u32 %v273, 31
  %v306 = vand.u32 %v274, 31
  %v307 = vand.u32 %v275, 31
  %v308 = vand.u32 %v276, 31
  %v309 = vand.u32 %v277, 31
  %vm310 = vcmp.eq.s32.totalorder %v278, 31
  %vm311 = vcmp.eq.s32.totalorder %v279, 31
  %vm312 = vcmp.eq.s32.totalorder %v280, 31
  %vm313 = vcmp.eq.s32.totalorder %v281, 31
  %vm314 = vcmp.eq.s32.totalorder %v282, 31
  %vm315 = vcmp.eq.s32.totalorder %v283, 31
  %vm316 = vcmp.eq.s32.totalorder %v284, 31
  %vm317 = vcmp.eq.s32.totalorder %v285, 31
  %vm318 = vcmp.eq.s32.totalorder %v286, 31
  %vm319 = vcmp.eq.s32.totalorder %v287, 31
  %vm320 = vcmp.eq.s32.totalorder %v288, 31
  %vm321 = vcmp.eq.s32.totalorder %v289, 31
  %vm322 = vcmp.eq.s32.totalorder %v290, 31
  %vm323 = vcmp.eq.s32.totalorder %v291, 31
  %vm324 = vcmp.eq.s32.totalorder %v292, 31
  %vm325 = vcmp.eq.s32.totalorder %v293, 31
  %vm326 = vcmp.eq.s32.totalorder %v294, 31
  %vm327 = vcmp.eq.s32.totalorder %v295, 31
  %vm328 = vcmp.eq.s32.totalorder %v296, 31
  %vm329 = vcmp.eq.s32.totalorder %v297, 31
  %vm330 = vcmp.eq.s32.totalorder %v298, 31
  %vm331 = vcmp.eq.s32.totalorder %v299, 31
  %vm332 = vcmp.eq.s32.totalorder %v300, 31
  %vm333 = vcmp.eq.s32.totalorder %v301, 31
  %vm334 = vcmp.eq.s32.totalorder %v302, 31
  %vm335 = vcmp.eq.s32.totalorder %v303, 31
  %vm336 = vcmp.eq.s32.totalorder %v304, 31
  %vm337 = vcmp.eq.s32.totalorder %v305, 31
  %vm338 = vcmp.eq.s32.totalorder %v306, 31
  %vm339 = vcmp.eq.s32.totalorder %v307, 31
  %vm340 = vcmp.eq.s32.totalorder %v308, 31
  %vm341 = vcmp.eq.s32.totalorder %v309, 31
  %v342 = vsel %vm310, 1, 0
  %v343 = vsel %vm311, 1, 0
  %v344 = vsel %vm312, 1, 0
  %v345 = vsel %vm313, 1, 0
  %v346 = vsel %vm314, 1, 0
  %v347 = vsel %vm315, 1, 0
  %v348 = vsel %vm316, 1, 0
  %v349 = vsel %vm317, 1, 0
  %v350 = vsel %vm318, 1, 0
  %v351 = vsel %vm319, 1, 0
  %v352 = vsel %vm320, 1, 0
  %v353 = vsel %vm321, 1, 0
  %v354 = vsel %vm322, 1, 0
  %v355 = vsel %vm323, 1, 0
  %v356 = vsel %vm324, 1, 0
  %v357 = vsel %vm325, 1, 0
  %v358 = vsel %vm326, 1, 0
  %v359 = vsel %vm327, 1, 0
  %v360 = vsel %vm328, 1, 0
  %v361 = vsel %vm329, 1, 0
  %v362 = vsel %vm330, 1, 0
  %v363 = vsel %vm331, 1, 0
  %v364 = vsel %vm332, 1, 0
  %v365 = vsel %vm333, 1, 0
  %v366 = vsel %vm334, 1, 0
  %v367 = vsel %vm335, 1, 0
  %v368 = vsel %vm336, 1, 0
  %v369 = vsel %vm337, 1, 0
  %v370 = vsel %vm338, 1, 0
  %v371 = vsel %vm339, 1, 0
  %v372 = vsel %vm340, 1, 0
  %v373 = vsel %vm341, 1, 0
  %vm374 = vcmp.eq.s32.totalorder %v342, 1
  %vm375 = vcmp.eq.s32.totalorder %v343, 1
  %vm376 = vcmp.eq.s32.totalorder %v344, 1
  %vm377 = vcmp.eq.s32.totalorder %v345, 1
  %vm378 = vcmp.eq.s32.totalorder %v346, 1
  %vm379 = vcmp.eq.s32.totalorder %v347, 1
  %vm380 = vcmp.eq.s32.totalorder %v348, 1
  %vm381 = vcmp.eq.s32.totalorder %v349, 1
  %vm382 = vcmp.eq.s32.totalorder %v350, 1
  %vm383 = vcmp.eq.s32.totalorder %v351, 1
  %vm384 = vcmp.eq.s32.totalorder %v352, 1
  %vm385 = vcmp.eq.s32.totalorder %v353, 1
  %vm386 = vcmp.eq.s32.totalorder %v354, 1
  %vm387 = vcmp.eq.s32.totalorder %v355, 1
  %vm388 = vcmp.eq.s32.totalorder %v356, 1
  %vm389 = vcmp.eq.s32.totalorder %v357, 1
  %vm390 = vcmp.eq.s32.totalorder %v358, 1
  %vm391 = vcmp.eq.s32.totalorder %v359, 1
  %vm392 = vcmp.eq.s32.totalorder %v360, 1
  %vm393 = vcmp.eq.s32.totalorder %v361, 1
  %vm394 = vcmp.eq.s32.totalorder %v362, 1
  %vm395 = vcmp.eq.s32.totalorder %v363, 1
  %vm396 = vcmp.eq.s32.totalorder %v364, 1
  %vm397 = vcmp.eq.s32.totalorder %v365, 1
  %vm398 = vcmp.eq.s32.totalorder %v366, 1
  %vm399 = vcmp.eq.s32.totalorder %v367, 1
  %vm400 = vcmp.eq.s32.totalorder %v368, 1
  %vm401 = vcmp.eq.s32.totalorder %v369, 1
  %vm402 = vcmp.eq.s32.totalorder %v370, 1
  %vm403 = vcmp.eq.s32.totalorder %v371, 1
  %vm404 = vcmp.eq.s32.totalorder %v372, 1
  %vm405 = vcmp.eq.s32.totalorder %v373, 1
  %v406 = vsel %vm374, 0.0, %v245
  %v407 = vsel %vm375, 0.0, %v244
  %v408 = vsel %vm376, 0.0, %v243
  %v409 = vsel %vm377, 0.0, %v242
  %v410 = vsel %vm378, 0.0, %v241
  %v411 = vsel %vm379, 0.0, %v240
  %v412 = vsel %vm380, 0.0, %v239
  %v413 = vsel %vm381, 0.0, %v238
  %v414 = vsel %vm382, 0.0, %v237
  %v415 = vsel %vm383, 0.0, %v236
  %v416 = vsel %vm384, 0.0, %v235
  %v417 = vsel %vm385, 0.0, %v234
  %v418 = vsel %vm386, 0.0, %v233
  %v419 = vsel %vm387, 0.0, %v232
  %v420 = vsel %vm388, 0.0, %v231
  %v421 = vsel %vm389, 0.0, %v230
  %v422 = vsel %vm390, 0.0, %v229
  %v423 = vsel %vm391, 0.0, %v228
  %v424 = vsel %vm392, 0.0, %v227
  %v425 = vsel %vm393, 0.0, %v226
  %v426 = vsel %vm394, 0.0, %v225
  %v427 = vsel %vm395, 0.0, %v224
  %v428 = vsel %vm396, 0.0, %v223
  %v429 = vsel %vm397, 0.0, %v222
  %v430 = vsel %vm398, 0.0, %v221
  %v431 = vsel %vm399, 0.0, %v220
  %v432 = vsel %vm400, 0.0, %v219
  %v433 = vsel %vm401, 0.0, %v218
  %v434 = vsel %vm402, 0.0, %v217
  %v435 = vsel %vm403, 0.0, %v216
  %v436 = vsel %vm404, 0.0, %v215
  %v437 = vsel %vm405, 0.0, %v246
  %v438 = vld [vmem:[%s1] sm:$0xff]
  %v439 = vld [vmem:[%s1 + $0x8] sm:$0xff]
  %v440 = vld [vmem:[%s1 + $0x10] sm:$0x1f]
  %v441 = vld [vmem:[%s2] sm:$0xff]
  %v442 = vld [vmem:[%s2 + $0x8] sm:$0xff]
  %v443 = vld [vmem:[%s2 + $0x10] sm:$0x1f]
  %v444 = vld [vmem:[%s3] sm:$0x1]
  %vm445 = vcmask 171008
  %v447 = vsel %vm445, %v117, 0
  %v450 = vsel %vm445, %v119, 0
  %v453 = vsel %vm445, %v121, 0
  %v456 = vsel %vm445, %v123, 0
  %v459 = vsel %vm445, %v125, 0
  %v462 = vsel %vm445, %v127, 0
  %v465 = vsel %vm445, %v129, 0
  %v468 = vsel %vm445, %v131, 0
  %v471 = vsel %vm445, %v133, 0
  %v474 = vsel %vm445, %v135, 0
  %v477 = vsel %vm445, %v137, 0
  %v480 = vsel %vm445, %v139, 0
  %v483 = vsel %vm445, %v141, 0
  %v486 = vsel %vm445, %v143, 0
  %v489 = vsel %vm445, %v145, 0
  %v492 = vsel %vm445, %v147, 0
  %v495 = vsel %vm445, %v149, 0
  %v498 = vsel %vm445, %v151, 0
  %v501 = vsel %vm445, %v153, 0
  %v504 = vsel %vm445, %v155, 0
  %v507 = vsel %vm445, %v157, 0
  %v510 = vsel %vm445, %v159, 0
  %v513 = vsel %vm445, %v161, 0
  %v516 = vsel %vm445, %v163, 0
  %v519 = vsel %vm445, %v165, 0
  %v522 = vsel %vm445, %v167, 0
  %v525 = vsel %vm445, %v169, 0
  %v528 = vsel %vm445, %v171, 0
  %v531 = vsel %vm445, %v173, 0
  %v534 = vsel %vm445, %v175, 0
  %v537 = vsel %vm445, %v177, 0
  %v540 = vsel %vm445, %v179, 0
  %vm542 = vcmask 1044480
  %v544 = vsel %vm542, %v443, 0
  %546 = vmatprep.subr.mxu0 0.0
  %547 = vmatpush1.msra.mxu0 %v441
  %548 = vmatprep.subr.mxu0 0.0
  %549 = vmatpush1.msra.mxu0 %v442
  %550 = vmatprep.subr.mxu0 0.0
  %551 = vmatpush1.msra.mxu0 %v544
  %552 = vmatprep.subr.mxu0 0.0
  %553 = vmatpush1.msra.mxu0 0.0
  %554 = vmatprep.subr.mxu0 0.0
  %555 = vmatpush1.msra.mxu0 0.0
  %556 = vmatprep.subr.mxu0 0.0
  %557 = vmatpush1.msra.mxu0 0.0
  %558 = vmatprep.subr.mxu0 0.0
  %559 = vmatpush1.msra.mxu0 0.0
  %560 = vmatprep.subr.mxu0 0.0
  %561 = vmatpush1.msra.mxu0 0.0
  %562 = vmatprep.subr.mxu0 0.0
  %563 = vmatpush1.msra.mxu0 0.0
  %564 = vmatprep.subr.mxu0 0.0
  %565 = vmatpush1.msra.mxu0 0.0
  %566 = vmatprep.subr.mxu0 0.0
  %567 = vmatpush1.msra.mxu0 0.0
  %568 = vmatprep.subr.mxu0 0.0
  %569 = vmatpush1.msra.mxu0 0.0
  %570 = vmatprep.subr.mxu0 0.0
  %571 = vmatpush1.msra.mxu0 0.0
  %572 = vmatprep.subr.mxu0 0.0
  %573 = vmatpush1.msra.mxu0 0.0
  %574 = vmatprep.subr.mxu0 0.0
  %575 = vmatpush1.msra.mxu0 0.0
  %576 = vmatprep.subr.mxu0 0.0
  %577 = vmatpush1.msra.mxu0 0.0
  %578 = vmatprep.subr.mxu0 0.0
  %579 = vmatpush1.msra.mxu0 0.0
  %580 = vmatprep.subr.mxu0 0.0
  %581 = vmatpush1.msra.mxu0 0.0
  %582 = vmatprep.subr.mxu0 0.0
  %583 = vmatpush1.msra.mxu0 0.0
  %584 = vmatprep.subr.mxu0 0.0
  %585 = vmatpush1.msra.mxu0 0.0
  %586 = vmatprep.subr.mxu0 0.0
  %587 = vmatpush1.msra.mxu0 0.0
  %588 = vmatprep.subr.mxu0 0.0
  %589 = vmatpush1.msra.mxu0 0.0
  %590 = vmatprep.subr.mxu0 0.0
  %591 = vmatpush1.msra.mxu0 0.0
  %592 = vmatprep.subr.mxu0 0.0
  %593 = vmatpush1.msra.mxu0 0.0
  %594 = vmatprep.subr.mxu0 0.0
  %595 = vmatpush1.msra.mxu0 0.0
  %596 = vmatprep.subr.mxu0 0.0
  %597 = vmatpush1.msra.mxu0 0.0
  %598 = vmatprep.subr.mxu0 0.0
  %599 = vmatpush1.msra.mxu0 0.0
  %600 = vmatprep.subr.mxu0 0.0
  %601 = vmatpush1.msra.mxu0 0.0
  %602 = vmatprep.subr.mxu0 0.0
  %603 = vmatpush1.msra.mxu0 0.0
  %604 = vmatprep.subr.mxu0 0.0
  %605 = vmatpush1.msra.mxu0 0.0
  %606 = vmatprep.subr.mxu0 0.0
  %607 = vmatpush1.msra.mxu0 0.0
  %608 = vmatprep.subr.mxu0 0.0
  %609 = vmatpush1.msra.mxu0 0.0
  %610 = vmatprep.mubr.f32.mxu0 0.0
  %611 = vmatmul.mubr.f32.gmra.mrb[0].mxu0 %v447
  %v612 = vpop.f32.mrb[0].mxu0
  %v613 = vadd.f32 0.0, %v612
  %v614 = vpop.f32.mrb[0].mxu0
  %615 = vmatprep.mubr.f32.mxu0 0.0
  %616 = vmatmul.mubr.f32.gmra.mrb[0].mxu0 %v450
  %v617 = vpop.f32.mrb[0].mxu0
  %v618 = vadd.f32 0.0, %v617
  %v619 = vpop.f32.mrb[0].mxu0
  %620 = vmatprep.mubr.f32.mxu0 0.0
  %621 = vmatmul.mubr.f32.gmra.mrb[0].mxu0 %v453
  %v622 = vpop.f32.mrb[0].mxu0
  %v623 = vadd.f32 0.0, %v622
  %v624 = vpop.f32.mrb[0].mxu0
  %625 = vmatprep.mubr.f32.mxu0 0.0
  %626 = vmatmul.mubr.f32.gmra.mrb[0].mxu0 %v456
  %v627 = vpop.f32.mrb[0].mxu0
  %v628 = vadd.f32 0.0, %v627
  %v629 = vpop.f32.mrb[0].mxu0
  %630 = vmatprep.mubr.f32.mxu0 0.0
  %631 = vmatmul.mubr.f32.gmra.mrb[0].mxu0 %v459
  %v632 = vpop.f32.mrb[0].mxu0
  %v633 = vadd.f32 0.0, %v632
  %v634 = vpop.f32.mrb[0].mxu0
  %635 = vmatprep.mubr.f32.mxu0 0.0
  %636 = vmatmul.mubr.f32.gmra.mrb[0].mxu0 %v462
  %v637 = vpop.f32.mrb[0].mxu0
  %v638 = vadd.f32 0.0, %v637
  %v639 = vpop.f32.mrb[0].mxu0
  %640 = vmatprep.mubr.f32.mxu0 0.0
  %641 = vmatmul.mubr.f32.gmra.mrb[0].mxu0 %v465
  %v642 = vpop.f32.mrb[0].mxu0
  %v643 = vadd.f32 0.0, %v642
  %v644 = vpop.f32.mrb[0].mxu0
  %645 = vmatprep.mubr.f32.mxu0 0.0
  %646 = vmatmul.mubr.f32.gmra.mrb[0].mxu0 %v468
  %v647 = vpop.f32.mrb[0].mxu0
  %v648 = vadd.f32 0.0, %v647
  %v649 = vpop.f32.mrb[0].mxu0
  %650 = vmatprep.mubr.f32.mxu0 0.0
  %651 = vmatmul.mubr.f32.gmra.mrb[0].mxu0 %v471
  %v652 = vpop.f32.mrb[0].mxu0
  %v653 = vadd.f32 0.0, %v652
  %v654 = vpop.f32.mrb[0].mxu0
  %655 = vmatprep.mubr.f32.mxu0 0.0
  %656 = vmatmul.mubr.f32.gmra.mrb[0].mxu0 %v474
  %v657 = vpop.f32.mrb[0].mxu0
  %v658 = vadd.f32 0.0, %v657
  %v659 = vpop.f32.mrb[0].mxu0
  %660 = vmatprep.mubr.f32.mxu0 0.0
  %661 = vmatmul.mubr.f32.gmra.mrb[0].mxu0 %v477
  %v662 = vpop.f32.mrb[0].mxu0
  %v663 = vadd.f32 0.0, %v662
  %v664 = vpop.f32.mrb[0].mxu0
  %665 = vmatprep.mubr.f32.mxu0 0.0
  %666 = vmatmul.mubr.f32.gmra.mrb[0].mxu0 %v480
  %v667 = vpop.f32.mrb[0].mxu0
  %v668 = vadd.f32 0.0, %v667
  %v669 = vpop.f32.mrb[0].mxu0
  %670 = vmatprep.mubr.f32.mxu0 0.0
  %671 = vmatmul.mubr.f32.gmra.mrb[0].mxu0 %v483
  %v672 = vpop.f32.mrb[0].mxu0
  %v673 = vadd.f32 0.0, %v672
  %v674 = vpop.f32.mrb[0].mxu0
  %675 = vmatprep.mubr.f32.mxu0 0.0
  %676 = vmatmul.mubr.f32.gmra.mrb[0].mxu0 %v486
  %v677 = vpop.f32.mrb[0].mxu0
  %v678 = vadd.f32 0.0, %v677
  %v679 = vpop.f32.mrb[0].mxu0
  %680 = vmatprep.mubr.f32.mxu0 0.0
  %681 = vmatmul.mubr.f32.gmra.mrb[0].mxu0 %v489
  %v682 = vpop.f32.mrb[0].mxu0
  %v683 = vadd.f32 0.0, %v682
  %v684 = vpop.f32.mrb[0].mxu0
  %685 = vmatprep.mubr.f32.mxu0 0.0
  %686 = vmatmul.mubr.f32.gmra.mrb[0].mxu0 %v492
  %v687 = vpop.f32.mrb[0].mxu0
  %v688 = vadd.f32 0.0, %v687
  %v689 = vpop.f32.mrb[0].mxu0
  %690 = vmatprep.mubr.f32.mxu0 0.0
  %691 = vmatmul.mubr.f32.gmra.mrb[0].mxu0 %v495
  %v692 = vpop.f32.mrb[0].mxu0
  %v693 = vadd.f32 0.0, %v692
  %v694 = vpop.f32.mrb[0].mxu0
  %695 = vmatprep.mubr.f32.mxu0 0.0
  %696 = vmatmul.mubr.f32.gmra.mrb[0].mxu0 %v498
  %v697 = vpop.f32.mrb[0].mxu0
  %v698 = vadd.f32 0.0, %v697
  %v699 = vpop.f32.mrb[0].mxu0
  %700 = vmatprep.mubr.f32.mxu0 0.0
  %701 = vmatmul.mubr.f32.gmra.mrb[0].mxu0 %v501
  %v702 = vpop.f32.mrb[0].mxu0
  %v703 = vadd.f32 0.0, %v702
  %v704 = vpop.f32.mrb[0].mxu0
  %705 = vmatprep.mubr.f32.mxu0 0.0
  %706 = vmatmul.mubr.f32.gmra.mrb[0].mxu0 %v504
  %v707 = vpop.f32.mrb[0].mxu0
  %v708 = vadd.f32 0.0, %v707
  %v709 = vpop.f32.mrb[0].mxu0
  %710 = vmatprep.mubr.f32.mxu0 0.0
  %711 = vmatmul.mubr.f32.gmra.mrb[0].mxu0 %v507
  %v712 = vpop.f32.mrb[0].mxu0
  %v713 = vadd.f32 0.0, %v712
  %v714 = vpop.f32.mrb[0].mxu0
  %715 = vmatprep.mubr.f32.mxu0 0.0
  %716 = vmatmul.mubr.f32.gmra.mrb[0].mxu0 %v510
  %v717 = vpop.f32.mrb[0].mxu0
  %v718 = vadd.f32 0.0, %v717
  %v719 = vpop.f32.mrb[0].mxu0
  %720 = vmatprep.mubr.f32.mxu0 0.0
  %721 = vmatmul.mubr.f32.gmra.mrb[0].mxu0 %v513
  %v722 = vpop.f32.mrb[0].mxu0
  %v723 = vadd.f32 0.0, %v722
  %v724 = vpop.f32.mrb[0].mxu0
  %725 = vmatprep.mubr.f32.mxu0 0.0
  %726 = vmatmul.mubr.f32.gmra.mrb[0].mxu0 %v516
  %v727 = vpop.f32.mrb[0].mxu0
  %v728 = vadd.f32 0.0, %v727
  %v729 = vpop.f32.mrb[0].mxu0
  %730 = vmatprep.mubr.f32.mxu0 0.0
  %731 = vmatmul.mubr.f32.gmra.mrb[0].mxu0 %v519
  %v732 = vpop.f32.mrb[0].mxu0
  %v733 = vadd.f32 0.0, %v732
  %v734 = vpop.f32.mrb[0].mxu0
  %735 = vmatprep.mubr.f32.mxu0 0.0
  %736 = vmatmul.mubr.f32.gmra.mrb[0].mxu0 %v522
  %v737 = vpop.f32.mrb[0].mxu0
  %v738 = vadd.f32 0.0, %v737
  %v739 = vpop.f32.mrb[0].mxu0
  %740 = vmatprep.mubr.f32.mxu0 0.0
  %741 = vmatmul.mubr.f32.gmra.mrb[0].mxu0 %v525
  %v742 = vpop.f32.mrb[0].mxu0
  %v743 = vadd.f32 0.0, %v742
  %v744 = vpop.f32.mrb[0].mxu0
  %745 = vmatprep.mubr.f32.mxu0 0.0
  %746 = vmatmul.mubr.f32.gmra.mrb[0].mxu0 %v528
  %v747 = vpop.f32.mrb[0].mxu0
  %v748 = vadd.f32 0.0, %v747
  %v749 = vpop.f32.mrb[0].mxu0
  %750 = vmatprep.mubr.f32.mxu0 0.0
  %751 = vmatmul.mubr.f32.gmra.mrb[0].mxu0 %v531
  %v752 = vpop.f32.mrb[0].mxu0
  %v753 = vadd.f32 0.0, %v752
  %v754 = vpop.f32.mrb[0].mxu0
  %755 = vmatprep.mubr.f32.mxu0 0.0
  %756 = vmatmul.mubr.f32.gmra.mrb[0].mxu0 %v534
  %v757 = vpop.f32.mrb[0].mxu0
  %v758 = vadd.f32 0.0, %v757
  %v759 = vpop.f32.mrb[0].mxu0
  %760 = vmatprep.mubr.f32.mxu0 0.0
  %761 = vmatmul.mubr.f32.gmra.mrb[0].mxu0 %v537
  %v762 = vpop.f32.mrb[0].mxu0
  %v763 = vadd.f32 0.0, %v762
  %v764 = vpop.f32.mrb[0].mxu0
  %765 = vmatprep.mubr.f32.mxu0 0.0
  %766 = vmatmul.mubr.f32.gmra.mrb[0].mxu0 %v540
  %v767 = vpop.f32.mrb[0].mxu0
  %v768 = vadd.f32 0.0, %v767
  %v769 = vpop.f32.mrb[0].mxu0
  %770 = vdwg.mxu0
  %v772 = vsel %vm445, %v53, 0
  %v775 = vsel %vm445, %v55, 0
  %v778 = vsel %vm445, %v57, 0
  %v781 = vsel %vm445, %v59, 0
  %v784 = vsel %vm445, %v61, 0
  %v787 = vsel %vm445, %v63, 0
  %v790 = vsel %vm445, %v65, 0
  %v793 = vsel %vm445, %v67, 0
  %v796 = vsel %vm445, %v69, 0
  %v799 = vsel %vm445, %v71, 0
  %v802 = vsel %vm445, %v73, 0
  %v805 = vsel %vm445, %v75, 0
  %v808 = vsel %vm445, %v77, 0
  %v811 = vsel %vm445, %v79, 0
  %v814 = vsel %vm445, %v81, 0
  %v817 = vsel %vm445, %v83, 0
  %v820 = vsel %vm445, %v85, 0
  %v823 = vsel %vm445, %v87, 0
  %v826 = vsel %vm445, %v89, 0
  %v829 = vsel %vm445, %v91, 0
  %v832 = vsel %vm445, %v93, 0
  %v835 = vsel %vm445, %v95, 0
  %v838 = vsel %vm445, %v97, 0
  %v841 = vsel %vm445, %v99, 0
  %v844 = vsel %vm445, %v101, 0
  %v847 = vsel %vm445, %v103, 0
  %v850 = vsel %vm445, %v105, 0
  %v853 = vsel %vm445, %v107, 0
  %v856 = vsel %vm445, %v109, 0
  %v859 = vsel %vm445, %v111, 0
  %v862 = vsel %vm445, %v113, 0
  %v865 = vsel %vm445, %v115, 0
  %v868 = vsel %vm542, %v440, 0
  %870 = vmatprep.subr.mxu0 0.0
  %871 = vmatpush1.msra.mxu0 %v438
  %872 = vmatprep.subr.mxu0 0.0
  %873 = vmatpush1.msra.mxu0 %v439
  %874 = vmatprep.subr.mxu0 0.0
  %875 = vmatpush1.msra.mxu0 %v868
  %876 = vmatprep.subr.mxu0 0.0
  %877 = vmatpush1.msra.mxu0 0.0
  %878 = vmatprep.subr.mxu0 0.0
  %879 = vmatpush1.msra.mxu0 0.0
  %880 = vmatprep.subr.mxu0 0.0
  %881 = vmatpush1.msra.mxu0 0.0
  %882 = vmatprep.subr.mxu0 0.0
  %883 = vmatpush1.msra.mxu0 0.0
  %884 = vmatprep.subr.mxu0 0.0
  %885 = vmatpush1.msra.mxu0 0.0
  %886 = vmatprep.subr.mxu0 0.0
  %887 = vmatpush1.msra.mxu0 0.0
  %888 = vmatprep.subr.mxu0 0.0
  %889 = vmatpush1.msra.mxu0 0.0
  %890 = vmatprep.subr.mxu0 0.0
  %891 = vmatpush1.msra.mxu0 0.0
  %892 = vmatprep.subr.mxu0 0.0
  %893 = vmatpush1.msra.mxu0 0.0
  %894 = vmatprep.subr.mxu0 0.0
  %895 = vmatpush1.msra.mxu0 0.0
  %896 = vmatprep.subr.mxu0 0.0
  %897 = vmatpush1.msra.mxu0 0.0
  %898 = vmatprep.subr.mxu0 0.0
  %899 = vmatpush1.msra.mxu0 0.0
  %900 = vmatprep.subr.mxu0 0.0
  %901 = vmatpush1.msra.mxu0 0.0
  %902 = vmatprep.subr.mxu0 0.0
  %903 = vmatpush1.msra.mxu0 0.0
  %904 = vmatprep.subr.mxu0 0.0
  %905 = vmatpush1.msra.mxu0 0.0
  %906 = vmatprep.subr.mxu0 0.0
  %907 = vmatpush1.msra.mxu0 0.0
  %908 = vmatprep.subr.mxu0 0.0
  %909 = vmatpush1.msra.mxu0 0.0
  %910 = vmatprep.subr.mxu0 0.0
  %911 = vmatpush1.msra.mxu0 0.0
  %912 = vmatprep.subr.mxu0 0.0
  %913 = vmatpush1.msra.mxu0 0.0
  %914 = vmatprep.subr.mxu0 0.0
  %915 = vmatpush1.msra.mxu0 0.0
  %916 = vmatprep.subr.mxu0 0.0
  %917 = vmatpush1.msra.mxu0 0.0
  %918 = vmatprep.subr.mxu0 0.0
  %919 = vmatpush1.msra.mxu0 0.0
  %920 = vmatprep.subr.mxu0 0.0
  %921 = vmatpush1.msra.mxu0 0.0
  %922 = vmatprep.subr.mxu0 0.0
  %923 = vmatpush1.msra.mxu0 0.0
  %924 = vmatprep.subr.mxu0 0.0
  %925 = vmatpush1.msra.mxu0 0.0
  %926 = vmatprep.subr.mxu0 0.0
  %927 = vmatpush1.msra.mxu0 0.0
  %928 = vmatprep.subr.mxu0 0.0
  %929 = vmatpush1.msra.mxu0 0.0
  %930 = vmatprep.subr.mxu0 0.0
  %931 = vmatpush1.msra.mxu0 0.0
  %932 = vmatprep.subr.mxu0 0.0
  %933 = vmatpush1.msra.mxu0 0.0
  %934 = vmatprep.mubr.f32.mxu0 0.0
  %935 = vmatmul.mubr.f32.gmra.mrb[0].mxu0 %v772
  %v936 = vpop.f32.mrb[0].mxu0
  %v937 = vadd.f32 %v613, %v936
  %v938 = vpop.f32.mrb[0].mxu0
  %939 = vmatprep.mubr.f32.mxu0 0.0
  %940 = vmatmul.mubr.f32.gmra.mrb[0].mxu0 %v775
  %v941 = vpop.f32.mrb[0].mxu0
  %v942 = vadd.f32 %v618, %v941
  %v943 = vpop.f32.mrb[0].mxu0
  %944 = vmatprep.mubr.f32.mxu0 0.0
  %945 = vmatmul.mubr.f32.gmra.mrb[0].mxu0 %v778
  %v946 = vpop.f32.mrb[0].mxu0
  %v947 = vadd.f32 %v623, %v946
  %v948 = vpop.f32.mrb[0].mxu0
  %949 = vmatprep.mubr.f32.mxu0 0.0
  %950 = vmatmul.mubr.f32.gmra.mrb[0].mxu0 %v781
  %v951 = vpop.f32.mrb[0].mxu0
  %v952 = vadd.f32 %v628, %v951
  %v953 = vpop.f32.mrb[0].mxu0
  %954 = vmatprep.mubr.f32.mxu0 0.0
  %955 = vmatmul.mubr.f32.gmra.mrb[0].mxu0 %v784
  %v956 = vpop.f32.mrb[0].mxu0
  %v957 = vadd.f32 %v633, %v956
  %v958 = vpop.f32.mrb[0].mxu0
  %959 = vmatprep.mubr.f32.mxu0 0.0
  %960 = vmatmul.mubr.f32.gmra.mrb[0].mxu0 %v787
  %v961 = vpop.f32.mrb[0].mxu0
  %v962 = vadd.f32 %v638, %v961
  %v963 = vpop.f32.mrb[0].mxu0
  %964 = vmatprep.mubr.f32.mxu0 0.0
  %965 = vmatmul.mubr.f32.gmra.mrb[0].mxu0 %v790
  %v966 = vpop.f32.mrb[0].mxu0
  %v967 = vadd.f32 %v643, %v966
  %v968 = vpop.f32.mrb[0].mxu0
  %969 = vmatprep.mubr.f32.mxu0 0.0
  %970 = vmatmul.mubr.f32.gmra.mrb[0].mxu0 %v793
  %v971 = vpop.f32.mrb[0].mxu0
  %v972 = vadd.f32 %v648, %v971
  %v973 = vpop.f32.mrb[0].mxu0
  %974 = vmatprep.mubr.f32.mxu0 0.0
  %975 = vmatmul.mubr.f32.gmra.mrb[0].mxu0 %v796
  %v976 = vpop.f32.mrb[0].mxu0
  %v977 = vadd.f32 %v653, %v976
  %v978 = vpop.f32.mrb[0].mxu0
  %979 = vmatprep.mubr.f32.mxu0 0.0
  %980 = vmatmul.mubr.f32.gmra.mrb[0].mxu0 %v799
  %v981 = vpop.f32.mrb[0].mxu0
  %v982 = vadd.f32 %v658, %v981
  %v983 = vpop.f32.mrb[0].mxu0
  %984 = vmatprep.mubr.f32.mxu0 0.0
  %985 = vmatmul.mubr.f32.gmra.mrb[0].mxu0 %v802
  %v986 = vpop.f32.mrb[0].mxu0
  %v987 = vadd.f32 %v663, %v986
  %v988 = vpop.f32.mrb[0].mxu0
  %989 = vmatprep.mubr.f32.mxu0 0.0
  %990 = vmatmul.mubr.f32.gmra.mrb[0].mxu0 %v805
  %v991 = vpop.f32.mrb[0].mxu0
  %v992 = vadd.f32 %v668, %v991
  %v993 = vpop.f32.mrb[0].mxu0
  %994 = vmatprep.mubr.f32.mxu0 0.0
  %995 = vmatmul.mubr.f32.gmra.mrb[0].mxu0 %v808
  %v996 = vpop.f32.mrb[0].mxu0
  %v997 = vadd.f32 %v673, %v996
  %v998 = vpop.f32.mrb[0].mxu0
  %999 = vmatprep.mubr.f32.mxu0 0.0
  %1000 = vmatmul.mubr.f32.gmra.mrb[0].mxu0 %v811
  %v1001 = vpop.f32.mrb[0].mxu0
  %v1002 = vadd.f32 %v678, %v1001
  %v1003 = vpop.f32.mrb[0].mxu0
  %1004 = vmatprep.mubr.f32.mxu0 0.0
  %1005 = vmatmul.mubr.f32.gmra.mrb[0].mxu0 %v814
  %v1006 = vpop.f32.mrb[0].mxu0
  %v1007 = vadd.f32 %v683, %v1006
  %v1008 = vpop.f32.mrb[0].mxu0
  %1009 = vmatprep.mubr.f32.mxu0 0.0
  %1010 = vmatmul.mubr.f32.gmra.mrb[0].mxu0 %v817
  %v1011 = vpop.f32.mrb[0].mxu0
  %v1012 = vadd.f32 %v688, %v1011
  %v1013 = vpop.f32.mrb[0].mxu0
  %1014 = vmatprep.mubr.f32.mxu0 0.0
  %1015 = vmatmul.mubr.f32.gmra.mrb[0].mxu0 %v820
  %v1016 = vpop.f32.mrb[0].mxu0
  %v1017 = vadd.f32 %v693, %v1016
  %v1018 = vpop.f32.mrb[0].mxu0
  %1019 = vmatprep.mubr.f32.mxu0 0.0
  %1020 = vmatmul.mubr.f32.gmra.mrb[0].mxu0 %v823
  %v1021 = vpop.f32.mrb[0].mxu0
  %v1022 = vadd.f32 %v698, %v1021
  %v1023 = vpop.f32.mrb[0].mxu0
  %1024 = vmatprep.mubr.f32.mxu0 0.0
  %1025 = vmatmul.mubr.f32.gmra.mrb[0].mxu0 %v826
  %v1026 = vpop.f32.mrb[0].mxu0
  %v1027 = vadd.f32 %v703, %v1026
  %v1028 = vpop.f32.mrb[0].mxu0
  %1029 = vmatprep.mubr.f32.mxu0 0.0
  %1030 = vmatmul.mubr.f32.gmra.mrb[0].mxu0 %v829
  %v1031 = vpop.f32.mrb[0].mxu0
  %v1032 = vadd.f32 %v708, %v1031
  %v1033 = vpop.f32.mrb[0].mxu0
  %1034 = vmatprep.mubr.f32.mxu0 0.0
  %1035 = vmatmul.mubr.f32.gmra.mrb[0].mxu0 %v832
  %v1036 = vpop.f32.mrb[0].mxu0
  %v1037 = vadd.f32 %v713, %v1036
  %v1038 = vpop.f32.mrb[0].mxu0
  %1039 = vmatprep.mubr.f32.mxu0 0.0
  %1040 = vmatmul.mubr.f32.gmra.mrb[0].mxu0 %v835
  %v1041 = vpop.f32.mrb[0].mxu0
  %v1042 = vadd.f32 %v718, %v1041
  %v1043 = vpop.f32.mrb[0].mxu0
  %1044 = vmatprep.mubr.f32.mxu0 0.0
  %1045 = vmatmul.mubr.f32.gmra.mrb[0].mxu0 %v838
  %v1046 = vpop.f32.mrb[0].mxu0
  %v1047 = vadd.f32 %v723, %v1046
  %v1048 = vpop.f32.mrb[0].mxu0
  %1049 = vmatprep.mubr.f32.mxu0 0.0
  %1050 = vmatmul.mubr.f32.gmra.mrb[0].mxu0 %v841
  %v1051 = vpop.f32.mrb[0].mxu0
  %v1052 = vadd.f32 %v728, %v1051
  %v1053 = vpop.f32.mrb[0].mxu0
  %1054 = vmatprep.mubr.f32.mxu0 0.0
  %1055 = vmatmul.mubr.f32.gmra.mrb[0].mxu0 %v844
  %v1056 = vpop.f32.mrb[0].mxu0
  %v1057 = vadd.f32 %v733, %v1056
  %v1058 = vpop.f32.mrb[0].mxu0
  %1059 = vmatprep.mubr.f32.mxu0 0.0
  %1060 = vmatmul.mubr.f32.gmra.mrb[0].mxu0 %v847
  %v1061 = vpop.f32.mrb[0].mxu0
  %v1062 = vadd.f32 %v738, %v1061
  %v1063 = vpop.f32.mrb[0].mxu0
  %1064 = vmatprep.mubr.f32.mxu0 0.0
  %1065 = vmatmul.mubr.f32.gmra.mrb[0].mxu0 %v850
  %v1066 = vpop.f32.mrb[0].mxu0
  %v1067 = vadd.f32 %v743, %v1066
  %v1068 = vpop.f32.mrb[0].mxu0
  %1069 = vmatprep.mubr.f32.mxu0 0.0
  %1070 = vmatmul.mubr.f32.gmra.mrb[0].mxu0 %v853
  %v1071 = vpop.f32.mrb[0].mxu0
  %v1072 = vadd.f32 %v748, %v1071
  %v1073 = vpop.f32.mrb[0].mxu0
  %1074 = vmatprep.mubr.f32.mxu0 0.0
  %1075 = vmatmul.mubr.f32.gmra.mrb[0].mxu0 %v856
  %v1076 = vpop.f32.mrb[0].mxu0
  %v1077 = vadd.f32 %v753, %v1076
  %v1078 = vpop.f32.mrb[0].mxu0
  %1079 = vmatprep.mubr.f32.mxu0 0.0
  %1080 = vmatmul.mubr.f32.gmra.mrb[0].mxu0 %v859
  %v1081 = vpop.f32.mrb[0].mxu0
  %v1082 = vadd.f32 %v758, %v1081
  %v1083 = vpop.f32.mrb[0].mxu0
  %1084 = vmatprep.mubr.f32.mxu0 0.0
  %1085 = vmatmul.mubr.f32.gmra.mrb[0].mxu0 %v862
  %v1086 = vpop.f32.mrb[0].mxu0
  %v1087 = vadd.f32 %v763, %v1086
  %v1088 = vpop.f32.mrb[0].mxu0
  %1089 = vmatprep.mubr.f32.mxu0 0.0
  %1090 = vmatmul.mubr.f32.gmra.mrb[0].mxu0 %v865
  %v1091 = vpop.f32.mrb[0].mxu0
  %v1092 = vadd.f32 %v768, %v1091
  %v1093 = vpop.f32.mrb[0].mxu0
  %1094 = vdwg.mxu0
  %v1096 = vlaneseq
  %v1097 = vshrl.u32 %v1096, 7
  %v1098 = vsub.s32 0, %v1097
  %v1099 = vrot.slane %v444, %v1098
  %v1101 = vadd.f32 %v937, %v1099
  %v1102 = vadd.f32 %v942, %v1099
  %v1103 = vadd.f32 %v947, %v1099
  %v1104 = vadd.f32 %v952, %v1099
  %v1105 = vadd.f32 %v957, %v1099
  %v1106 = vadd.f32 %v962, %v1099
  %v1107 = vadd.f32 %v967, %v1099
  %v1108 = vadd.f32 %v972, %v1099
  %v1109 = vadd.f32 %v977, %v1099
  %v1110 = vadd.f32 %v982, %v1099
  %v1111 = vadd.f32 %v987, %v1099
  %v1112 = vadd.f32 %v992, %v1099
  %v1113 = vadd.f32 %v997, %v1099
  %v1114 = vadd.f32 %v1002, %v1099
  %v1115 = vadd.f32 %v1007, %v1099
  %v1116 = vadd.f32 %v1012, %v1099
  %v1117 = vadd.f32 %v1017, %v1099
  %v1118 = vadd.f32 %v1022, %v1099
  %v1119 = vadd.f32 %v1027, %v1099
  %v1120 = vadd.f32 %v1032, %v1099
  %v1121 = vadd.f32 %v1037, %v1099
  %v1122 = vadd.f32 %v1042, %v1099
  %v1123 = vadd.f32 %v1047, %v1099
  %v1124 = vadd.f32 %v1052, %v1099
  %v1125 = vadd.f32 %v1057, %v1099
  %v1126 = vadd.f32 %v1062, %v1099
  %v1127 = vadd.f32 %v1067, %v1099
  %v1128 = vadd.f32 %v1072, %v1099
  %v1129 = vadd.f32 %v1077, %v1099
  %v1130 = vadd.f32 %v1082, %v1099
  %v1131 = vadd.f32 %v1087, %v1099
  %v1132 = vadd.f32 %v1092, %v1099
  %v1134 = vsel %vm445, %v406, 0
  %v1137 = vsel %vm445, %v407, 0
  %v1140 = vsel %vm445, %v408, 0
  %v1143 = vsel %vm445, %v409, 0
  %v1146 = vsel %vm445, %v410, 0
  %v1149 = vsel %vm445, %v411, 0
  %v1152 = vsel %vm445, %v412, 0
  %v1155 = vsel %vm445, %v413, 0
  %v1158 = vsel %vm445, %v414, 0
  %v1161 = vsel %vm445, %v415, 0
  %v1164 = vsel %vm445, %v416, 0
  %v1167 = vsel %vm445, %v417, 0
  %v1170 = vsel %vm445, %v418, 0
  %v1173 = vsel %vm445, %v419, 0
  %v1176 = vsel %vm445, %v420, 0
  %v1179 = vsel %vm445, %v421, 0
  %v1182 = vsel %vm445, %v422, 0
  %v1185 = vsel %vm445, %v423, 0
  %v1188 = vsel %vm445, %v424, 0
  %v1191 = vsel %vm445, %v425, 0
  %v1194 = vsel %vm445, %v426, 0
  %v1197 = vsel %vm445, %v427, 0
  %v1200 = vsel %vm445, %v428, 0
  %v1203 = vsel %vm445, %v429, 0
  %v1206 = vsel %vm445, %v430, 0
  %v1209 = vsel %vm445, %v431, 0
  %v1212 = vsel %vm445, %v432, 0
  %v1215 = vsel %vm445, %v433, 0
  %v1218 = vsel %vm445, %v434, 0
  %v1221 = vsel %vm445, %v435, 0
  %v1224 = vsel %vm445, %v436, 0
  %v1227 = vsel %vm445, %v437, 0
  %1229 = vmatprep.subr.mxu0 0.0
  %1230 = vmatpush1.msra.mxu0 %v441
  %1231 = vmatprep.subr.mxu0 0.0
  %1232 = vmatpush1.msra.mxu0 %v442
  %1233 = vmatprep.subr.mxu0 0.0
  %1234 = vmatpush1.msra.mxu0 %v544
  %1235 = vmatprep.subr.mxu0 0.0
  %1236 = vmatpush1.msra.mxu0 0.0
  %1237 = vmatprep.subr.mxu0 0.0
  %1238 = vmatpush1.msra.mxu0 0.0
  %1239 = vmatprep.subr.mxu0 0.0
  %1240 = vmatpush1.msra.mxu0 0.0
  %1241 = vmatprep.subr.mxu0 0.0
  %1242 = vmatpush1.msra.mxu0 0.0
  %1243 = vmatprep.subr.mxu0 0.0
  %1244 = vmatpush1.msra.mxu0 0.0
  %1245 = vmatprep.subr.mxu0 0.0
  %1246 = vmatpush1.msra.mxu0 0.0
  %1247 = vmatprep.subr.mxu0 0.0
  %1248 = vmatpush1.msra.mxu0 0.0
  %1249 = vmatprep.subr.mxu0 0.0
  %1250 = vmatpush1.msra.mxu0 0.0
  %1251 = vmatprep.subr.mxu0 0.0
  %1252 = vmatpush1.msra.mxu0 0.0
  %1253 = vmatprep.subr.mxu0 0.0
  %1254 = vmatpush1.msra.mxu0 0.0
  %1255 = vmatprep.subr.mxu0 0.0
  %1256 = vmatpush1.msra.mxu0 0.0
  %1257 = vmatprep.subr.mxu0 0.0
  %1258 = vmatpush1.msra.mxu0 0.0
  %1259 = vmatprep.subr.mxu0 0.0
  %1260 = vmatpush1.msra.mxu0 0.0
  %1261 = vmatprep.subr.mxu0 0.0
  %1262 = vmatpush1.msra.mxu0 0.0
  %1263 = vmatprep.subr.mxu0 0.0
  %1264 = vmatpush1.msra.mxu0 0.0
  %1265 = vmatprep.subr.mxu0 0.0
  %1266 = vmatpush1.msra.mxu0 0.0
  %1267 = vmatprep.subr.mxu0 0.0
  %1268 = vmatpush1.msra.mxu0 0.0
  %1269 = vmatprep.subr.mxu0 0.0
  %1270 = vmatpush1.msra.mxu0 0.0
  %1271 = vmatprep.subr.mxu0 0.0
  %1272 = vmatpush1.msra.mxu0 0.0
  %1273 = vmatprep.subr.mxu0 0.0
  %1274 = vmatpush1.msra.mxu0 0.0
  %1275 = vmatprep.subr.mxu0 0.0
  %1276 = vmatpush1.msra.mxu0 0.0
  %1277 = vmatprep.subr.mxu0 0.0
  %1278 = vmatpush1.msra.mxu0 0.0
  %1279 = vmatprep.subr.mxu0 0.0
  %1280 = vmatpush1.msra.mxu0 0.0
  %1281 = vmatprep.subr.mxu0 0.0
  %1282 = vmatpush1.msra.mxu0 0.0
  %1283 = vmatprep.subr.mxu0 0.0
  %1284 = vmatpush1.msra.mxu0 0.0
  %1285 = vmatprep.subr.mxu0 0.0
  %1286 = vmatpush1.msra.mxu0 0.0
  %1287 = vmatprep.subr.mxu0 0.0
  %1288 = vmatpush1.msra.mxu0 0.0
  %1289 = vmatprep.subr.mxu0 0.0
  %1290 = vmatpush1.msra.mxu0 0.0
  %1291 = vmatprep.subr.mxu0 0.0
  %1292 = vmatpush1.msra.mxu0 0.0
  %1293 = vmatprep.mubr.f32.mxu0 0.0
  %1294 = vmatmul.mubr.f32.gmra.mrb[0].mxu0 %v1134
  %v1295 = vpop.f32.mrb[0].mxu0
  %v1296 = vadd.f32 0.0, %v1295
  %v1297 = vpop.f32.mrb[0].mxu0
  %1298 = vmatprep.mubr.f32.mxu0 0.0
  %1299 = vmatmul.mubr.f32.gmra.mrb[0].mxu0 %v1137
  %v1300 = vpop.f32.mrb[0].mxu0
  %v1301 = vadd.f32 0.0, %v1300
  %v1302 = vpop.f32.mrb[0].mxu0
  %1303 = vmatprep.mubr.f32.mxu0 0.0
  %1304 = vmatmul.mubr.f32.gmra.mrb[0].mxu0 %v1140
  %v1305 = vpop.f32.mrb[0].mxu0
  %v1306 = vadd.f32 0.0, %v1305
  %v1307 = vpop.f32.mrb[0].mxu0
  %1308 = vmatprep.mubr.f32.mxu0 0.0
  %1309 = vmatmul.mubr.f32.gmra.mrb[0].mxu0 %v1143
  %v1310 = vpop.f32.mrb[0].mxu0
  %v1311 = vadd.f32 0.0, %v1310
  %v1312 = vpop.f32.mrb[0].mxu0
  %1313 = vmatprep.mubr.f32.mxu0 0.0
  %1314 = vmatmul.mubr.f32.gmra.mrb[0].mxu0 %v1146
  %v1315 = vpop.f32.mrb[0].mxu0
  %v1316 = vadd.f32 0.0, %v1315
  %v1317 = vpop.f32.mrb[0].mxu0
  %1318 = vmatprep.mubr.f32.mxu0 0.0
  %1319 = vmatmul.mubr.f32.gmra.mrb[0].mxu0 %v1149
  %v1320 = vpop.f32.mrb[0].mxu0
  %v1321 = vadd.f32 0.0, %v1320
  %v1322 = vpop.f32.mrb[0].mxu0
  %1323 = vmatprep.mubr.f32.mxu0 0.0
  %1324 = vmatmul.mubr.f32.gmra.mrb[0].mxu0 %v1152
  %v1325 = vpop.f32.mrb[0].mxu0
  %v1326 = vadd.f32 0.0, %v1325
  %v1327 = vpop.f32.mrb[0].mxu0
  %1328 = vmatprep.mubr.f32.mxu0 0.0
  %1329 = vmatmul.mubr.f32.gmra.mrb[0].mxu0 %v1155
  %v1330 = vpop.f32.mrb[0].mxu0
  %v1331 = vadd.f32 0.0, %v1330
  %v1332 = vpop.f32.mrb[0].mxu0
  %1333 = vmatprep.mubr.f32.mxu0 0.0
  %1334 = vmatmul.mubr.f32.gmra.mrb[0].mxu0 %v1158
  %v1335 = vpop.f32.mrb[0].mxu0
  %v1336 = vadd.f32 0.0, %v1335
  %v1337 = vpop.f32.mrb[0].mxu0
  %1338 = vmatprep.mubr.f32.mxu0 0.0
  %1339 = vmatmul.mubr.f32.gmra.mrb[0].mxu0 %v1161
  %v1340 = vpop.f32.mrb[0].mxu0
  %v1341 = vadd.f32 0.0, %v1340
  %v1342 = vpop.f32.mrb[0].mxu0
  %1343 = vmatprep.mubr.f32.mxu0 0.0
  %1344 = vmatmul.mubr.f32.gmra.mrb[0].mxu0 %v1164
  %v1345 = vpop.f32.mrb[0].mxu0
  %v1346 = vadd.f32 0.0, %v1345
  %v1347 = vpop.f32.mrb[0].mxu0
  %1348 = vmatprep.mubr.f32.mxu0 0.0
  %1349 = vmatmul.mubr.f32.gmra.mrb[0].mxu0 %v1167
  %v1350 = vpop.f32.mrb[0].mxu0
  %v1351 = vadd.f32 0.0, %v1350
  %v1352 = vpop.f32.mrb[0].mxu0
  %1353 = vmatprep.mubr.f32.mxu0 0.0
  %1354 = vmatmul.mubr.f32.gmra.mrb[0].mxu0 %v1170
  %v1355 = vpop.f32.mrb[0].mxu0
  %v1356 = vadd.f32 0.0, %v1355
  %v1357 = vpop.f32.mrb[0].mxu0
  %1358 = vmatprep.mubr.f32.mxu0 0.0
  %1359 = vmatmul.mubr.f32.gmra.mrb[0].mxu0 %v1173
  %v1360 = vpop.f32.mrb[0].mxu0
  %v1361 = vadd.f32 0.0, %v1360
  %v1362 = vpop.f32.mrb[0].mxu0
  %1363 = vmatprep.mubr.f32.mxu0 0.0
  %1364 = vmatmul.mubr.f32.gmra.mrb[0].mxu0 %v1176
  %v1365 = vpop.f32.mrb[0].mxu0
  %v1366 = vadd.f32 0.0, %v1365
  %v1367 = vpop.f32.mrb[0].mxu0
  %1368 = vmatprep.mubr.f32.mxu0 0.0
  %1369 = vmatmul.mubr.f32.gmra.mrb[0].mxu0 %v1179
  %v1370 = vpop.f32.mrb[0].mxu0
  %v1371 = vadd.f32 0.0, %v1370
  %v1372 = vpop.f32.mrb[0].mxu0
  %1373 = vmatprep.mubr.f32.mxu0 0.0
  %1374 = vmatmul.mubr.f32.gmra.mrb[0].mxu0 %v1182
  %v1375 = vpop.f32.mrb[0].mxu0
  %v1376 = vadd.f32 0.0, %v1375
  %v1377 = vpop.f32.mrb[0].mxu0
  %1378 = vmatprep.mubr.f32.mxu0 0.0
  %1379 = vmatmul.mubr.f32.gmra.mrb[0].mxu0 %v1185
  %v1380 = vpop.f32.mrb[0].mxu0
  %v1381 = vadd.f32 0.0, %v1380
  %v1382 = vpop.f32.mrb[0].mxu0
  %1383 = vmatprep.mubr.f32.mxu0 0.0
  %1384 = vmatmul.mubr.f32.gmra.mrb[0].mxu0 %v1188
  %v1385 = vpop.f32.mrb[0].mxu0
  %v1386 = vadd.f32 0.0, %v1385
  %v1387 = vpop.f32.mrb[0].mxu0
  %1388 = vmatprep.mubr.f32.mxu0 0.0
  %1389 = vmatmul.mubr.f32.gmra.mrb[0].mxu0 %v1191
  %v1390 = vpop.f32.mrb[0].mxu0
  %v1391 = vadd.f32 0.0, %v1390
  %v1392 = vpop.f32.mrb[0].mxu0
  %1393 = vmatprep.mubr.f32.mxu0 0.0
  %1394 = vmatmul.mubr.f32.gmra.mrb[0].mxu0 %v1194
  %v1395 = vpop.f32.mrb[0].mxu0
  %v1396 = vadd.f32 0.0, %v1395
  %v1397 = vpop.f32.mrb[0].mxu0
  %1398 = vmatprep.mubr.f32.mxu0 0.0
  %1399 = vmatmul.mubr.f32.gmra.mrb[0].mxu0 %v1197
  %v1400 = vpop.f32.mrb[0].mxu0
  %v1401 = vadd.f32 0.0, %v1400
  %v1402 = vpop.f32.mrb[0].mxu0
  %1403 = vmatprep.mubr.f32.mxu0 0.0
  %1404 = vmatmul.mubr.f32.gmra.mrb[0].mxu0 %v1200
  %v1405 = vpop.f32.mrb[0].mxu0
  %v1406 = vadd.f32 0.0, %v1405
  %v1407 = vpop.f32.mrb[0].mxu0
  %1408 = vmatprep.mubr.f32.mxu0 0.0
  %1409 = vmatmul.mubr.f32.gmra.mrb[0].mxu0 %v1203
  %v1410 = vpop.f32.mrb[0].mxu0
  %v1411 = vadd.f32 0.0, %v1410
  %v1412 = vpop.f32.mrb[0].mxu0
  %1413 = vmatprep.mubr.f32.mxu0 0.0
  %1414 = vmatmul.mubr.f32.gmra.mrb[0].mxu0 %v1206
  %v1415 = vpop.f32.mrb[0].mxu0
  %v1416 = vadd.f32 0.0, %v1415
  %v1417 = vpop.f32.mrb[0].mxu0
  %1418 = vmatprep.mubr.f32.mxu0 0.0
  %1419 = vmatmul.mubr.f32.gmra.mrb[0].mxu0 %v1209
  %v1420 = vpop.f32.mrb[0].mxu0
  %v1421 = vadd.f32 0.0, %v1420
  %v1422 = vpop.f32.mrb[0].mxu0
  %1423 = vmatprep.mubr.f32.mxu0 0.0
  %1424 = vmatmul.mubr.f32.gmra.mrb[0].mxu0 %v1212
  %v1425 = vpop.f32.mrb[0].mxu0
  %v1426 = vadd.f32 0.0, %v1425
  %v1427 = vpop.f32.mrb[0].mxu0
  %1428 = vmatprep.mubr.f32.mxu0 0.0
  %1429 = vmatmul.mubr.f32.gmra.mrb[0].mxu0 %v1215
  %v1430 = vpop.f32.mrb[0].mxu0
  %v1431 = vadd.f32 0.0, %v1430
  %v1432 = vpop.f32.mrb[0].mxu0
  %1433 = vmatprep.mubr.f32.mxu0 0.0
  %1434 = vmatmul.mubr.f32.gmra.mrb[0].mxu0 %v1218
  %v1435 = vpop.f32.mrb[0].mxu0
  %v1436 = vadd.f32 0.0, %v1435
  %v1437 = vpop.f32.mrb[0].mxu0
  %1438 = vmatprep.mubr.f32.mxu0 0.0
  %1439 = vmatmul.mubr.f32.gmra.mrb[0].mxu0 %v1221
  %v1440 = vpop.f32.mrb[0].mxu0
  %v1441 = vadd.f32 0.0, %v1440
  %v1442 = vpop.f32.mrb[0].mxu0
  %1443 = vmatprep.mubr.f32.mxu0 0.0
  %1444 = vmatmul.mubr.f32.gmra.mrb[0].mxu0 %v1224
  %v1445 = vpop.f32.mrb[0].mxu0
  %v1446 = vadd.f32 0.0, %v1445
  %v1447 = vpop.f32.mrb[0].mxu0
  %1448 = vmatprep.mubr.f32.mxu0 0.0
  %1449 = vmatmul.mubr.f32.gmra.mrb[0].mxu0 %v1227
  %v1450 = vpop.f32.mrb[0].mxu0
  %v1451 = vadd.f32 0.0, %v1450
  %v1452 = vpop.f32.mrb[0].mxu0
  %1453 = vdwg.mxu0
  %1454 = vmatprep.subr.mxu0 0.0
  %1455 = vmatpush1.msra.mxu0 %v438
  %1456 = vmatprep.subr.mxu0 0.0
  %1457 = vmatpush1.msra.mxu0 %v439
  %1458 = vmatprep.subr.mxu0 0.0
  %1459 = vmatpush1.msra.mxu0 %v868
  %1460 = vmatprep.subr.mxu0 0.0
  %1461 = vmatpush1.msra.mxu0 0.0
  %1462 = vmatprep.subr.mxu0 0.0
  %1463 = vmatpush1.msra.mxu0 0.0
  %1464 = vmatprep.subr.mxu0 0.0
  %1465 = vmatpush1.msra.mxu0 0.0
  %1466 = vmatprep.subr.mxu0 0.0
  %1467 = vmatpush1.msra.mxu0 0.0
  %1468 = vmatprep.subr.mxu0 0.0
  %1469 = vmatpush1.msra.mxu0 0.0
  %1470 = vmatprep.subr.mxu0 0.0
  %1471 = vmatpush1.msra.mxu0 0.0
  %1472 = vmatprep.subr.mxu0 0.0
  %1473 = vmatpush1.msra.mxu0 0.0
  %1474 = vmatprep.subr.mxu0 0.0
  %1475 = vmatpush1.msra.mxu0 0.0
  %1476 = vmatprep.subr.mxu0 0.0
  %1477 = vmatpush1.msra.mxu0 0.0
  %1478 = vmatprep.subr.mxu0 0.0
  %1479 = vmatpush1.msra.mxu0 0.0
  %1480 = vmatprep.subr.mxu0 0.0
  %1481 = vmatpush1.msra.mxu0 0.0
  %1482 = vmatprep.subr.mxu0 0.0
  %1483 = vmatpush1.msra.mxu0 0.0
  %1484 = vmatprep.subr.mxu0 0.0
  %1485 = vmatpush1.msra.mxu0 0.0
  %1486 = vmatprep.subr.mxu0 0.0
  %1487 = vmatpush1.msra.mxu0 0.0
  %1488 = vmatprep.subr.mxu0 0.0
  %1489 = vmatpush1.msra.mxu0 0.0
  %1490 = vmatprep.subr.mxu0 0.0
  %1491 = vmatpush1.msra.mxu0 0.0
  %1492 = vmatprep.subr.mxu0 0.0
  %1493 = vmatpush1.msra.mxu0 0.0
  %1494 = vmatprep.subr.mxu0 0.0
  %1495 = vmatpush1.msra.mxu0 0.0
  %1496 = vmatprep.subr.mxu0 0.0
  %1497 = vmatpush1.msra.mxu0 0.0
  %1498 = vmatprep.subr.mxu0 0.0
  %1499 = vmatpush1.msra.mxu0 0.0
  %1500 = vmatprep.subr.mxu0 0.0
  %1501 = vmatpush1.msra.mxu0 0.0
  %1502 = vmatprep.subr.mxu0 0.0
  %1503 = vmatpush1.msra.mxu0 0.0
  %1504 = vmatprep.subr.mxu0 0.0
  %1505 = vmatpush1.msra.mxu0 0.0
  %1506 = vmatprep.subr.mxu0 0.0
  %1507 = vmatpush1.msra.mxu0 0.0
  %1508 = vmatprep.subr.mxu0 0.0
  %1509 = vmatpush1.msra.mxu0 0.0
  %1510 = vmatprep.subr.mxu0 0.0
  %1511 = vmatpush1.msra.mxu0 0.0
  %1512 = vmatprep.subr.mxu0 0.0
  %1513 = vmatpush1.msra.mxu0 0.0
  %1514 = vmatprep.subr.mxu0 0.0
  %1515 = vmatpush1.msra.mxu0 0.0
  %1516 = vmatprep.subr.mxu0 0.0
  %1517 = vmatpush1.msra.mxu0 0.0
  %1518 = vmatprep.mubr.f32.mxu0 0.0
  %1519 = vmatmul.mubr.f32.gmra.mrb[0].mxu0 %v447
  %v1520 = vpop.f32.mrb[0].mxu0
  %v1521 = vadd.f32 %v1296, %v1520
  %v1522 = vpop.f32.mrb[0].mxu0
  %1523 = vmatprep.mubr.f32.mxu0 0.0
  %1524 = vmatmul.mubr.f32.gmra.mrb[0].mxu0 %v450
  %v1525 = vpop.f32.mrb[0].mxu0
  %v1526 = vadd.f32 %v1301, %v1525
  %v1527 = vpop.f32.mrb[0].mxu0
  %1528 = vmatprep.mubr.f32.mxu0 0.0
  %1529 = vmatmul.mubr.f32.gmra.mrb[0].mxu0 %v453
  %v1530 = vpop.f32.mrb[0].mxu0
  %v1531 = vadd.f32 %v1306, %v1530
  %v1532 = vpop.f32.mrb[0].mxu0
  %1533 = vmatprep.mubr.f32.mxu0 0.0
  %1534 = vmatmul.mubr.f32.gmra.mrb[0].mxu0 %v456
  %v1535 = vpop.f32.mrb[0].mxu0
  %v1536 = vadd.f32 %v1311, %v1535
  %v1537 = vpop.f32.mrb[0].mxu0
  %1538 = vmatprep.mubr.f32.mxu0 0.0
  %1539 = vmatmul.mubr.f32.gmra.mrb[0].mxu0 %v459
  %v1540 = vpop.f32.mrb[0].mxu0
  %v1541 = vadd.f32 %v1316, %v1540
  %v1542 = vpop.f32.mrb[0].mxu0
  %1543 = vmatprep.mubr.f32.mxu0 0.0
  %1544 = vmatmul.mubr.f32.gmra.mrb[0].mxu0 %v462
  %v1545 = vpop.f32.mrb[0].mxu0
  %v1546 = vadd.f32 %v1321, %v1545
  %v1547 = vpop.f32.mrb[0].mxu0
  %1548 = vmatprep.mubr.f32.mxu0 0.0
  %1549 = vmatmul.mubr.f32.gmra.mrb[0].mxu0 %v465
  %v1550 = vpop.f32.mrb[0].mxu0
  %v1551 = vadd.f32 %v1326, %v1550
  %v1552 = vpop.f32.mrb[0].mxu0
  %1553 = vmatprep.mubr.f32.mxu0 0.0
  %1554 = vmatmul.mubr.f32.gmra.mrb[0].mxu0 %v468
  %v1555 = vpop.f32.mrb[0].mxu0
  %v1556 = vadd.f32 %v1331, %v1555
  %v1557 = vpop.f32.mrb[0].mxu0
  %1558 = vmatprep.mubr.f32.mxu0 0.0
  %1559 = vmatmul.mubr.f32.gmra.mrb[0].mxu0 %v471
  %v1560 = vpop.f32.mrb[0].mxu0
  %v1561 = vadd.f32 %v1336, %v1560
  %v1562 = vpop.f32.mrb[0].mxu0
  %1563 = vmatprep.mubr.f32.mxu0 0.0
  %1564 = vmatmul.mubr.f32.gmra.mrb[0].mxu0 %v474
  %v1565 = vpop.f32.mrb[0].mxu0
  %v1566 = vadd.f32 %v1341, %v1565
  %v1567 = vpop.f32.mrb[0].mxu0
  %1568 = vmatprep.mubr.f32.mxu0 0.0
  %1569 = vmatmul.mubr.f32.gmra.mrb[0].mxu0 %v477
  %v1570 = vpop.f32.mrb[0].mxu0
  %v1571 = vadd.f32 %v1346, %v1570
  %v1572 = vpop.f32.mrb[0].mxu0
  %1573 = vmatprep.mubr.f32.mxu0 0.0
  %1574 = vmatmul.mubr.f32.gmra.mrb[0].mxu0 %v480
  %v1575 = vpop.f32.mrb[0].mxu0
  %v1576 = vadd.f32 %v1351, %v1575
  %v1577 = vpop.f32.mrb[0].mxu0
  %1578 = vmatprep.mubr.f32.mxu0 0.0
  %1579 = vmatmul.mubr.f32.gmra.mrb[0].mxu0 %v483
  %v1580 = vpop.f32.mrb[0].mxu0
  %v1581 = vadd.f32 %v1356, %v1580
  %v1582 = vpop.f32.mrb[0].mxu0
  %1583 = vmatprep.mubr.f32.mxu0 0.0
  %1584 = vmatmul.mubr.f32.gmra.mrb[0].mxu0 %v486
  %v1585 = vpop.f32.mrb[0].mxu0
  %v1586 = vadd.f32 %v1361, %v1585
  %v1587 = vpop.f32.mrb[0].mxu0
  %1588 = vmatprep.mubr.f32.mxu0 0.0
  %1589 = vmatmul.mubr.f32.gmra.mrb[0].mxu0 %v489
  %v1590 = vpop.f32.mrb[0].mxu0
  %v1591 = vadd.f32 %v1366, %v1590
  %v1592 = vpop.f32.mrb[0].mxu0
  %1593 = vmatprep.mubr.f32.mxu0 0.0
  %1594 = vmatmul.mubr.f32.gmra.mrb[0].mxu0 %v492
  %v1595 = vpop.f32.mrb[0].mxu0
  %v1596 = vadd.f32 %v1371, %v1595
  %v1597 = vpop.f32.mrb[0].mxu0
  %1598 = vmatprep.mubr.f32.mxu0 0.0
  %1599 = vmatmul.mubr.f32.gmra.mrb[0].mxu0 %v495
  %v1600 = vpop.f32.mrb[0].mxu0
  %v1601 = vadd.f32 %v1376, %v1600
  %v1602 = vpop.f32.mrb[0].mxu0
  %1603 = vmatprep.mubr.f32.mxu0 0.0
  %1604 = vmatmul.mubr.f32.gmra.mrb[0].mxu0 %v498
  %v1605 = vpop.f32.mrb[0].mxu0
  %v1606 = vadd.f32 %v1381, %v1605
  %v1607 = vpop.f32.mrb[0].mxu0
  %1608 = vmatprep.mubr.f32.mxu0 0.0
  %1609 = vmatmul.mubr.f32.gmra.mrb[0].mxu0 %v501
  %v1610 = vpop.f32.mrb[0].mxu0
  %v1611 = vadd.f32 %v1386, %v1610
  %v1612 = vpop.f32.mrb[0].mxu0
  %1613 = vmatprep.mubr.f32.mxu0 0.0
  %1614 = vmatmul.mubr.f32.gmra.mrb[0].mxu0 %v504
  %v1615 = vpop.f32.mrb[0].mxu0
  %v1616 = vadd.f32 %v1391, %v1615
  %v1617 = vpop.f32.mrb[0].mxu0
  %1618 = vmatprep.mubr.f32.mxu0 0.0
  %1619 = vmatmul.mubr.f32.gmra.mrb[0].mxu0 %v507
  %v1620 = vpop.f32.mrb[0].mxu0
  %v1621 = vadd.f32 %v1396, %v1620
  %v1622 = vpop.f32.mrb[0].mxu0
  %1623 = vmatprep.mubr.f32.mxu0 0.0
  %1624 = vmatmul.mubr.f32.gmra.mrb[0].mxu0 %v510
  %v1625 = vpop.f32.mrb[0].mxu0
  %v1626 = vadd.f32 %v1401, %v1625
  %v1627 = vpop.f32.mrb[0].mxu0
  %1628 = vmatprep.mubr.f32.mxu0 0.0
  %1629 = vmatmul.mubr.f32.gmra.mrb[0].mxu0 %v513
  %v1630 = vpop.f32.mrb[0].mxu0
  %v1631 = vadd.f32 %v1406, %v1630
  %v1632 = vpop.f32.mrb[0].mxu0
  %1633 = vmatprep.mubr.f32.mxu0 0.0
  %1634 = vmatmul.mubr.f32.gmra.mrb[0].mxu0 %v516
  %v1635 = vpop.f32.mrb[0].mxu0
  %v1636 = vadd.f32 %v1411, %v1635
  %v1637 = vpop.f32.mrb[0].mxu0
  %1638 = vmatprep.mubr.f32.mxu0 0.0
  %1639 = vmatmul.mubr.f32.gmra.mrb[0].mxu0 %v519
  %v1640 = vpop.f32.mrb[0].mxu0
  %v1641 = vadd.f32 %v1416, %v1640
  %v1642 = vpop.f32.mrb[0].mxu0
  %1643 = vmatprep.mubr.f32.mxu0 0.0
  %1644 = vmatmul.mubr.f32.gmra.mrb[0].mxu0 %v522
  %v1645 = vpop.f32.mrb[0].mxu0
  %v1646 = vadd.f32 %v1421, %v1645
  %v1647 = vpop.f32.mrb[0].mxu0
  %1648 = vmatprep.mubr.f32.mxu0 0.0
  %1649 = vmatmul.mubr.f32.gmra.mrb[0].mxu0 %v525
  %v1650 = vpop.f32.mrb[0].mxu0
  %v1651 = vadd.f32 %v1426, %v1650
  %v1652 = vpop.f32.mrb[0].mxu0
  %1653 = vmatprep.mubr.f32.mxu0 0.0
  %1654 = vmatmul.mubr.f32.gmra.mrb[0].mxu0 %v528
  %v1655 = vpop.f32.mrb[0].mxu0
  %v1656 = vadd.f32 %v1431, %v1655
  %v1657 = vpop.f32.mrb[0].mxu0
  %1658 = vmatprep.mubr.f32.mxu0 0.0
  %1659 = vmatmul.mubr.f32.gmra.mrb[0].mxu0 %v531
  %v1660 = vpop.f32.mrb[0].mxu0
  %v1661 = vadd.f32 %v1436, %v1660
  %v1662 = vpop.f32.mrb[0].mxu0
  %1663 = vmatprep.mubr.f32.mxu0 0.0
  %1664 = vmatmul.mubr.f32.gmra.mrb[0].mxu0 %v534
  %v1665 = vpop.f32.mrb[0].mxu0
  %v1666 = vadd.f32 %v1441, %v1665
  %v1667 = vpop.f32.mrb[0].mxu0
  %1668 = vmatprep.mubr.f32.mxu0 0.0
  %1669 = vmatmul.mubr.f32.gmra.mrb[0].mxu0 %v537
  %v1670 = vpop.f32.mrb[0].mxu0
  %v1671 = vadd.f32 %v1446, %v1670
  %v1672 = vpop.f32.mrb[0].mxu0
  %1673 = vmatprep.mubr.f32.mxu0 0.0
  %1674 = vmatmul.mubr.f32.gmra.mrb[0].mxu0 %v540
  %v1675 = vpop.f32.mrb[0].mxu0
  %v1676 = vadd.f32 %v1451, %v1675
  %v1677 = vpop.f32.mrb[0].mxu0
  %1678 = vdwg.mxu0
  %v1679 = vadd.f32 %v1521, %v1099
  %v1680 = vadd.f32 %v1526, %v1099
  %v1681 = vadd.f32 %v1531, %v1099
  %v1682 = vadd.f32 %v1536, %v1099
  %v1683 = vadd.f32 %v1541, %v1099
  %v1684 = vadd.f32 %v1546, %v1099
  %v1685 = vadd.f32 %v1551, %v1099
  %v1686 = vadd.f32 %v1556, %v1099
  %v1687 = vadd.f32 %v1561, %v1099
  %v1688 = vadd.f32 %v1566, %v1099
  %v1689 = vadd.f32 %v1571, %v1099
  %v1690 = vadd.f32 %v1576, %v1099
  %v1691 = vadd.f32 %v1581, %v1099
  %v1692 = vadd.f32 %v1586, %v1099
  %v1693 = vadd.f32 %v1591, %v1099
  %v1694 = vadd.f32 %v1596, %v1099
  %v1695 = vadd.f32 %v1601, %v1099
  %v1696 = vadd.f32 %v1606, %v1099
  %v1697 = vadd.f32 %v1611, %v1099
  %v1698 = vadd.f32 %v1616, %v1099
  %v1699 = vadd.f32 %v1621, %v1099
  %v1700 = vadd.f32 %v1626, %v1099
  %v1701 = vadd.f32 %v1631, %v1099
  %v1702 = vadd.f32 %v1636, %v1099
  %v1703 = vadd.f32 %v1641, %v1099
  %v1704 = vadd.f32 %v1646, %v1099
  %v1705 = vadd.f32 %v1651, %v1099
  %v1706 = vadd.f32 %v1656, %v1099
  %v1707 = vadd.f32 %v1661, %v1099
  %v1708 = vadd.f32 %v1666, %v1099
  %v1709 = vadd.f32 %v1671, %v1099
  %v1710 = vadd.f32 %v1676, %v1099
  %v1711 = vmax.f32 %v1101, %v1679
  %v1712 = vmax.f32 %v1102, %v1680
  %v1713 = vmax.f32 %v1103, %v1681
  %v1714 = vmax.f32 %v1104, %v1682
  %v1715 = vmax.f32 %v1105, %v1683
  %v1716 = vmax.f32 %v1106, %v1684
  %v1717 = vmax.f32 %v1107, %v1685
  %v1718 = vmax.f32 %v1108, %v1686
  %v1719 = vmax.f32 %v1109, %v1687
  %v1720 = vmax.f32 %v1110, %v1688
  %v1721 = vmax.f32 %v1111, %v1689
  %v1722 = vmax.f32 %v1112, %v1690
  %v1723 = vmax.f32 %v1113, %v1691
  %v1724 = vmax.f32 %v1114, %v1692
  %v1725 = vmax.f32 %v1115, %v1693
  %v1726 = vmax.f32 %v1116, %v1694
  %v1727 = vmax.f32 %v1117, %v1695
  %v1728 = vmax.f32 %v1118, %v1696
  %v1729 = vmax.f32 %v1119, %v1697
  %v1730 = vmax.f32 %v1120, %v1698
  %v1731 = vmax.f32 %v1121, %v1699
  %v1732 = vmax.f32 %v1122, %v1700
  %v1733 = vmax.f32 %v1123, %v1701
  %v1734 = vmax.f32 %v1124, %v1702
  %v1735 = vmax.f32 %v1125, %v1703
  %v1736 = vmax.f32 %v1126, %v1704
  %v1737 = vmax.f32 %v1127, %v1705
  %v1738 = vmax.f32 %v1128, %v1706
  %v1739 = vmax.f32 %v1129, %v1707
  %v1740 = vmax.f32 %v1130, %v1708
  %v1741 = vmax.f32 %v1131, %v1709
  %v1742 = vmax.f32 %v1132, %v1710
  %v1743 = vmax.f32 %v1711, 0.0
  %v1744 = vmax.f32 %v1712, 0.0
  %v1745 = vmax.f32 %v1713, 0.0
  %v1746 = vmax.f32 %v1714, 0.0
  %v1747 = vmax.f32 %v1715, 0.0
  %v1748 = vmax.f32 %v1716, 0.0
  %v1749 = vmax.f32 %v1717, 0.0
  %v1750 = vmax.f32 %v1718, 0.0
  %v1751 = vmax.f32 %v1719, 0.0
  %v1752 = vmax.f32 %v1720, 0.0
  %v1753 = vmax.f32 %v1721, 0.0
  %v1754 = vmax.f32 %v1722, 0.0
  %v1755 = vmax.f32 %v1723, 0.0
  %v1756 = vmax.f32 %v1724, 0.0
  %v1757 = vmax.f32 %v1725, 0.0
  %v1758 = vmax.f32 %v1726, 0.0
  %v1759 = vmax.f32 %v1727, 0.0
  %v1760 = vmax.f32 %v1728, 0.0
  %v1761 = vmax.f32 %v1729, 0.0
  %v1762 = vmax.f32 %v1730, 0.0
  %v1763 = vmax.f32 %v1731, 0.0
  %v1764 = vmax.f32 %v1732, 0.0
  %v1765 = vmax.f32 %v1733, 0.0
  %v1766 = vmax.f32 %v1734, 0.0
  %v1767 = vmax.f32 %v1735, 0.0
  %v1768 = vmax.f32 %v1736, 0.0
  %v1769 = vmax.f32 %v1737, 0.0
  %v1770 = vmax.f32 %v1738, 0.0
  %v1771 = vmax.f32 %v1739, 0.0
  %v1772 = vmax.f32 %v1740, 0.0
  %v1773 = vmax.f32 %v1741, 0.0
  %v1774 = vmax.f32 %v1742, 0.0
  %vm1775 = vcmask 97280
  %1776 = vst.msk [vmem:[#allocation2] sm:$0xff] %vm1775, %v1743
  %1777 = vst.msk [vmem:[#allocation2 + $0x8] sm:$0xff] %vm1775, %v1744
  %1778 = vst.msk [vmem:[#allocation2 + $0x10] sm:$0xff] %vm1775, %v1745
  %1779 = vst.msk [vmem:[#allocation2 + $0x18] sm:$0xff] %vm1775, %v1746
  %1780 = vst.msk [vmem:[#allocation2 + $0x20] sm:$0xff] %vm1775, %v1747
  %1781 = vst.msk [vmem:[#allocation2 + $0x28] sm:$0xff] %vm1775, %v1748
  %1782 = vst.msk [vmem:[#allocation2 + $0x30] sm:$0xff] %vm1775, %v1749
  %1783 = vst.msk [vmem:[#allocation2 + $0x38] sm:$0xff] %vm1775, %v1750
  %1784 = vst.msk [vmem:[#allocation2 + $0x40] sm:$0xff] %vm1775, %v1751
  %1785 = vst.msk [vmem:[#allocation2 + $0x48] sm:$0xff] %vm1775, %v1752
  %1786 = vst.msk [vmem:[#allocation2 + $0x50] sm:$0xff] %vm1775, %v1753
  %1787 = vst.msk [vmem:[#allocation2 + $0x58] sm:$0xff] %vm1775, %v1754
  %1788 = vst.msk [vmem:[#allocation2 + $0x60] sm:$0xff] %vm1775, %v1755
  %1789 = vst.msk [vmem:[#allocation2 + $0x68] sm:$0xff] %vm1775, %v1756
  %1790 = vst.msk [vmem:[#allocation2 + $0x70] sm:$0xff] %vm1775, %v1757
  %1791 = vst.msk [vmem:[#allocation2 + $0x78] sm:$0xff] %vm1775, %v1758
  %1792 = vst.msk [vmem:[#allocation2 + $0x80] sm:$0xff] %vm1775, %v1759
  %1793 = vst.msk [vmem:[#allocation2 + $0x88] sm:$0xff] %vm1775, %v1760
  %1794 = vst.msk [vmem:[#allocation2 + $0x90] sm:$0xff] %vm1775, %v1761
  %1795 = vst.msk [vmem:[#allocation2 + $0x98] sm:$0xff] %vm1775, %v1762
  %1796 = vst.msk [vmem:[#allocation2 + $0xa0] sm:$0xff] %vm1775, %v1763
  %1797 = vst.msk [vmem:[#allocation2 + $0xa8] sm:$0xff] %vm1775, %v1764
  %1798 = vst.msk [vmem:[#allocation2 + $0xb0] sm:$0xff] %vm1775, %v1765
  %1799 = vst.msk [vmem:[#allocation2 + $0xb8] sm:$0xff] %vm1775, %v1766
  %1800 = vst.msk [vmem:[#allocation2 + $0xc0] sm:$0xff] %vm1775, %v1767
  %1801 = vst.msk [vmem:[#allocation2 + $0xc8] sm:$0xff] %vm1775, %v1768
  %1802 = vst.msk [vmem:[#allocation2 + $0xd0] sm:$0xff] %vm1775, %v1769
  %1803 = vst.msk [vmem:[#allocation2 + $0xd8] sm:$0xff] %vm1775, %v1770
  %1804 = vst.msk [vmem:[#allocation2 + $0xe0] sm:$0xff] %vm1775, %v1771
  %1805 = vst.msk [vmem:[#allocation2 + $0xe8] sm:$0xff] %vm1775, %v1772
  %1806 = vst.msk [vmem:[#allocation2 + $0xf0] sm:$0xff] %vm1775, %v1773
  %1807 = vst.msk [vmem:[#allocation2 + $0xf8] sm:$0xff] %vm1775, %v1774
  %v1808 = vld [vmem:[#allocation2] ss:$2 sm:$0xff]
  %s1809 = scalar_lea.vmem [#allocation2], 16
  %v1810 = vld [vmem:[%s1809] ss:$2 sm:$0xff]
  %s1811 = scalar_lea.vmem [#allocation2], 32
  %v1812 = vld [vmem:[%s1811] ss:$2 sm:$0xff]
  %s1813 = scalar_lea.vmem [#allocation2], 48
  %v1814 = vld [vmem:[%s1813] ss:$2 sm:$0xff]
  %s1815 = scalar_lea.vmem [#allocation2], 64
  %v1816 = vld [vmem:[%s1815] ss:$2 sm:$0xff]
  %s1817 = scalar_lea.vmem [#allocation2], 80
  %v1818 = vld [vmem:[%s1817] ss:$2 sm:$0xff]
  %s1819 = scalar_lea.vmem [#allocation2], 96
  %v1820 = vld [vmem:[%s1819] ss:$2 sm:$0xff]
  %s1821 = scalar_lea.vmem [#allocation2], 112
  %v1822 = vld [vmem:[%s1821] ss:$2 sm:$0xff]
  %s1823 = scalar_lea.vmem [#allocation2], 128
  %v1824 = vld [vmem:[%s1823] ss:$2 sm:$0xff]
  %s1825 = scalar_lea.vmem [#allocation2], 144
  %v1826 = vld [vmem:[%s1825] ss:$2 sm:$0xff]
  %s1827 = scalar_lea.vmem [#allocation2], 160
  %v1828 = vld [vmem:[%s1827] ss:$2 sm:$0xff]
  %s1829 = scalar_lea.vmem [#allocation2], 176
  %v1830 = vld [vmem:[%s1829] ss:$2 sm:$0xff]
  %s1831 = scalar_lea.vmem [#allocation2], 192
  %v1832 = vld [vmem:[%s1831] ss:$2 sm:$0xff]
  %s1833 = scalar_lea.vmem [#allocation2], 208
  %v1834 = vld [vmem:[%s1833] ss:$2 sm:$0xff]
  %s1835 = scalar_lea.vmem [#allocation2], 224
  %v1836 = vld [vmem:[%s1835] ss:$2 sm:$0xff]
  %s1837 = scalar_lea.vmem [#allocation2], 240
  %v1838 = vld [vmem:[%s1837] ss:$2 sm:$0xff]
  %s1839 = scalar_lea.vmem [#allocation2], 1
  %v1840 = vld [vmem:[%s1839] ss:$2 sm:$0xff]
  %s1841 = scalar_lea.vmem [#allocation2], 17
  %v1842 = vld [vmem:[%s1841] ss:$2 sm:$0xff]
  %s1843 = scalar_lea.vmem [#allocation2], 33
  %v1844 = vld [vmem:[%s1843] ss:$2 sm:$0xff]
  %s1845 = scalar_lea.vmem [#allocation2], 49
  %v1846 = vld [vmem:[%s1845] ss:$2 sm:$0xff]
  %s1847 = scalar_lea.vmem [#allocation2], 65
  %v1848 = vld [vmem:[%s1847] ss:$2 sm:$0xff]
  %s1849 = scalar_lea.vmem [#allocation2], 81
  %v1850 = vld [vmem:[%s1849] ss:$2 sm:$0xff]
  %s1851 = scalar_lea.vmem [#allocation2], 97
  %v1852 = vld [vmem:[%s1851] ss:$2 sm:$0xff]
  %s1853 = scalar_lea.vmem [#allocation2], 113
  %v1854 = vld [vmem:[%s1853] ss:$2 sm:$0xff]
  %s1855 = scalar_lea.vmem [#allocation2], 129
  %v1856 = vld [vmem:[%s1855] ss:$2 sm:$0xff]
  %s1857 = scalar_lea.vmem [#allocation2], 145
  %v1858 = vld [vmem:[%s1857] ss:$2 sm:$0xff]
  %s1859 = scalar_lea.vmem [#allocation2], 161
  %v1860 = vld [vmem:[%s1859] ss:$2 sm:$0xff]
  %s1861 = scalar_lea.vmem [#allocation2], 177
  %v1862 = vld [vmem:[%s1861] ss:$2 sm:$0xff]
  %s1863 = scalar_lea.vmem [#allocation2], 193
  %v1864 = vld [vmem:[%s1863] ss:$2 sm:$0xff]
  %s1865 = scalar_lea.vmem [#allocation2], 209
  %v1866 = vld [vmem:[%s1865] ss:$2 sm:$0xff]
  %s1867 = scalar_lea.vmem [#allocation2], 225
  %v1868 = vld [vmem:[%s1867] ss:$2 sm:$0xff]
  %s1869 = scalar_lea.vmem [#allocation2], 241
  %v1870 = vld [vmem:[%s1869] ss:$2 sm:$0xff]
  %v1871 = vrot.slane %v1808, 1
  %v1872 = vrot.slane %v1810, 1
  %v1873 = vrot.slane %v1812, 1
  %v1874 = vrot.slane %v1814, 1
  %v1875 = vrot.slane %v1816, 1
  %v1876 = vrot.slane %v1818, 1
  %v1877 = vrot.slane %v1820, 1
  %v1878 = vrot.slane %v1822, 1
  %v1879 = vrot.slane %v1824, 1
  %v1880 = vrot.slane %v1826, 1
  %v1881 = vrot.slane %v1828, 1
  %v1882 = vrot.slane %v1830, 1
  %v1883 = vrot.slane %v1832, 1
  %v1884 = vrot.slane %v1834, 1
  %v1885 = vrot.slane %v1836, 1
  %v1886 = vrot.slane %v1838, 1
  %v1887 = vsel %vm214, %v1885, %v1886
  %v1888 = vsel %vm214, %v1884, %v1885
  %v1889 = vsel %vm214, %v1883, %v1884
  %v1890 = vsel %vm214, %v1882, %v1883
  %v1891 = vsel %vm214, %v1881, %v1882
  %v1892 = vsel %vm214, %v1880, %v1881
  %v1893 = vsel %vm214, %v1879, %v1880
  %v1894 = vsel %vm214, %v1878, %v1879
  %v1895 = vsel %vm214, %v1877, %v1878
  %v1896 = vsel %vm214, %v1876, %v1877
  %v1897 = vsel %vm214, %v1875, %v1876
  %v1898 = vsel %vm214, %v1874, %v1875
  %v1899 = vsel %vm214, %v1873, %v1874
  %v1900 = vsel %vm214, %v1872, %v1873
  %v1901 = vsel %vm214, %v1871, %v1872
  %v1902 = vsel %vm214, %v1886, %v1871
  %v1903 = vand.u32 %v213, 15
  %v1904 = vand.u32 %v247, 15
  %v1905 = vand.u32 %v248, 15
  %v1906 = vand.u32 %v249, 15
  %v1907 = vand.u32 %v250, 15
  %v1908 = vand.u32 %v251, 15
  %v1909 = vand.u32 %v252, 15
  %v1910 = vand.u32 %v253, 15
  %v1911 = vand.u32 %v254, 15
  %v1912 = vand.u32 %v255, 15
  %v1913 = vand.u32 %v256, 15
  %v1914 = vand.u32 %v257, 15
  %v1915 = vand.u32 %v258, 15
  %v1916 = vand.u32 %v259, 15
  %v1917 = vand.u32 %v260, 15
  %v1918 = vand.u32 %v261, 15
  %vm1919 = vcmp.eq.s32.totalorder %v1903, 15
  %vm1920 = vcmp.eq.s32.totalorder %v1904, 15
  %vm1921 = vcmp.eq.s32.totalorder %v1905, 15
  %vm1922 = vcmp.eq.s32.totalorder %v1906, 15
  %vm1923 = vcmp.eq.s32.totalorder %v1907, 15
  %vm1924 = vcmp.eq.s32.totalorder %v1908, 15
  %vm1925 = vcmp.eq.s32.totalorder %v1909, 15
  %vm1926 = vcmp.eq.s32.totalorder %v1910, 15
  %vm1927 = vcmp.eq.s32.totalorder %v1911, 15
  %vm1928 = vcmp.eq.s32.totalorder %v1912, 15
  %vm1929 = vcmp.eq.s32.totalorder %v1913, 15
  %vm1930 = vcmp.eq.s32.totalorder %v1914, 15
  %vm1931 = vcmp.eq.s32.totalorder %v1915, 15
  %vm1932 = vcmp.eq.s32.totalorder %v1916, 15
  %vm1933 = vcmp.eq.s32.totalorder %v1917, 15
  %vm1934 = vcmp.eq.s32.totalorder %v1918, 15
  %v1935 = vsel %vm1919, 1, 0
  %v1936 = vsel %vm1920, 1, 0
  %v1937 = vsel %vm1921, 1, 0
  %v1938 = vsel %vm1922, 1, 0
  %v1939 = vsel %vm1923, 1, 0
  %v1940 = vsel %vm1924, 1, 0
  %v1941 = vsel %vm1925, 1, 0
  %v1942 = vsel %vm1926, 1, 0
  %v1943 = vsel %vm1927, 1, 0
  %v1944 = vsel %vm1928, 1, 0
  %v1945 = vsel %vm1929, 1, 0
  %v1946 = vsel %vm1930, 1, 0
  %v1947 = vsel %vm1931, 1, 0
  %v1948 = vsel %vm1932, 1, 0
  %v1949 = vsel %vm1933, 1, 0
  %v1950 = vsel %vm1934, 1, 0
  %vm1951 = vcmp.eq.s32.totalorder %v1935, 1
  %vm1952 = vcmp.eq.s32.totalorder %v1936, 1
  %vm1953 = vcmp.eq.s32.totalorder %v1937, 1
  %vm1954 = vcmp.eq.s32.totalorder %v1938, 1
  %vm1955 = vcmp.eq.s32.totalorder %v1939, 1
  %vm1956 = vcmp.eq.s32.totalorder %v1940, 1
  %vm1957 = vcmp.eq.s32.totalorder %v1941, 1
  %vm1958 = vcmp.eq.s32.totalorder %v1942, 1
  %vm1959 = vcmp.eq.s32.totalorder %v1943, 1
  %vm1960 = vcmp.eq.s32.totalorder %v1944, 1
  %vm1961 = vcmp.eq.s32.totalorder %v1945, 1
  %vm1962 = vcmp.eq.s32.totalorder %v1946, 1
  %vm1963 = vcmp.eq.s32.totalorder %v1947, 1
  %vm1964 = vcmp.eq.s32.totalorder %v1948, 1
  %vm1965 = vcmp.eq.s32.totalorder %v1949, 1
  %vm1966 = vcmp.eq.s32.totalorder %v1950, 1
  %v1967 = vsel %vm1951, 0.0, %v1901
  %v1968 = vsel %vm1952, 0.0, %v1900
  %v1969 = vsel %vm1953, 0.0, %v1899
  %v1970 = vsel %vm1954, 0.0, %v1898
  %v1971 = vsel %vm1955, 0.0, %v1897
  %v1972 = vsel %vm1956, 0.0, %v1896
  %v1973 = vsel %vm1957, 0.0, %v1895
  %v1974 = vsel %vm1958, 0.0, %v1894
  %v1975 = vsel %vm1959, 0.0, %v1893
  %v1976 = vsel %vm1960, 0.0, %v1892
  %v1977 = vsel %vm1961, 0.0, %v1891
  %v1978 = vsel %vm1962, 0.0, %v1890
  %v1979 = vsel %vm1963, 0.0, %v1889
  %v1980 = vsel %vm1964, 0.0, %v1888
  %v1981 = vsel %vm1965, 0.0, %v1887
  %v1982 = vsel %vm1966, 0.0, %v1902
  %v1983 = vld [vmem:[%s4] sm:$0xff]
  %v1984 = vld [vmem:[%s4 + $0x8] sm:$0xf]
  %v1985 = vld [vmem:[%s5] sm:$0xff]
  %v1986 = vld [vmem:[%s5 + $0x8] sm:$0xf]
  %v1987 = vld [vmem:[%s6] sm:$0x1]
  %v1989 = vsel %vm1775, %v1840, 0
  %v1992 = vsel %vm1775, %v1842, 0
  %v1995 = vsel %vm1775, %v1844, 0
  %v1998 = vsel %vm1775, %v1846, 0
  %v2001 = vsel %vm1775, %v1848, 0
  %v2004 = vsel %vm1775, %v1850, 0
  %v2007 = vsel %vm1775, %v1852, 0
  %v2010 = vsel %vm1775, %v1854, 0
  %v2013 = vsel %vm1775, %v1856, 0
  %v2016 = vsel %vm1775, %v1858, 0
  %v2019 = vsel %vm1775, %v1860, 0
  %v2022 = vsel %vm1775, %v1862, 0
  %v2025 = vsel %vm1775, %v1864, 0
  %v2028 = vsel %vm1775, %v1866, 0
  %v2031 = vsel %vm1775, %v1868, 0
  %v2034 = vsel %vm1775, %v1870, 0
  %vm2036 = vcmask 1043456
  %v2038 = vsel %vm2036, %v1986, 0
  %2040 = vmatprep.subr.mxu0 0.0
  %2041 = vmatpush1.msra.mxu0 %v1985
  %2042 = vmatprep.subr.mxu0 0.0
  %2043 = vmatpush1.msra.mxu0 %v2038
  %2044 = vmatprep.subr.mxu0 0.0
  %2045 = vmatpush1.msra.mxu0 0.0
  %2046 = vmatprep.subr.mxu0 0.0
  %2047 = vmatpush1.msra.mxu0 0.0
  %2048 = vmatprep.subr.mxu0 0.0
  %2049 = vmatpush1.msra.mxu0 0.0
  %2050 = vmatprep.subr.mxu0 0.0
  %2051 = vmatpush1.msra.mxu0 0.0
  %2052 = vmatprep.subr.mxu0 0.0
  %2053 = vmatpush1.msra.mxu0 0.0
  %2054 = vmatprep.subr.mxu0 0.0
  %2055 = vmatpush1.msra.mxu0 0.0
  %2056 = vmatprep.subr.mxu0 0.0
  %2057 = vmatpush1.msra.mxu0 0.0
  %2058 = vmatprep.subr.mxu0 0.0
  %2059 = vmatpush1.msra.mxu0 0.0
  %2060 = vmatprep.subr.mxu0 0.0
  %2061 = vmatpush1.msra.mxu0 0.0
  %2062 = vmatprep.subr.mxu0 0.0
  %2063 = vmatpush1.msra.mxu0 0.0
  %2064 = vmatprep.subr.mxu0 0.0
  %2065 = vmatpush1.msra.mxu0 0.0
  %2066 = vmatprep.subr.mxu0 0.0
  %2067 = vmatpush1.msra.mxu0 0.0
  %2068 = vmatprep.subr.mxu0 0.0
  %2069 = vmatpush1.msra.mxu0 0.0
  %2070 = vmatprep.subr.mxu0 0.0
  %2071 = vmatpush1.msra.mxu0 0.0
  %2072 = vmatprep.subr.mxu0 0.0
  %2073 = vmatpush1.msra.mxu0 0.0
  %2074 = vmatprep.subr.mxu0 0.0
  %2075 = vmatpush1.msra.mxu0 0.0
  %2076 = vmatprep.subr.mxu0 0.0
  %2077 = vmatpush1.msra.mxu0 0.0
  %2078 = vmatprep.subr.mxu0 0.0
  %2079 = vmatpush1.msra.mxu0 0.0
  %2080 = vmatprep.subr.mxu0 0.0
  %2081 = vmatpush1.msra.mxu0 0.0
  %2082 = vmatprep.subr.mxu0 0.0
  %2083 = vmatpush1.msra.mxu0 0.0
  %2084 = vmatprep.subr.mxu0 0.0
  %2085 = vmatpush1.msra.mxu0 0.0
  %2086 = vmatprep.subr.mxu0 0.0
  %2087 = vmatpush1.msra.mxu0 0.0
  %2088 = vmatprep.subr.mxu0 0.0
  %2089 = vmatpush1.msra.mxu0 0.0
  %2090 = vmatprep.subr.mxu0 0.0
  %2091 = vmatpush1.msra.mxu0 0.0
  %2092 = vmatprep.subr.mxu0 0.0
  %2093 = vmatpush1.msra.mxu0 0.0
  %2094 = vmatprep.subr.mxu0 0.0
  %2095 = vmatpush1.msra.mxu0 0.0
  %2096 = vmatprep.subr.mxu0 0.0
  %2097 = vmatpush1.msra.mxu0 0.0
  %2098 = vmatprep.subr.mxu0 0.0
  %2099 = vmatpush1.msra.mxu0 0.0
  %2100 = vmatprep.subr.mxu0 0.0
  %2101 = vmatpush1.msra.mxu0 0.0
  %2102 = vmatprep.subr.mxu0 0.0
  %2103 = vmatpush1.msra.mxu0 0.0
  %2104 = vmatprep.mubr.f32.mxu0 0.0
  %2105 = vmatmul.mubr.f32.gmra.mrb[0].mxu0 %v1989
  %v2106 = vpop.f32.mrb[0].mxu0
  %v2107 = vadd.f32 0.0, %v2106
  %v2108 = vpop.f32.mrb[0].mxu0
  %2109 = vmatprep.mubr.f32.mxu0 0.0
  %2110 = vmatmul.mubr.f32.gmra.mrb[0].mxu0 %v1992
  %v2111 = vpop.f32.mrb[0].mxu0
  %v2112 = vadd.f32 0.0, %v2111
  %v2113 = vpop.f32.mrb[0].mxu0
  %2114 = vmatprep.mubr.f32.mxu0 0.0
  %2115 = vmatmul.mubr.f32.gmra.mrb[0].mxu0 %v1995
  %v2116 = vpop.f32.mrb[0].mxu0
  %v2117 = vadd.f32 0.0, %v2116
  %v2118 = vpop.f32.mrb[0].mxu0
  %2119 = vmatprep.mubr.f32.mxu0 0.0
  %2120 = vmatmul.mubr.f32.gmra.mrb[0].mxu0 %v1998
  %v2121 = vpop.f32.mrb[0].mxu0
  %v2122 = vadd.f32 0.0, %v2121
  %v2123 = vpop.f32.mrb[0].mxu0
  %2124 = vmatprep.mubr.f32.mxu0 0.0
  %2125 = vmatmul.mubr.f32.gmra.mrb[0].mxu0 %v2001
  %v2126 = vpop.f32.mrb[0].mxu0
  %v2127 = vadd.f32 0.0, %v2126
  %v2128 = vpop.f32.mrb[0].mxu0
  %2129 = vmatprep.mubr.f32.mxu0 0.0
  %2130 = vmatmul.mubr.f32.gmra.mrb[0].mxu0 %v2004
  %v2131 = vpop.f32.mrb[0].mxu0
  %v2132 = vadd.f32 0.0, %v2131
  %v2133 = vpop.f32.mrb[0].mxu0
  %2134 = vmatprep.mubr.f32.mxu0 0.0
  %2135 = vmatmul.mubr.f32.gmra.mrb[0].mxu0 %v2007
  %v2136 = vpop.f32.mrb[0].mxu0
  %v2137 = vadd.f32 0.0, %v2136
  %v2138 = vpop.f32.mrb[0].mxu0
  %2139 = vmatprep.mubr.f32.mxu0 0.0
  %2140 = vmatmul.mubr.f32.gmra.mrb[0].mxu0 %v2010
  %v2141 = vpop.f32.mrb[0].mxu0
  %v2142 = vadd.f32 0.0, %v2141
  %v2143 = vpop.f32.mrb[0].mxu0
  %2144 = vmatprep.mubr.f32.mxu0 0.0
  %2145 = vmatmul.mubr.f32.gmra.mrb[0].mxu0 %v2013
  %v2146 = vpop.f32.mrb[0].mxu0
  %v2147 = vadd.f32 0.0, %v2146
  %v2148 = vpop.f32.mrb[0].mxu0
  %2149 = vmatprep.mubr.f32.mxu0 0.0
  %2150 = vmatmul.mubr.f32.gmra.mrb[0].mxu0 %v2016
  %v2151 = vpop.f32.mrb[0].mxu0
  %v2152 = vadd.f32 0.0, %v2151
  %v2153 = vpop.f32.mrb[0].mxu0
  %2154 = vmatprep.mubr.f32.mxu0 0.0
  %2155 = vmatmul.mubr.f32.gmra.mrb[0].mxu0 %v2019
  %v2156 = vpop.f32.mrb[0].mxu0
  %v2157 = vadd.f32 0.0, %v2156
  %v2158 = vpop.f32.mrb[0].mxu0
  %2159 = vmatprep.mubr.f32.mxu0 0.0
  %2160 = vmatmul.mubr.f32.gmra.mrb[0].mxu0 %v2022
  %v2161 = vpop.f32.mrb[0].mxu0
  %v2162 = vadd.f32 0.0, %v2161
  %v2163 = vpop.f32.mrb[0].mxu0
  %2164 = vmatprep.mubr.f32.mxu0 0.0
  %2165 = vmatmul.mubr.f32.gmra.mrb[0].mxu0 %v2025
  %v2166 = vpop.f32.mrb[0].mxu0
  %v2167 = vadd.f32 0.0, %v2166
  %v2168 = vpop.f32.mrb[0].mxu0
  %2169 = vmatprep.mubr.f32.mxu0 0.0
  %2170 = vmatmul.mubr.f32.gmra.mrb[0].mxu0 %v2028
  %v2171 = vpop.f32.mrb[0].mxu0
  %v2172 = vadd.f32 0.0, %v2171
  %v2173 = vpop.f32.mrb[0].mxu0
  %2174 = vmatprep.mubr.f32.mxu0 0.0
  %2175 = vmatmul.mubr.f32.gmra.mrb[0].mxu0 %v2031
  %v2176 = vpop.f32.mrb[0].mxu0
  %v2177 = vadd.f32 0.0, %v2176
  %v2178 = vpop.f32.mrb[0].mxu0
  %2179 = vmatprep.mubr.f32.mxu0 0.0
  %2180 = vmatmul.mubr.f32.gmra.mrb[0].mxu0 %v2034
  %v2181 = vpop.f32.mrb[0].mxu0
  %v2182 = vadd.f32 0.0, %v2181
  %v2183 = vpop.f32.mrb[0].mxu0
  %2184 = vdwg.mxu0
  %v2186 = vsel %vm1775, %v1808, 0
  %v2189 = vsel %vm1775, %v1810, 0
  %v2192 = vsel %vm1775, %v1812, 0
  %v2195 = vsel %vm1775, %v1814, 0
  %v2198 = vsel %vm1775, %v1816, 0
  %v2201 = vsel %vm1775, %v1818, 0
  %v2204 = vsel %vm1775, %v1820, 0
  %v2207 = vsel %vm1775, %v1822, 0
  %v2210 = vsel %vm1775, %v1824, 0
  %v2213 = vsel %vm1775, %v1826, 0
  %v2216 = vsel %vm1775, %v1828, 0
  %v2219 = vsel %vm1775, %v1830, 0
  %v2222 = vsel %vm1775, %v1832, 0
  %v2225 = vsel %vm1775, %v1834, 0
  %v2228 = vsel %vm1775, %v1836, 0
  %v2231 = vsel %vm1775, %v1838, 0
  %v2234 = vsel %vm2036, %v1984, 0
  %2236 = vmatprep.subr.mxu0 0.0
  %2237 = vmatpush1.msra.mxu0 %v1983
  %2238 = vmatprep.subr.mxu0 0.0
  %2239 = vmatpush1.msra.mxu0 %v2234
  %2240 = vmatprep.subr.mxu0 0.0
  %2241 = vmatpush1.msra.mxu0 0.0
  %2242 = vmatprep.subr.mxu0 0.0
  %2243 = vmatpush1.msra.mxu0 0.0
  %2244 = vmatprep.subr.mxu0 0.0
  %2245 = vmatpush1.msra.mxu0 0.0
  %2246 = vmatprep.subr.mxu0 0.0
  %2247 = vmatpush1.msra.mxu0 0.0
  %2248 = vmatprep.subr.mxu0 0.0
  %2249 = vmatpush1.msra.mxu0 0.0
  %2250 = vmatprep.subr.mxu0 0.0
  %2251 = vmatpush1.msra.mxu0 0.0
  %2252 = vmatprep.subr.mxu0 0.0
  %2253 = vmatpush1.msra.mxu0 0.0
  %2254 = vmatprep.subr.mxu0 0.0
  %2255 = vmatpush1.msra.mxu0 0.0
  %2256 = vmatprep.subr.mxu0 0.0
  %2257 = vmatpush1.msra.mxu0 0.0
  %2258 = vmatprep.subr.mxu0 0.0
  %2259 = vmatpush1.msra.mxu0 0.0
  %2260 = vmatprep.subr.mxu0 0.0
  %2261 = vmatpush1.msra.mxu0 0.0
  %2262 = vmatprep.subr.mxu0 0.0
  %2263 = vmatpush1.msra.mxu0 0.0
  %2264 = vmatprep.subr.mxu0 0.0
  %2265 = vmatpush1.msra.mxu0 0.0
  %2266 = vmatprep.subr.mxu0 0.0
  %2267 = vmatpush1.msra.mxu0 0.0
  %2268 = vmatprep.subr.mxu0 0.0
  %2269 = vmatpush1.msra.mxu0 0.0
  %2270 = vmatprep.subr.mxu0 0.0
  %2271 = vmatpush1.msra.mxu0 0.0
  %2272 = vmatprep.subr.mxu0 0.0
  %2273 = vmatpush1.msra.mxu0 0.0
  %2274 = vmatprep.subr.mxu0 0.0
  %2275 = vmatpush1.msra.mxu0 0.0
  %2276 = vmatprep.subr.mxu0 0.0
  %2277 = vmatpush1.msra.mxu0 0.0
  %2278 = vmatprep.subr.mxu0 0.0
  %2279 = vmatpush1.msra.mxu0 0.0
  %2280 = vmatprep.subr.mxu0 0.0
  %2281 = vmatpush1.msra.mxu0 0.0
  %2282 = vmatprep.subr.mxu0 0.0
  %2283 = vmatpush1.msra.mxu0 0.0
  %2284 = vmatprep.subr.mxu0 0.0
  %2285 = vmatpush1.msra.mxu0 0.0
  %2286 = vmatprep.subr.mxu0 0.0
  %2287 = vmatpush1.msra.mxu0 0.0
  %2288 = vmatprep.subr.mxu0 0.0
  %2289 = vmatpush1.msra.mxu0 0.0
  %2290 = vmatprep.subr.mxu0 0.0
  %2291 = vmatpush1.msra.mxu0 0.0
  %2292 = vmatprep.subr.mxu0 0.0
  %2293 = vmatpush1.msra.mxu0 0.0
  %2294 = vmatprep.subr.mxu0 0.0
  %2295 = vmatpush1.msra.mxu0 0.0
  %2296 = vmatprep.subr.mxu0 0.0
  %2297 = vmatpush1.msra.mxu0 0.0
  %2298 = vmatprep.subr.mxu0 0.0
  %2299 = vmatpush1.msra.mxu0 0.0
  %2300 = vmatprep.mubr.f32.mxu0 0.0
  %2301 = vmatmul.mubr.f32.gmra.mrb[0].mxu0 %v2186
  %v2302 = vpop.f32.mrb[0].mxu0
  %v2303 = vadd.f32 %v2107, %v2302
  %v2304 = vpop.f32.mrb[0].mxu0
  %2305 = vmatprep.mubr.f32.mxu0 0.0
  %2306 = vmatmul.mubr.f32.gmra.mrb[0].mxu0 %v2189
  %v2307 = vpop.f32.mrb[0].mxu0
  %v2308 = vadd.f32 %v2112, %v2307
  %v2309 = vpop.f32.mrb[0].mxu0
  %2310 = vmatprep.mubr.f32.mxu0 0.0
  %2311 = vmatmul.mubr.f32.gmra.mrb[0].mxu0 %v2192
  %v2312 = vpop.f32.mrb[0].mxu0
  %v2313 = vadd.f32 %v2117, %v2312
  %v2314 = vpop.f32.mrb[0].mxu0
  %2315 = vmatprep.mubr.f32.mxu0 0.0
  %2316 = vmatmul.mubr.f32.gmra.mrb[0].mxu0 %v2195
  %v2317 = vpop.f32.mrb[0].mxu0
  %v2318 = vadd.f32 %v2122, %v2317
  %v2319 = vpop.f32.mrb[0].mxu0
  %2320 = vmatprep.mubr.f32.mxu0 0.0
  %2321 = vmatmul.mubr.f32.gmra.mrb[0].mxu0 %v2198
  %v2322 = vpop.f32.mrb[0].mxu0
  %v2323 = vadd.f32 %v2127, %v2322
  %v2324 = vpop.f32.mrb[0].mxu0
  %2325 = vmatprep.mubr.f32.mxu0 0.0
  %2326 = vmatmul.mubr.f32.gmra.mrb[0].mxu0 %v2201
  %v2327 = vpop.f32.mrb[0].mxu0
  %v2328 = vadd.f32 %v2132, %v2327
  %v2329 = vpop.f32.mrb[0].mxu0
  %2330 = vmatprep.mubr.f32.mxu0 0.0
  %2331 = vmatmul.mubr.f32.gmra.mrb[0].mxu0 %v2204
  %v2332 = vpop.f32.mrb[0].mxu0
  %v2333 = vadd.f32 %v2137, %v2332
  %v2334 = vpop.f32.mrb[0].mxu0
  %2335 = vmatprep.mubr.f32.mxu0 0.0
  %2336 = vmatmul.mubr.f32.gmra.mrb[0].mxu0 %v2207
  %v2337 = vpop.f32.mrb[0].mxu0
  %v2338 = vadd.f32 %v2142, %v2337
  %v2339 = vpop.f32.mrb[0].mxu0
  %2340 = vmatprep.mubr.f32.mxu0 0.0
  %2341 = vmatmul.mubr.f32.gmra.mrb[0].mxu0 %v2210
  %v2342 = vpop.f32.mrb[0].mxu0
  %v2343 = vadd.f32 %v2147, %v2342
  %v2344 = vpop.f32.mrb[0].mxu0
  %2345 = vmatprep.mubr.f32.mxu0 0.0
  %2346 = vmatmul.mubr.f32.gmra.mrb[0].mxu0 %v2213
  %v2347 = vpop.f32.mrb[0].mxu0
  %v2348 = vadd.f32 %v2152, %v2347
  %v2349 = vpop.f32.mrb[0].mxu0
  %2350 = vmatprep.mubr.f32.mxu0 0.0
  %2351 = vmatmul.mubr.f32.gmra.mrb[0].mxu0 %v2216
  %v2352 = vpop.f32.mrb[0].mxu0
  %v2353 = vadd.f32 %v2157, %v2352
  %v2354 = vpop.f32.mrb[0].mxu0
  %2355 = vmatprep.mubr.f32.mxu0 0.0
  %2356 = vmatmul.mubr.f32.gmra.mrb[0].mxu0 %v2219
  %v2357 = vpop.f32.mrb[0].mxu0
  %v2358 = vadd.f32 %v2162, %v2357
  %v2359 = vpop.f32.mrb[0].mxu0
  %2360 = vmatprep.mubr.f32.mxu0 0.0
  %2361 = vmatmul.mubr.f32.gmra.mrb[0].mxu0 %v2222
  %v2362 = vpop.f32.mrb[0].mxu0
  %v2363 = vadd.f32 %v2167, %v2362
  %v2364 = vpop.f32.mrb[0].mxu0
  %2365 = vmatprep.mubr.f32.mxu0 0.0
  %2366 = vmatmul.mubr.f32.gmra.mrb[0].mxu0 %v2225
  %v2367 = vpop.f32.mrb[0].mxu0
  %v2368 = vadd.f32 %v2172, %v2367
  %v2369 = vpop.f32.mrb[0].mxu0
  %2370 = vmatprep.mubr.f32.mxu0 0.0
  %2371 = vmatmul.mubr.f32.gmra.mrb[0].mxu0 %v2228
  %v2372 = vpop.f32.mrb[0].mxu0
  %v2373 = vadd.f32 %v2177, %v2372
  %v2374 = vpop.f32.mrb[0].mxu0
  %2375 = vmatprep.mubr.f32.mxu0 0.0
  %2376 = vmatmul.mubr.f32.gmra.mrb[0].mxu0 %v2231
  %v2377 = vpop.f32.mrb[0].mxu0
  %v2378 = vadd.f32 %v2182, %v2377
  %v2379 = vpop.f32.mrb[0].mxu0
  %2380 = vdwg.mxu0
  %v2382 = vlaneseq
  %v2383 = vshrl.u32 %v2382, 7
  %v2384 = vsub.s32 0, %v2383
  %v2385 = vrot.slane %v1987, %v2384
  %v2387 = vadd.f32 %v2303, %v2385
  %v2388 = vadd.f32 %v2308, %v2385
  %v2389 = vadd.f32 %v2313, %v2385
  %v2390 = vadd.f32 %v2318, %v2385
  %v2391 = vadd.f32 %v2323, %v2385
  %v2392 = vadd.f32 %v2328, %v2385
  %v2393 = vadd.f32 %v2333, %v2385
  %v2394 = vadd.f32 %v2338, %v2385
  %v2395 = vadd.f32 %v2343, %v2385
  %v2396 = vadd.f32 %v2348, %v2385
  %v2397 = vadd.f32 %v2353, %v2385
  %v2398 = vadd.f32 %v2358, %v2385
  %v2399 = vadd.f32 %v2363, %v2385
  %v2400 = vadd.f32 %v2368, %v2385
  %v2401 = vadd.f32 %v2373, %v2385
  %v2402 = vadd.f32 %v2378, %v2385
  %v2404 = vsel %vm1775, %v1967, 0
  %v2407 = vsel %vm1775, %v1968, 0
  %v2410 = vsel %vm1775, %v1969, 0
  %v2413 = vsel %vm1775, %v1970, 0
  %v2416 = vsel %vm1775, %v1971, 0
  %v2419 = vsel %vm1775, %v1972, 0
  %v2422 = vsel %vm1775, %v1973, 0
  %v2425 = vsel %vm1775, %v1974, 0
  %v2428 = vsel %vm1775, %v1975, 0
  %v2431 = vsel %vm1775, %v1976, 0
  %v2434 = vsel %vm1775, %v1977, 0
  %v2437 = vsel %vm1775, %v1978, 0
  %v2440 = vsel %vm1775, %v1979, 0
  %v2443 = vsel %vm1775, %v1980, 0
  %v2446 = vsel %vm1775, %v1981, 0
  %v2449 = vsel %vm1775, %v1982, 0
  %2451 = vmatprep.subr.mxu0 0.0
  %2452 = vmatpush1.msra.mxu0 %v1985
  %2453 = vmatprep.subr.mxu0 0.0
  %2454 = vmatpush1.msra.mxu0 %v2038
  %2455 = vmatprep.subr.mxu0 0.0
  %2456 = vmatpush1.msra.mxu0 0.0
  %2457 = vmatprep.subr.mxu0 0.0
  %2458 = vmatpush1.msra.mxu0 0.0
  %2459 = vmatprep.subr.mxu0 0.0
  %2460 = vmatpush1.msra.mxu0 0.0
  %2461 = vmatprep.subr.mxu0 0.0
  %2462 = vmatpush1.msra.mxu0 0.0
  %2463 = vmatprep.subr.mxu0 0.0
  %2464 = vmatpush1.msra.mxu0 0.0
  %2465 = vmatprep.subr.mxu0 0.0
  %2466 = vmatpush1.msra.mxu0 0.0
  %2467 = vmatprep.subr.mxu0 0.0
  %2468 = vmatpush1.msra.mxu0 0.0
  %2469 = vmatprep.subr.mxu0 0.0
  %2470 = vmatpush1.msra.mxu0 0.0
  %2471 = vmatprep.subr.mxu0 0.0
  %2472 = vmatpush1.msra.mxu0 0.0
  %2473 = vmatprep.subr.mxu0 0.0
  %2474 = vmatpush1.msra.mxu0 0.0
  %2475 = vmatprep.subr.mxu0 0.0
  %2476 = vmatpush1.msra.mxu0 0.0
  %2477 = vmatprep.subr.mxu0 0.0
  %2478 = vmatpush1.msra.mxu0 0.0
  %2479 = vmatprep.subr.mxu0 0.0
  %2480 = vmatpush1.msra.mxu0 0.0
  %2481 = vmatprep.subr.mxu0 0.0
  %2482 = vmatpush1.msra.mxu0 0.0
  %2483 = vmatprep.subr.mxu0 0.0
  %2484 = vmatpush1.msra.mxu0 0.0
  %2485 = vmatprep.subr.mxu0 0.0
  %2486 = vmatpush1.msra.mxu0 0.0
  %2487 = vmatprep.subr.mxu0 0.0
  %2488 = vmatpush1.msra.mxu0 0.0
  %2489 = vmatprep.subr.mxu0 0.0
  %2490 = vmatpush1.msra.mxu0 0.0
  %2491 = vmatprep.subr.mxu0 0.0
  %2492 = vmatpush1.msra.mxu0 0.0
  %2493 = vmatprep.subr.mxu0 0.0
  %2494 = vmatpush1.msra.mxu0 0.0
  %2495 = vmatprep.subr.mxu0 0.0
  %2496 = vmatpush1.msra.mxu0 0.0
  %2497 = vmatprep.subr.mxu0 0.0
  %2498 = vmatpush1.msra.mxu0 0.0
  %2499 = vmatprep.subr.mxu0 0.0
  %2500 = vmatpush1.msra.mxu0 0.0
  %2501 = vmatprep.subr.mxu0 0.0
  %2502 = vmatpush1.msra.mxu0 0.0
  %2503 = vmatprep.subr.mxu0 0.0
  %2504 = vmatpush1.msra.mxu0 0.0
  %2505 = vmatprep.subr.mxu0 0.0
  %2506 = vmatpush1.msra.mxu0 0.0
  %2507 = vmatprep.subr.mxu0 0.0
  %2508 = vmatpush1.msra.mxu0 0.0
  %2509 = vmatprep.subr.mxu0 0.0
  %2510 = vmatpush1.msra.mxu0 0.0
  %2511 = vmatprep.subr.mxu0 0.0
  %2512 = vmatpush1.msra.mxu0 0.0
  %2513 = vmatprep.subr.mxu0 0.0
  %2514 = vmatpush1.msra.mxu0 0.0
  %2515 = vmatprep.mubr.f32.mxu0 0.0
  %2516 = vmatmul.mubr.f32.gmra.mrb[0].mxu0 %v2404
  %v2517 = vpop.f32.mrb[0].mxu0
  %v2518 = vadd.f32 0.0, %v2517
  %v2519 = vpop.f32.mrb[0].mxu0
  %2520 = vmatprep.mubr.f32.mxu0 0.0
  %2521 = vmatmul.mubr.f32.gmra.mrb[0].mxu0 %v2407
  %v2522 = vpop.f32.mrb[0].mxu0
  %v2523 = vadd.f32 0.0, %v2522
  %v2524 = vpop.f32.mrb[0].mxu0
  %2525 = vmatprep.mubr.f32.mxu0 0.0
  %2526 = vmatmul.mubr.f32.gmra.mrb[0].mxu0 %v2410
  %v2527 = vpop.f32.mrb[0].mxu0
  %v2528 = vadd.f32 0.0, %v2527
  %v2529 = vpop.f32.mrb[0].mxu0
  %2530 = vmatprep.mubr.f32.mxu0 0.0
  %2531 = vmatmul.mubr.f32.gmra.mrb[0].mxu0 %v2413
  %v2532 = vpop.f32.mrb[0].mxu0
  %v2533 = vadd.f32 0.0, %v2532
  %v2534 = vpop.f32.mrb[0].mxu0
  %2535 = vmatprep.mubr.f32.mxu0 0.0
  %2536 = vmatmul.mubr.f32.gmra.mrb[0].mxu0 %v2416
  %v2537 = vpop.f32.mrb[0].mxu0
  %v2538 = vadd.f32 0.0, %v2537
  %v2539 = vpop.f32.mrb[0].mxu0
  %2540 = vmatprep.mubr.f32.mxu0 0.0
  %2541 = vmatmul.mubr.f32.gmra.mrb[0].mxu0 %v2419
  %v2542 = vpop.f32.mrb[0].mxu0
  %v2543 = vadd.f32 0.0, %v2542
  %v2544 = vpop.f32.mrb[0].mxu0
  %2545 = vmatprep.mubr.f32.mxu0 0.0
  %2546 = vmatmul.mubr.f32.gmra.mrb[0].mxu0 %v2422
  %v2547 = vpop.f32.mrb[0].mxu0
  %v2548 = vadd.f32 0.0, %v2547
  %v2549 = vpop.f32.mrb[0].mxu0
  %2550 = vmatprep.mubr.f32.mxu0 0.0
  %2551 = vmatmul.mubr.f32.gmra.mrb[0].mxu0 %v2425
  %v2552 = vpop.f32.mrb[0].mxu0
  %v2553 = vadd.f32 0.0, %v2552
  %v2554 = vpop.f32.mrb[0].mxu0
  %2555 = vmatprep.mubr.f32.mxu0 0.0
  %2556 = vmatmul.mubr.f32.gmra.mrb[0].mxu0 %v2428
  %v2557 = vpop.f32.mrb[0].mxu0
  %v2558 = vadd.f32 0.0, %v2557
  %v2559 = vpop.f32.mrb[0].mxu0
  %2560 = vmatprep.mubr.f32.mxu0 0.0
  %2561 = vmatmul.mubr.f32.gmra.mrb[0].mxu0 %v2431
  %v2562 = vpop.f32.mrb[0].mxu0
  %v2563 = vadd.f32 0.0, %v2562
  %v2564 = vpop.f32.mrb[0].mxu0
  %2565 = vmatprep.mubr.f32.mxu0 0.0
  %2566 = vmatmul.mubr.f32.gmra.mrb[0].mxu0 %v2434
  %v2567 = vpop.f32.mrb[0].mxu0
  %v2568 = vadd.f32 0.0, %v2567
  %v2569 = vpop.f32.mrb[0].mxu0
  %2570 = vmatprep.mubr.f32.mxu0 0.0
  %2571 = vmatmul.mubr.f32.gmra.mrb[0].mxu0 %v2437
  %v2572 = vpop.f32.mrb[0].mxu0
  %v2573 = vadd.f32 0.0, %v2572
  %v2574 = vpop.f32.mrb[0].mxu0
  %2575 = vmatprep.mubr.f32.mxu0 0.0
  %2576 = vmatmul.mubr.f32.gmra.mrb[0].mxu0 %v2440
  %v2577 = vpop.f32.mrb[0].mxu0
  %v2578 = vadd.f32 0.0, %v2577
  %v2579 = vpop.f32.mrb[0].mxu0
  %2580 = vmatprep.mubr.f32.mxu0 0.0
  %2581 = vmatmul.mubr.f32.gmra.mrb[0].mxu0 %v2443
  %v2582 = vpop.f32.mrb[0].mxu0
  %v2583 = vadd.f32 0.0, %v2582
  %v2584 = vpop.f32.mrb[0].mxu0
  %2585 = vmatprep.mubr.f32.mxu0 0.0
  %2586 = vmatmul.mubr.f32.gmra.mrb[0].mxu0 %v2446
  %v2587 = vpop.f32.mrb[0].mxu0
  %v2588 = vadd.f32 0.0, %v2587
  %v2589 = vpop.f32.mrb[0].mxu0
  %2590 = vmatprep.mubr.f32.mxu0 0.0
  %2591 = vmatmul.mubr.f32.gmra.mrb[0].mxu0 %v2449
  %v2592 = vpop.f32.mrb[0].mxu0
  %v2593 = vadd.f32 0.0, %v2592
  %v2594 = vpop.f32.mrb[0].mxu0
  %2595 = vdwg.mxu0
  %2596 = vmatprep.subr.mxu0 0.0
  %2597 = vmatpush1.msra.mxu0 %v1983
  %2598 = vmatprep.subr.mxu0 0.0
  %2599 = vmatpush1.msra.mxu0 %v2234
  %2600 = vmatprep.subr.mxu0 0.0
  %2601 = vmatpush1.msra.mxu0 0.0
  %2602 = vmatprep.subr.mxu0 0.0
  %2603 = vmatpush1.msra.mxu0 0.0
  %2604 = vmatprep.subr.mxu0 0.0
  %2605 = vmatpush1.msra.mxu0 0.0
  %2606 = vmatprep.subr.mxu0 0.0
  %2607 = vmatpush1.msra.mxu0 0.0
  %2608 = vmatprep.subr.mxu0 0.0
  %2609 = vmatpush1.msra.mxu0 0.0
  %2610 = vmatprep.subr.mxu0 0.0
  %2611 = vmatpush1.msra.mxu0 0.0
  %2612 = vmatprep.subr.mxu0 0.0
  %2613 = vmatpush1.msra.mxu0 0.0
  %2614 = vmatprep.subr.mxu0 0.0
  %2615 = vmatpush1.msra.mxu0 0.0
  %2616 = vmatprep.subr.mxu0 0.0
  %2617 = vmatpush1.msra.mxu0 0.0
  %2618 = vmatprep.subr.mxu0 0.0
  %2619 = vmatpush1.msra.mxu0 0.0
  %2620 = vmatprep.subr.mxu0 0.0
  %2621 = vmatpush1.msra.mxu0 0.0
  %2622 = vmatprep.subr.mxu0 0.0
  %2623 = vmatpush1.msra.mxu0 0.0
  %2624 = vmatprep.subr.mxu0 0.0
  %2625 = vmatpush1.msra.mxu0 0.0
  %2626 = vmatprep.subr.mxu0 0.0
  %2627 = vmatpush1.msra.mxu0 0.0
  %2628 = vmatprep.subr.mxu0 0.0
  %2629 = vmatpush1.msra.mxu0 0.0
  %2630 = vmatprep.subr.mxu0 0.0
  %2631 = vmatpush1.msra.mxu0 0.0
  %2632 = vmatprep.subr.mxu0 0.0
  %2633 = vmatpush1.msra.mxu0 0.0
  %2634 = vmatprep.subr.mxu0 0.0
  %2635 = vmatpush1.msra.mxu0 0.0
  %2636 = vmatprep.subr.mxu0 0.0
  %2637 = vmatpush1.msra.mxu0 0.0
  %2638 = vmatprep.subr.mxu0 0.0
  %2639 = vmatpush1.msra.mxu0 0.0
  %2640 = vmatprep.subr.mxu0 0.0
  %2641 = vmatpush1.msra.mxu0 0.0
  %2642 = vmatprep.subr.mxu0 0.0
  %2643 = vmatpush1.msra.mxu0 0.0
  %2644 = vmatprep.subr.mxu0 0.0
  %2645 = vmatpush1.msra.mxu0 0.0
  %2646 = vmatprep.subr.mxu0 0.0
  %2647 = vmatpush1.msra.mxu0 0.0
  %2648 = vmatprep.subr.mxu0 0.0
  %2649 = vmatpush1.msra.mxu0 0.0
  %2650 = vmatprep.subr.mxu0 0.0
  %2651 = vmatpush1.msra.mxu0 0.0
  %2652 = vmatprep.subr.mxu0 0.0
  %2653 = vmatpush1.msra.mxu0 0.0
  %2654 = vmatprep.subr.mxu0 0.0
  %2655 = vmatpush1.msra.mxu0 0.0
  %2656 = vmatprep.subr.mxu0 0.0
  %2657 = vmatpush1.msra.mxu0 0.0
  %2658 = vmatprep.subr.mxu0 0.0
  %2659 = vmatpush1.msra.mxu0 0.0
  %2660 = vmatprep.mubr.f32.mxu0 0.0
  %2661 = vmatmul.mubr.f32.gmra.mrb[0].mxu0 %v1989
  %v2662 = vpop.f32.mrb[0].mxu0
  %v2663 = vadd.f32 %v2518, %v2662
  %v2664 = vpop.f32.mrb[0].mxu0
  %2665 = vmatprep.mubr.f32.mxu0 0.0
  %2666 = vmatmul.mubr.f32.gmra.mrb[0].mxu0 %v1992
  %v2667 = vpop.f32.mrb[0].mxu0
  %v2668 = vadd.f32 %v2523, %v2667
  %v2669 = vpop.f32.mrb[0].mxu0
  %2670 = vmatprep.mubr.f32.mxu0 0.0
  %2671 = vmatmul.mubr.f32.gmra.mrb[0].mxu0 %v1995
  %v2672 = vpop.f32.mrb[0].mxu0
  %v2673 = vadd.f32 %v2528, %v2672
  %v2674 = vpop.f32.mrb[0].mxu0
  %2675 = vmatprep.mubr.f32.mxu0 0.0
  %2676 = vmatmul.mubr.f32.gmra.mrb[0].mxu0 %v1998
  %v2677 = vpop.f32.mrb[0].mxu0
  %v2678 = vadd.f32 %v2533, %v2677
  %v2679 = vpop.f32.mrb[0].mxu0
  %2680 = vmatprep.mubr.f32.mxu0 0.0
  %2681 = vmatmul.mubr.f32.gmra.mrb[0].mxu0 %v2001
  %v2682 = vpop.f32.mrb[0].mxu0
  %v2683 = vadd.f32 %v2538, %v2682
  %v2684 = vpop.f32.mrb[0].mxu0
  %2685 = vmatprep.mubr.f32.mxu0 0.0
  %2686 = vmatmul.mubr.f32.gmra.mrb[0].mxu0 %v2004
  %v2687 = vpop.f32.mrb[0].mxu0
  %v2688 = vadd.f32 %v2543, %v2687
  %v2689 = vpop.f32.mrb[0].mxu0
  %2690 = vmatprep.mubr.f32.mxu0 0.0
  %2691 = vmatmul.mubr.f32.gmra.mrb[0].mxu0 %v2007
  %v2692 = vpop.f32.mrb[0].mxu0
  %v2693 = vadd.f32 %v2548, %v2692
  %v2694 = vpop.f32.mrb[0].mxu0
  %2695 = vmatprep.mubr.f32.mxu0 0.0
  %2696 = vmatmul.mubr.f32.gmra.mrb[0].mxu0 %v2010
  %v2697 = vpop.f32.mrb[0].mxu0
  %v2698 = vadd.f32 %v2553, %v2697
  %v2699 = vpop.f32.mrb[0].mxu0
  %2700 = vmatprep.mubr.f32.mxu0 0.0
  %2701 = vmatmul.mubr.f32.gmra.mrb[0].mxu0 %v2013
  %v2702 = vpop.f32.mrb[0].mxu0
  %v2703 = vadd.f32 %v2558, %v2702
  %v2704 = vpop.f32.mrb[0].mxu0
  %2705 = vmatprep.mubr.f32.mxu0 0.0
  %2706 = vmatmul.mubr.f32.gmra.mrb[0].mxu0 %v2016
  %v2707 = vpop.f32.mrb[0].mxu0
  %v2708 = vadd.f32 %v2563, %v2707
  %v2709 = vpop.f32.mrb[0].mxu0
  %2710 = vmatprep.mubr.f32.mxu0 0.0
  %2711 = vmatmul.mubr.f32.gmra.mrb[0].mxu0 %v2019
  %v2712 = vpop.f32.mrb[0].mxu0
  %v2713 = vadd.f32 %v2568, %v2712
  %v2714 = vpop.f32.mrb[0].mxu0
  %2715 = vmatprep.mubr.f32.mxu0 0.0
  %2716 = vmatmul.mubr.f32.gmra.mrb[0].mxu0 %v2022
  %v2717 = vpop.f32.mrb[0].mxu0
  %v2718 = vadd.f32 %v2573, %v2717
  %v2719 = vpop.f32.mrb[0].mxu0
  %2720 = vmatprep.mubr.f32.mxu0 0.0
  %2721 = vmatmul.mubr.f32.gmra.mrb[0].mxu0 %v2025
  %v2722 = vpop.f32.mrb[0].mxu0
  %v2723 = vadd.f32 %v2578, %v2722
  %v2724 = vpop.f32.mrb[0].mxu0
  %2725 = vmatprep.mubr.f32.mxu0 0.0
  %2726 = vmatmul.mubr.f32.gmra.mrb[0].mxu0 %v2028
  %v2727 = vpop.f32.mrb[0].mxu0
  %v2728 = vadd.f32 %v2583, %v2727
  %v2729 = vpop.f32.mrb[0].mxu0
  %2730 = vmatprep.mubr.f32.mxu0 0.0
  %2731 = vmatmul.mubr.f32.gmra.mrb[0].mxu0 %v2031
  %v2732 = vpop.f32.mrb[0].mxu0
  %v2733 = vadd.f32 %v2588, %v2732
  %v2734 = vpop.f32.mrb[0].mxu0
  %2735 = vmatprep.mubr.f32.mxu0 0.0
  %2736 = vmatmul.mubr.f32.gmra.mrb[0].mxu0 %v2034
  %v2737 = vpop.f32.mrb[0].mxu0
  %v2738 = vadd.f32 %v2593, %v2737
  %v2739 = vpop.f32.mrb[0].mxu0
  %2740 = vdwg.mxu0
  %v2741 = vadd.f32 %v2663, %v2385
  %v2742 = vadd.f32 %v2668, %v2385
  %v2743 = vadd.f32 %v2673, %v2385
  %v2744 = vadd.f32 %v2678, %v2385
  %v2745 = vadd.f32 %v2683, %v2385
  %v2746 = vadd.f32 %v2688, %v2385
  %v2747 = vadd.f32 %v2693, %v2385
  %v2748 = vadd.f32 %v2698, %v2385
  %v2749 = vadd.f32 %v2703, %v2385
  %v2750 = vadd.f32 %v2708, %v2385
  %v2751 = vadd.f32 %v2713, %v2385
  %v2752 = vadd.f32 %v2718, %v2385
  %v2753 = vadd.f32 %v2723, %v2385
  %v2754 = vadd.f32 %v2728, %v2385
  %v2755 = vadd.f32 %v2733, %v2385
  %v2756 = vadd.f32 %v2738, %v2385
  %v2757 = vmax.f32 %v2387, %v2741
  %v2758 = vmax.f32 %v2388, %v2742
  %v2759 = vmax.f32 %v2389, %v2743
  %v2760 = vmax.f32 %v2390, %v2744
  %v2761 = vmax.f32 %v2391, %v2745
  %v2762 = vmax.f32 %v2392, %v2746
  %v2763 = vmax.f32 %v2393, %v2747
  %v2764 = vmax.f32 %v2394, %v2748
  %v2765 = vmax.f32 %v2395, %v2749
  %v2766 = vmax.f32 %v2396, %v2750
  %v2767 = vmax.f32 %v2397, %v2751
  %v2768 = vmax.f32 %v2398, %v2752
  %v2769 = vmax.f32 %v2399, %v2753
  %v2770 = vmax.f32 %v2400, %v2754
  %v2771 = vmax.f32 %v2401, %v2755
  %v2772 = vmax.f32 %v2402, %v2756
  %v2773 = vmax.f32 %v2757, 0.0
  %v2774 = vmax.f32 %v2758, 0.0
  %v2775 = vmax.f32 %v2759, 0.0
  %v2776 = vmax.f32 %v2760, 0.0
  %v2777 = vmax.f32 %v2761, 0.0
  %v2778 = vmax.f32 %v2762, 0.0
  %v2779 = vmax.f32 %v2763, 0.0
  %v2780 = vmax.f32 %v2764, 0.0
  %v2781 = vmax.f32 %v2765, 0.0
  %v2782 = vmax.f32 %v2766, 0.0
  %v2783 = vmax.f32 %v2767, 0.0
  %v2784 = vmax.f32 %v2768, 0.0
  %v2785 = vmax.f32 %v2769, 0.0
  %v2786 = vmax.f32 %v2770, 0.0
  %v2787 = vmax.f32 %v2771, 0.0
  %v2788 = vmax.f32 %v2772, 0.0
  %vm2789 = vcmask 48128
  %2790 = vst.msk [vmem:[#allocation2] sm:$0xff] %vm2789, %v2773
  %2791 = vst.msk [vmem:[#allocation2 + $0x8] sm:$0xff] %vm2789, %v2774
  %2792 = vst.msk [vmem:[#allocation2 + $0x10] sm:$0xff] %vm2789, %v2775
  %2793 = vst.msk [vmem:[#allocation2 + $0x18] sm:$0xff] %vm2789, %v2776
  %2794 = vst.msk [vmem:[#allocation2 + $0x20] sm:$0xff] %vm2789, %v2777
  %2795 = vst.msk [vmem:[#allocation2 + $0x28] sm:$0xff] %vm2789, %v2778
  %2796 = vst.msk [vmem:[#allocation2 + $0x30] sm:$0xff] %vm2789, %v2779
  %2797 = vst.msk [vmem:[#allocation2 + $0x38] sm:$0xff] %vm2789, %v2780
  %2798 = vst.msk [vmem:[#allocation2 + $0x40] sm:$0xff] %vm2789, %v2781
  %2799 = vst.msk [vmem:[#allocation2 + $0x48] sm:$0xff] %vm2789, %v2782
  %2800 = vst.msk [vmem:[#allocation2 + $0x50] sm:$0xff] %vm2789, %v2783
  %2801 = vst.msk [vmem:[#allocation2 + $0x58] sm:$0xff] %vm2789, %v2784
  %2802 = vst.msk [vmem:[#allocation2 + $0x60] sm:$0xff] %vm2789, %v2785
  %2803 = vst.msk [vmem:[#allocation2 + $0x68] sm:$0xff] %vm2789, %v2786
  %2804 = vst.msk [vmem:[#allocation2 + $0x70] sm:$0xff] %vm2789, %v2787
  %2805 = vst.msk [vmem:[#allocation2 + $0x78] sm:$0xff] %vm2789, %v2788
  %v2806 = vld [vmem:[#allocation2] ss:$2 sm:$0xff]
  %s2807 = scalar_lea.vmem [#allocation2], 16
  %v2808 = vld [vmem:[%s2807] ss:$2 sm:$0xff]
  %s2809 = scalar_lea.vmem [#allocation2], 32
  %v2810 = vld [vmem:[%s2809] ss:$2 sm:$0xff]
  %s2811 = scalar_lea.vmem [#allocation2], 48
  %v2812 = vld [vmem:[%s2811] ss:$2 sm:$0xff]
  %s2813 = scalar_lea.vmem [#allocation2], 64
  %v2814 = vld [vmem:[%s2813] ss:$2 sm:$0xff]
  %s2815 = scalar_lea.vmem [#allocation2], 80
  %v2816 = vld [vmem:[%s2815] ss:$2 sm:$0xff]
  %s2817 = scalar_lea.vmem [#allocation2], 96
  %v2818 = vld [vmem:[%s2817] ss:$2 sm:$0xff]
  %s2819 = scalar_lea.vmem [#allocation2], 112
  %v2820 = vld [vmem:[%s2819] ss:$2 sm:$0xff]
  %v2821 = vld [vmem:[%s1839] ss:$2 sm:$0xff]
  %v2822 = vld [vmem:[%s1841] ss:$2 sm:$0xff]
  %v2823 = vld [vmem:[%s1843] ss:$2 sm:$0xff]
  %v2824 = vld [vmem:[%s1845] ss:$2 sm:$0xff]
  %v2825 = vld [vmem:[%s1847] ss:$2 sm:$0xff]
  %v2826 = vld [vmem:[%s1849] ss:$2 sm:$0xff]
  %v2827 = vld [vmem:[%s1851] ss:$2 sm:$0xff]
  %v2828 = vld [vmem:[%s1853] ss:$2 sm:$0xff]
  %v2829 = vrot.slane %v2806, 1
  %v2830 = vrot.slane %v2808, 1
  %v2831 = vrot.slane %v2810, 1
  %v2832 = vrot.slane %v2812, 1
  %v2833 = vrot.slane %v2814, 1
  %v2834 = vrot.slane %v2816, 1
  %v2835 = vrot.slane %v2818, 1
  %v2836 = vrot.slane %v2820, 1
  %v2837 = vsel %vm214, %v2835, %v2836
  %v2838 = vsel %vm214, %v2834, %v2835
  %v2839 = vsel %vm214, %v2833, %v2834
  %v2840 = vsel %vm214, %v2832, %v2833
  %v2841 = vsel %vm214, %v2831, %v2832
  %v2842 = vsel %vm214, %v2830, %v2831
  %v2843 = vsel %vm214, %v2829, %v2830
  %v2844 = vsel %vm214, %v2836, %v2829
  %v2845 = vand.u32 %v213, 7
  %v2846 = vand.u32 %v247, 7
  %v2847 = vand.u32 %v248, 7
  %v2848 = vand.u32 %v249, 7
  %v2849 = vand.u32 %v250, 7
  %v2850 = vand.u32 %v251, 7
  %v2851 = vand.u32 %v252, 7
  %v2852 = vand.u32 %v253, 7
  %vm2853 = vcmp.eq.s32.totalorder %v2845, 7
  %vm2854 = vcmp.eq.s32.totalorder %v2846, 7
  %vm2855 = vcmp.eq.s32.totalorder %v2847, 7
  %vm2856 = vcmp.eq.s32.totalorder %v2848, 7
  %vm2857 = vcmp.eq.s32.totalorder %v2849, 7
  %vm2858 = vcmp.eq.s32.totalorder %v2850, 7
  %vm2859 = vcmp.eq.s32.totalorder %v2851, 7
  %vm2860 = vcmp.eq.s32.totalorder %v2852, 7
  %v2861 = vsel %vm2853, 1, 0
  %v2862 = vsel %vm2854, 1, 0
  %v2863 = vsel %vm2855, 1, 0
  %v2864 = vsel %vm2856, 1, 0
  %v2865 = vsel %vm2857, 1, 0
  %v2866 = vsel %vm2858, 1, 0
  %v2867 = vsel %vm2859, 1, 0
  %v2868 = vsel %vm2860, 1, 0
  %vm2869 = vcmp.eq.s32.totalorder %v2861, 1
  %vm2870 = vcmp.eq.s32.totalorder %v2862, 1
  %vm2871 = vcmp.eq.s32.totalorder %v2863, 1
  %vm2872 = vcmp.eq.s32.totalorder %v2864, 1
  %vm2873 = vcmp.eq.s32.totalorder %v2865, 1
  %vm2874 = vcmp.eq.s32.totalorder %v2866, 1
  %vm2875 = vcmp.eq.s32.totalorder %v2867, 1
  %vm2876 = vcmp.eq.s32.totalorder %v2868, 1
  %v2877 = vsel %vm2869, 0.0, %v2843
  %v2878 = vsel %vm2870, 0.0, %v2842
  %v2879 = vsel %vm2871, 0.0, %v2841
  %v2880 = vsel %vm2872, 0.0, %v2840
  %v2881 = vsel %vm2873, 0.0, %v2839
  %v2882 = vsel %vm2874, 0.0, %v2838
  %v2883 = vsel %vm2875, 0.0, %v2837
  %v2884 = vsel %vm2876, 0.0, %v2844
  %v2885 = vld [vmem:[%s7] sm:$0x3f]
  %v2886 = vld [vmem:[%s8] sm:$0x3f]
  %v2887 = vld [vmem:[%s9] sm:$0x1]
  %v2889 = vsel %vm2789, %v2821, 0
  %v2892 = vsel %vm2789, %v2822, 0
  %v2895 = vsel %vm2789, %v2823, 0
  %v2898 = vsel %vm2789, %v2824, 0
  %v2901 = vsel %vm2789, %v2825, 0
  %v2904 = vsel %vm2789, %v2826, 0
  %v2907 = vsel %vm2789, %v2827, 0
  %v2910 = vsel %vm2789, %v2828, 0
  %vm2912 = vcmask 1045504
  %v2914 = vsel %vm2912, %v2886, 0
  %2916 = vmatprep.subr.mxu0 0.0
  %2917 = vmatpush1.msra.mxu0 %v2914
  %2918 = vmatprep.subr.mxu0 0.0
  %2919 = vmatpush1.msra.mxu0 0.0
  %2920 = vmatprep.subr.mxu0 0.0
  %2921 = vmatpush1.msra.mxu0 0.0
  %2922 = vmatprep.subr.mxu0 0.0
  %2923 = vmatpush1.msra.mxu0 0.0
  %2924 = vmatprep.subr.mxu0 0.0
  %2925 = vmatpush1.msra.mxu0 0.0
  %2926 = vmatprep.subr.mxu0 0.0
  %2927 = vmatpush1.msra.mxu0 0.0
  %2928 = vmatprep.subr.mxu0 0.0
  %2929 = vmatpush1.msra.mxu0 0.0
  %2930 = vmatprep.subr.mxu0 0.0
  %2931 = vmatpush1.msra.mxu0 0.0
  %2932 = vmatprep.subr.mxu0 0.0
  %2933 = vmatpush1.msra.mxu0 0.0
  %2934 = vmatprep.subr.mxu0 0.0
  %2935 = vmatpush1.msra.mxu0 0.0
  %2936 = vmatprep.subr.mxu0 0.0
  %2937 = vmatpush1.msra.mxu0 0.0
  %2938 = vmatprep.subr.mxu0 0.0
  %2939 = vmatpush1.msra.mxu0 0.0
  %2940 = vmatprep.subr.mxu0 0.0
  %2941 = vmatpush1.msra.mxu0 0.0
  %2942 = vmatprep.subr.mxu0 0.0
  %2943 = vmatpush1.msra.mxu0 0.0
  %2944 = vmatprep.subr.mxu0 0.0
  %2945 = vmatpush1.msra.mxu0 0.0
  %2946 = vmatprep.subr.mxu0 0.0
  %2947 = vmatpush1.msra.mxu0 0.0
  %2948 = vmatprep.subr.mxu0 0.0
  %2949 = vmatpush1.msra.mxu0 0.0
  %2950 = vmatprep.subr.mxu0 0.0
  %2951 = vmatpush1.msra.mxu0 0.0
  %2952 = vmatprep.subr.mxu0 0.0
  %2953 = vmatpush1.msra.mxu0 0.0
  %2954 = vmatprep.subr.mxu0 0.0
  %2955 = vmatpush1.msra.mxu0 0.0
  %2956 = vmatprep.subr.mxu0 0.0
  %2957 = vmatpush1.msra.mxu0 0.0
  %2958 = vmatprep.subr.mxu0 0.0
  %2959 = vmatpush1.msra.mxu0 0.0
  %2960 = vmatprep.subr.mxu0 0.0
  %2961 = vmatpush1.msra.mxu0 0.0
  %2962 = vmatprep.subr.mxu0 0.0
  %2963 = vmatpush1.msra.mxu0 0.0
  %2964 = vmatprep.subr.mxu0 0.0
  %2965 = vmatpush1.msra.mxu0 0.0
  %2966 = vmatprep.subr.mxu0 0.0
  %2967 = vmatpush1.msra.mxu0 0.0
  %2968 = vmatprep.subr.mxu0 0.0
  %2969 = vmatpush1.msra.mxu0 0.0
  %2970 = vmatprep.subr.mxu0 0.0
  %2971 = vmatpush1.msra.mxu0 0.0
  %2972 = vmatprep.subr.mxu0 0.0
  %2973 = vmatpush1.msra.mxu0 0.0
  %2974 = vmatprep.subr.mxu0 0.0
  %2975 = vmatpush1.msra.mxu0 0.0
  %2976 = vmatprep.subr.mxu0 0.0
  %2977 = vmatpush1.msra.mxu0 0.0
  %2978 = vmatprep.subr.mxu0 0.0
  %2979 = vmatpush1.msra.mxu0 0.0
  %2980 = vmatprep.mubr.f32.mxu0 0.0
  %2981 = vmatmul.mubr.f32.gmra.mrb[0].mxu0 %v2889
  %v2982 = vpop.f32.mrb[0].mxu0
  %v2983 = vadd.f32 0.0, %v2982
  %v2984 = vpop.f32.mrb[0].mxu0
  %2985 = vmatprep.mubr.f32.mxu0 0.0
  %2986 = vmatmul.mubr.f32.gmra.mrb[0].mxu0 %v2892
  %v2987 = vpop.f32.mrb[0].mxu0
  %v2988 = vadd.f32 0.0, %v2987
  %v2989 = vpop.f32.mrb[0].mxu0
  %2990 = vmatprep.mubr.f32.mxu0 0.0
  %2991 = vmatmul.mubr.f32.gmra.mrb[0].mxu0 %v2895
  %v2992 = vpop.f32.mrb[0].mxu0
  %v2993 = vadd.f32 0.0, %v2992
  %v2994 = vpop.f32.mrb[0].mxu0
  %2995 = vmatprep.mubr.f32.mxu0 0.0
  %2996 = vmatmul.mubr.f32.gmra.mrb[0].mxu0 %v2898
  %v2997 = vpop.f32.mrb[0].mxu0
  %v2998 = vadd.f32 0.0, %v2997
  %v2999 = vpop.f32.mrb[0].mxu0
  %3000 = vmatprep.mubr.f32.mxu0 0.0
  %3001 = vmatmul.mubr.f32.gmra.mrb[0].mxu0 %v2901
  %v3002 = vpop.f32.mrb[0].mxu0
  %v3003 = vadd.f32 0.0, %v3002
  %v3004 = vpop.f32.mrb[0].mxu0
  %3005 = vmatprep.mubr.f32.mxu0 0.0
  %3006 = vmatmul.mubr.f32.gmra.mrb[0].mxu0 %v2904
  %v3007 = vpop.f32.mrb[0].mxu0
  %v3008 = vadd.f32 0.0, %v3007
  %v3009 = vpop.f32.mrb[0].mxu0
  %3010 = vmatprep.mubr.f32.mxu0 0.0
  %3011 = vmatmul.mubr.f32.gmra.mrb[0].mxu0 %v2907
  %v3012 = vpop.f32.mrb[0].mxu0
  %v3013 = vadd.f32 0.0, %v3012
  %v3014 = vpop.f32.mrb[0].mxu0
  %3015 = vmatprep.mubr.f32.mxu0 0.0
  %3016 = vmatmul.mubr.f32.gmra.mrb[0].mxu0 %v2910
  %v3017 = vpop.f32.mrb[0].mxu0
  %v3018 = vadd.f32 0.0, %v3017
  %v3019 = vpop.f32.mrb[0].mxu0
  %3020 = vdwg.mxu0
  %v3022 = vsel %vm2789, %v2806, 0
  %v3025 = vsel %vm2789, %v2808, 0
  %v3028 = vsel %vm2789, %v2810, 0
  %v3031 = vsel %vm2789, %v2812, 0
  %v3034 = vsel %vm2789, %v2814, 0
  %v3037 = vsel %vm2789, %v2816, 0
  %v3040 = vsel %vm2789, %v2818, 0
  %v3043 = vsel %vm2789, %v2820, 0
  %v3046 = vsel %vm2912, %v2885, 0
  %3048 = vmatprep.subr.mxu0 0.0
  %3049 = vmatpush1.msra.mxu0 %v3046
  %3050 = vmatprep.subr.mxu0 0.0
  %3051 = vmatpush1.msra.mxu0 0.0
  %3052 = vmatprep.subr.mxu0 0.0
  %3053 = vmatpush1.msra.mxu0 0.0
  %3054 = vmatprep.subr.mxu0 0.0
  %3055 = vmatpush1.msra.mxu0 0.0
  %3056 = vmatprep.subr.mxu0 0.0
  %3057 = vmatpush1.msra.mxu0 0.0
  %3058 = vmatprep.subr.mxu0 0.0
  %3059 = vmatpush1.msra.mxu0 0.0
  %3060 = vmatprep.subr.mxu0 0.0
  %3061 = vmatpush1.msra.mxu0 0.0
  %3062 = vmatprep.subr.mxu0 0.0
  %3063 = vmatpush1.msra.mxu0 0.0
  %3064 = vmatprep.subr.mxu0 0.0
  %3065 = vmatpush1.msra.mxu0 0.0
  %3066 = vmatprep.subr.mxu0 0.0
  %3067 = vmatpush1.msra.mxu0 0.0
  %3068 = vmatprep.subr.mxu0 0.0
  %3069 = vmatpush1.msra.mxu0 0.0
  %3070 = vmatprep.subr.mxu0 0.0
  %3071 = vmatpush1.msra.mxu0 0.0
  %3072 = vmatprep.subr.mxu0 0.0
  %3073 = vmatpush1.msra.mxu0 0.0
  %3074 = vmatprep.subr.mxu0 0.0
  %3075 = vmatpush1.msra.mxu0 0.0
  %3076 = vmatprep.subr.mxu0 0.0
  %3077 = vmatpush1.msra.mxu0 0.0
  %3078 = vmatprep.subr.mxu0 0.0
  %3079 = vmatpush1.msra.mxu0 0.0
  %3080 = vmatprep.subr.mxu0 0.0
  %3081 = vmatpush1.msra.mxu0 0.0
  %3082 = vmatprep.subr.mxu0 0.0
  %3083 = vmatpush1.msra.mxu0 0.0
  %3084 = vmatprep.subr.mxu0 0.0
  %3085 = vmatpush1.msra.mxu0 0.0
  %3086 = vmatprep.subr.mxu0 0.0
  %3087 = vmatpush1.msra.mxu0 0.0
  %3088 = vmatprep.subr.mxu0 0.0
  %3089 = vmatpush1.msra.mxu0 0.0
  %3090 = vmatprep.subr.mxu0 0.0
  %3091 = vmatpush1.msra.mxu0 0.0
  %3092 = vmatprep.subr.mxu0 0.0
  %3093 = vmatpush1.msra.mxu0 0.0
  %3094 = vmatprep.subr.mxu0 0.0
  %3095 = vmatpush1.msra.mxu0 0.0
  %3096 = vmatprep.subr.mxu0 0.0
  %3097 = vmatpush1.msra.mxu0 0.0
  %3098 = vmatprep.subr.mxu0 0.0
  %3099 = vmatpush1.msra.mxu0 0.0
  %3100 = vmatprep.subr.mxu0 0.0
  %3101 = vmatpush1.msra.mxu0 0.0
  %3102 = vmatprep.subr.mxu0 0.0
  %3103 = vmatpush1.msra.mxu0 0.0
  %3104 = vmatprep.subr.mxu0 0.0
  %3105 = vmatpush1.msra.mxu0 0.0
  %3106 = vmatprep.subr.mxu0 0.0
  %3107 = vmatpush1.msra.mxu0 0.0
  %3108 = vmatprep.subr.mxu0 0.0
  %3109 = vmatpush1.msra.mxu0 0.0
  %3110 = vmatprep.subr.mxu0 0.0
  %3111 = vmatpush1.msra.mxu0 0.0
  %3112 = vmatprep.mubr.f32.mxu0 0.0
  %3113 = vmatmul.mubr.f32.gmra.mrb[0].mxu0 %v3022
  %v3114 = vpop.f32.mrb[0].mxu0
  %v3115 = vadd.f32 %v2983, %v3114
  %v3116 = vpop.f32.mrb[0].mxu0
  %3117 = vmatprep.mubr.f32.mxu0 0.0
  %3118 = vmatmul.mubr.f32.gmra.mrb[0].mxu0 %v3025
  %v3119 = vpop.f32.mrb[0].mxu0
  %v3120 = vadd.f32 %v2988, %v3119
  %v3121 = vpop.f32.mrb[0].mxu0
  %3122 = vmatprep.mubr.f32.mxu0 0.0
  %3123 = vmatmul.mubr.f32.gmra.mrb[0].mxu0 %v3028
  %v3124 = vpop.f32.mrb[0].mxu0
  %v3125 = vadd.f32 %v2993, %v3124
  %v3126 = vpop.f32.mrb[0].mxu0
  %3127 = vmatprep.mubr.f32.mxu0 0.0
  %3128 = vmatmul.mubr.f32.gmra.mrb[0].mxu0 %v3031
  %v3129 = vpop.f32.mrb[0].mxu0
  %v3130 = vadd.f32 %v2998, %v3129
  %v3131 = vpop.f32.mrb[0].mxu0
  %3132 = vmatprep.mubr.f32.mxu0 0.0
  %3133 = vmatmul.mubr.f32.gmra.mrb[0].mxu0 %v3034
  %v3134 = vpop.f32.mrb[0].mxu0
  %v3135 = vadd.f32 %v3003, %v3134
  %v3136 = vpop.f32.mrb[0].mxu0
  %3137 = vmatprep.mubr.f32.mxu0 0.0
  %3138 = vmatmul.mubr.f32.gmra.mrb[0].mxu0 %v3037
  %v3139 = vpop.f32.mrb[0].mxu0
  %v3140 = vadd.f32 %v3008, %v3139
  %v3141 = vpop.f32.mrb[0].mxu0
  %3142 = vmatprep.mubr.f32.mxu0 0.0
  %3143 = vmatmul.mubr.f32.gmra.mrb[0].mxu0 %v3040
  %v3144 = vpop.f32.mrb[0].mxu0
  %v3145 = vadd.f32 %v3013, %v3144
  %v3146 = vpop.f32.mrb[0].mxu0
  %3147 = vmatprep.mubr.f32.mxu0 0.0
  %3148 = vmatmul.mubr.f32.gmra.mrb[0].mxu0 %v3043
  %v3149 = vpop.f32.mrb[0].mxu0
  %v3150 = vadd.f32 %v3018, %v3149
  %v3151 = vpop.f32.mrb[0].mxu0
  %3152 = vdwg.mxu0
  %v3154 = vlaneseq
  %v3155 = vshrl.u32 %v3154, 7
  %v3156 = vsub.s32 0, %v3155
  %v3157 = vrot.slane %v2887, %v3156
  %v3159 = vadd.f32 %v3115, %v3157
  %v3160 = vadd.f32 %v3120, %v3157
  %v3161 = vadd.f32 %v3125, %v3157
  %v3162 = vadd.f32 %v3130, %v3157
  %v3163 = vadd.f32 %v3135, %v3157
  %v3164 = vadd.f32 %v3140, %v3157
  %v3165 = vadd.f32 %v3145, %v3157
  %v3166 = vadd.f32 %v3150, %v3157
  %v3168 = vsel %vm2789, %v2877, 0
  %v3171 = vsel %vm2789, %v2878, 0
  %v3174 = vsel %vm2789, %v2879, 0
  %v3177 = vsel %vm2789, %v2880, 0
  %v3180 = vsel %vm2789, %v2881, 0
  %v3183 = vsel %vm2789, %v2882, 0
  %v3186 = vsel %vm2789, %v2883, 0
  %v3189 = vsel %vm2789, %v2884, 0
  %3191 = vmatprep.subr.mxu0 0.0
  %3192 = vmatpush1.msra.mxu0 %v2914
  %3193 = vmatprep.subr.mxu0 0.0
  %3194 = vmatpush1.msra.mxu0 0.0
  %3195 = vmatprep.subr.mxu0 0.0
  %3196 = vmatpush1.msra.mxu0 0.0
  %3197 = vmatprep.subr.mxu0 0.0
  %3198 = vmatpush1.msra.mxu0 0.0
  %3199 = vmatprep.subr.mxu0 0.0
  %3200 = vmatpush1.msra.mxu0 0.0
  %3201 = vmatprep.subr.mxu0 0.0
  %3202 = vmatpush1.msra.mxu0 0.0
  %3203 = vmatprep.subr.mxu0 0.0
  %3204 = vmatpush1.msra.mxu0 0.0
  %3205 = vmatprep.subr.mxu0 0.0
  %3206 = vmatpush1.msra.mxu0 0.0
  %3207 = vmatprep.subr.mxu0 0.0
  %3208 = vmatpush1.msra.mxu0 0.0
  %3209 = vmatprep.subr.mxu0 0.0
  %3210 = vmatpush1.msra.mxu0 0.0
  %3211 = vmatprep.subr.mxu0 0.0
  %3212 = vmatpush1.msra.mxu0 0.0
  %3213 = vmatprep.subr.mxu0 0.0
  %3214 = vmatpush1.msra.mxu0 0.0
  %3215 = vmatprep.subr.mxu0 0.0
  %3216 = vmatpush1.msra.mxu0 0.0
  %3217 = vmatprep.subr.mxu0 0.0
  %3218 = vmatpush1.msra.mxu0 0.0
  %3219 = vmatprep.subr.mxu0 0.0
  %3220 = vmatpush1.msra.mxu0 0.0
  %3221 = vmatprep.subr.mxu0 0.0
  %3222 = vmatpush1.msra.mxu0 0.0
  %3223 = vmatprep.subr.mxu0 0.0
  %3224 = vmatpush1.msra.mxu0 0.0
  %3225 = vmatprep.subr.mxu0 0.0
  %3226 = vmatpush1.msra.mxu0 0.0
  %3227 = vmatprep.subr.mxu0 0.0
  %3228 = vmatpush1.msra.mxu0 0.0
  %3229 = vmatprep.subr.mxu0 0.0
  %3230 = vmatpush1.msra.mxu0 0.0
  %3231 = vmatprep.subr.mxu0 0.0
  %3232 = vmatpush1.msra.mxu0 0.0
  %3233 = vmatprep.subr.mxu0 0.0
  %3234 = vmatpush1.msra.mxu0 0.0
  %3235 = vmatprep.subr.mxu0 0.0
  %3236 = vmatpush1.msra.mxu0 0.0
  %3237 = vmatprep.subr.mxu0 0.0
  %3238 = vmatpush1.msra.mxu0 0.0
  %3239 = vmatprep.subr.mxu0 0.0
  %3240 = vmatpush1.msra.mxu0 0.0
  %3241 = vmatprep.subr.mxu0 0.0
  %3242 = vmatpush1.msra.mxu0 0.0
  %3243 = vmatprep.subr.mxu0 0.0
  %3244 = vmatpush1.msra.mxu0 0.0
  %3245 = vmatprep.subr.mxu0 0.0
  %3246 = vmatpush1.msra.mxu0 0.0
  %3247 = vmatprep.subr.mxu0 0.0
  %3248 = vmatpush1.msra.mxu0 0.0
  %3249 = vmatprep.subr.mxu0 0.0
  %3250 = vmatpush1.msra.mxu0 0.0
  %3251 = vmatprep.subr.mxu0 0.0
  %3252 = vmatpush1.msra.mxu0 0.0
  %3253 = vmatprep.subr.mxu0 0.0
  %3254 = vmatpush1.msra.mxu0 0.0
  %3255 = vmatprep.mubr.f32.mxu0 0.0
  %3256 = vmatmul.mubr.f32.gmra.mrb[0].mxu0 %v3168
  %v3257 = vpop.f32.mrb[0].mxu0
  %v3258 = vadd.f32 0.0, %v3257
  %v3259 = vpop.f32.mrb[0].mxu0
  %3260 = vmatprep.mubr.f32.mxu0 0.0
  %3261 = vmatmul.mubr.f32.gmra.mrb[0].mxu0 %v3171
  %v3262 = vpop.f32.mrb[0].mxu0
  %v3263 = vadd.f32 0.0, %v3262
  %v3264 = vpop.f32.mrb[0].mxu0
  %3265 = vmatprep.mubr.f32.mxu0 0.0
  %3266 = vmatmul.mubr.f32.gmra.mrb[0].mxu0 %v3174
  %v3267 = vpop.f32.mrb[0].mxu0
  %v3268 = vadd.f32 0.0, %v3267
  %v3269 = vpop.f32.mrb[0].mxu0
  %3270 = vmatprep.mubr.f32.mxu0 0.0
  %3271 = vmatmul.mubr.f32.gmra.mrb[0].mxu0 %v3177
  %v3272 = vpop.f32.mrb[0].mxu0
  %v3273 = vadd.f32 0.0, %v3272
  %v3274 = vpop.f32.mrb[0].mxu0
  %3275 = vmatprep.mubr.f32.mxu0 0.0
  %3276 = vmatmul.mubr.f32.gmra.mrb[0].mxu0 %v3180
  %v3277 = vpop.f32.mrb[0].mxu0
  %v3278 = vadd.f32 0.0, %v3277
  %v3279 = vpop.f32.mrb[0].mxu0
  %3280 = vmatprep.mubr.f32.mxu0 0.0
  %3281 = vmatmul.mubr.f32.gmra.mrb[0].mxu0 %v3183
  %v3282 = vpop.f32.mrb[0].mxu0
  %v3283 = vadd.f32 0.0, %v3282
  %v3284 = vpop.f32.mrb[0].mxu0
  %3285 = vmatprep.mubr.f32.mxu0 0.0
  %3286 = vmatmul.mubr.f32.gmra.mrb[0].mxu0 %v3186
  %v3287 = vpop.f32.mrb[0].mxu0
  %v3288 = vadd.f32 0.0, %v3287
  %v3289 = vpop.f32.mrb[0].mxu0
  %3290 = vmatprep.mubr.f32.mxu0 0.0
  %3291 = vmatmul.mubr.f32.gmra.mrb[0].mxu0 %v3189
  %v3292 = vpop.f32.mrb[0].mxu0
  %v3293 = vadd.f32 0.0, %v3292
  %v3294 = vpop.f32.mrb[0].mxu0
  %3295 = vdwg.mxu0
  %3296 = vmatprep.subr.mxu0 0.0
  %3297 = vmatpush1.msra.mxu0 %v3046
  %3298 = vmatprep.subr.mxu0 0.0
  %3299 = vmatpush1.msra.mxu0 0.0
  %3300 = vmatprep.subr.mxu0 0.0
  %3301 = vmatpush1.msra.mxu0 0.0
  %3302 = vmatprep.subr.mxu0 0.0
  %3303 = vmatpush1.msra.mxu0 0.0
  %3304 = vmatprep.subr.mxu0 0.0
  %3305 = vmatpush1.msra.mxu0 0.0
  %3306 = vmatprep.subr.mxu0 0.0
  %3307 = vmatpush1.msra.mxu0 0.0
  %3308 = vmatprep.subr.mxu0 0.0
  %3309 = vmatpush1.msra.mxu0 0.0
  %3310 = vmatprep.subr.mxu0 0.0
  %3311 = vmatpush1.msra.mxu0 0.0
  %3312 = vmatprep.subr.mxu0 0.0
  %3313 = vmatpush1.msra.mxu0 0.0
  %3314 = vmatprep.subr.mxu0 0.0
  %3315 = vmatpush1.msra.mxu0 0.0
  %3316 = vmatprep.subr.mxu0 0.0
  %3317 = vmatpush1.msra.mxu0 0.0
  %3318 = vmatprep.subr.mxu0 0.0
  %3319 = vmatpush1.msra.mxu0 0.0
  %3320 = vmatprep.subr.mxu0 0.0
  %3321 = vmatpush1.msra.mxu0 0.0
  %3322 = vmatprep.subr.mxu0 0.0
  %3323 = vmatpush1.msra.mxu0 0.0
  %3324 = vmatprep.subr.mxu0 0.0
  %3325 = vmatpush1.msra.mxu0 0.0
  %3326 = vmatprep.subr.mxu0 0.0
  %3327 = vmatpush1.msra.mxu0 0.0
  %3328 = vmatprep.subr.mxu0 0.0
  %3329 = vmatpush1.msra.mxu0 0.0
  %3330 = vmatprep.subr.mxu0 0.0
  %3331 = vmatpush1.msra.mxu0 0.0
  %3332 = vmatprep.subr.mxu0 0.0
  %3333 = vmatpush1.msra.mxu0 0.0
  %3334 = vmatprep.subr.mxu0 0.0
  %3335 = vmatpush1.msra.mxu0 0.0
  %3336 = vmatprep.subr.mxu0 0.0
  %3337 = vmatpush1.msra.mxu0 0.0
  %3338 = vmatprep.subr.mxu0 0.0
  %3339 = vmatpush1.msra.mxu0 0.0
  %3340 = vmatprep.subr.mxu0 0.0
  %3341 = vmatpush1.msra.mxu0 0.0
  %3342 = vmatprep.subr.mxu0 0.0
  %3343 = vmatpush1.msra.mxu0 0.0
  %3344 = vmatprep.subr.mxu0 0.0
  %3345 = vmatpush1.msra.mxu0 0.0
  %3346 = vmatprep.subr.mxu0 0.0
  %3347 = vmatpush1.msra.mxu0 0.0
  %3348 = vmatprep.subr.mxu0 0.0
  %3349 = vmatpush1.msra.mxu0 0.0
  %3350 = vmatprep.subr.mxu0 0.0
  %3351 = vmatpush1.msra.mxu0 0.0
  %3352 = vmatprep.subr.mxu0 0.0
  %3353 = vmatpush1.msra.mxu0 0.0
  %3354 = vmatprep.subr.mxu0 0.0
  %3355 = vmatpush1.msra.mxu0 0.0
  %3356 = vmatprep.subr.mxu0 0.0
  %3357 = vmatpush1.msra.mxu0 0.0
  %3358 = vmatprep.subr.mxu0 0.0
  %3359 = vmatpush1.msra.mxu0 0.0
  %3360 = vmatprep.mubr.f32.mxu0 0.0
  %3361 = vmatmul.mubr.f32.gmra.mrb[0].mxu0 %v2889
  %v3362 = vpop.f32.mrb[0].mxu0
  %v3363 = vadd.f32 %v3258, %v3362
  %v3364 = vpop.f32.mrb[0].mxu0
  %3365 = vmatprep.mubr.f32.mxu0 0.0
  %3366 = vmatmul.mubr.f32.gmra.mrb[0].mxu0 %v2892
  %v3367 = vpop.f32.mrb[0].mxu0
  %v3368 = vadd.f32 %v3263, %v3367
  %v3369 = vpop.f32.mrb[0].mxu0
  %3370 = vmatprep.mubr.f32.mxu0 0.0
  %3371 = vmatmul.mubr.f32.gmra.mrb[0].mxu0 %v2895
  %v3372 = vpop.f32.mrb[0].mxu0
  %v3373 = vadd.f32 %v3268, %v3372
  %v3374 = vpop.f32.mrb[0].mxu0
  %3375 = vmatprep.mubr.f32.mxu0 0.0
  %3376 = vmatmul.mubr.f32.gmra.mrb[0].mxu0 %v2898
  %v3377 = vpop.f32.mrb[0].mxu0
  %v3378 = vadd.f32 %v3273, %v3377
  %v3379 = vpop.f32.mrb[0].mxu0
  %3380 = vmatprep.mubr.f32.mxu0 0.0
  %3381 = vmatmul.mubr.f32.gmra.mrb[0].mxu0 %v2901
  %v3382 = vpop.f32.mrb[0].mxu0
  %v3383 = vadd.f32 %v3278, %v3382
  %v3384 = vpop.f32.mrb[0].mxu0
  %3385 = vmatprep.mubr.f32.mxu0 0.0
  %3386 = vmatmul.mubr.f32.gmra.mrb[0].mxu0 %v2904
  %v3387 = vpop.f32.mrb[0].mxu0
  %v3388 = vadd.f32 %v3283, %v3387
  %v3389 = vpop.f32.mrb[0].mxu0
  %3390 = vmatprep.mubr.f32.mxu0 0.0
  %3391 = vmatmul.mubr.f32.gmra.mrb[0].mxu0 %v2907
  %v3392 = vpop.f32.mrb[0].mxu0
  %v3393 = vadd.f32 %v3288, %v3392
  %v3394 = vpop.f32.mrb[0].mxu0
  %3395 = vmatprep.mubr.f32.mxu0 0.0
  %3396 = vmatmul.mubr.f32.gmra.mrb[0].mxu0 %v2910
  %v3397 = vpop.f32.mrb[0].mxu0
  %v3398 = vadd.f32 %v3293, %v3397
  %v3399 = vpop.f32.mrb[0].mxu0
  %3400 = vdwg.mxu0
  %v3401 = vadd.f32 %v3363, %v3157
  %v3402 = vadd.f32 %v3368, %v3157
  %v3403 = vadd.f32 %v3373, %v3157
  %v3404 = vadd.f32 %v3378, %v3157
  %v3405 = vadd.f32 %v3383, %v3157
  %v3406 = vadd.f32 %v3388, %v3157
  %v3407 = vadd.f32 %v3393, %v3157
  %v3408 = vadd.f32 %v3398, %v3157
  %v3409 = vmax.f32 %v3159, %v3401
  %v3410 = vmax.f32 %v3160, %v3402
  %v3411 = vmax.f32 %v3161, %v3403
  %v3412 = vmax.f32 %v3162, %v3404
  %v3413 = vmax.f32 %v3163, %v3405
  %v3414 = vmax.f32 %v3164, %v3406
  %v3415 = vmax.f32 %v3165, %v3407
  %v3416 = vmax.f32 %v3166, %v3408
  %v3417 = vmax.f32 %v3409, 0.0
  %v3418 = vmax.f32 %v3410, 0.0
  %v3419 = vmax.f32 %v3411, 0.0
  %v3420 = vmax.f32 %v3412, 0.0
  %v3421 = vmax.f32 %v3413, 0.0
  %v3422 = vmax.f32 %v3414, 0.0
  %v3423 = vmax.f32 %v3415, 0.0
  %v3424 = vmax.f32 %v3416, 0.0
  %vm3425 = vcmask 23552
  %3426 = vst.msk [vmem:[#allocation2] sm:$0xff] %vm3425, %v3417
  %3427 = vst.msk [vmem:[#allocation2 + $0x8] sm:$0xff] %vm3425, %v3418
  %3428 = vst.msk [vmem:[#allocation2 + $0x10] sm:$0xff] %vm3425, %v3419
  %3429 = vst.msk [vmem:[#allocation2 + $0x18] sm:$0xff] %vm3425, %v3420
  %3430 = vst.msk [vmem:[#allocation2 + $0x20] sm:$0xff] %vm3425, %v3421
  %3431 = vst.msk [vmem:[#allocation2 + $0x28] sm:$0xff] %vm3425, %v3422
  %3432 = vst.msk [vmem:[#allocation2 + $0x30] sm:$0xff] %vm3425, %v3423
  %3433 = vst.msk [vmem:[#allocation2 + $0x38] sm:$0xff] %vm3425, %v3424
  %v3434 = vld [vmem:[#allocation2] ss:$8 sm:$0xf]
  %v3435 = vld [vmem:[#allocation2] ss:$8 sm:$0xf0]
  %v3436 = vor.u32 %v3434, %v3435
  %v3437 = vld [vmem:[%s1839] ss:$8 sm:$0xf]
  %v3438 = vld [vmem:[%s1839] ss:$8 sm:$0xf0]
  %v3439 = vor.u32 %v3437, %v3438
  %s3440 = scalar_lea.vmem [#allocation2], 2
  %v3441 = vld [vmem:[%s3440] ss:$8 sm:$0xf]
  %v3442 = vld [vmem:[%s3440] ss:$8 sm:$0xf0]
  %v3443 = vor.u32 %v3441, %v3442
  %s3444 = scalar_lea.vmem [#allocation2], 3
  %v3445 = vld [vmem:[%s3444] ss:$8 sm:$0xf]
  %v3446 = vld [vmem:[%s3444] ss:$8 sm:$0xf0]
  %v3447 = vor.u32 %v3445, %v3446
  %s3448 = scalar_lea.vmem [#allocation2], 4
  %v3449 = vld [vmem:[%s3448] ss:$8 sm:$0xf]
  %v3450 = vld [vmem:[%s3448] ss:$8 sm:$0xf0]
  %v3451 = vor.u32 %v3449, %v3450
  %s3452 = scalar_lea.vmem [#allocation2], 5
  %v3453 = vld [vmem:[%s3452] ss:$8 sm:$0xf]
  %v3454 = vld [vmem:[%s3452] ss:$8 sm:$0xf0]
  %v3455 = vor.u32 %v3453, %v3454
  %s3456 = scalar_lea.vmem [#allocation2], 6
  %v3457 = vld [vmem:[%s3456] ss:$8 sm:$0xf]
  %v3458 = vld [vmem:[%s3456] ss:$8 sm:$0xf0]
  %v3459 = vor.u32 %v3457, %v3458
  %s3460 = scalar_lea.vmem [#allocation2], 7
  %v3461 = vld [vmem:[%s3460] ss:$8 sm:$0xf]
  %v3462 = vld [vmem:[%s3460] ss:$8 sm:$0xf0]
  %v3463 = vor.u32 %v3461, %v3462
  %3465 = vrot.lane.b32.xlu0 %v3439, 3
  %v3466 = vpop.permute.xlu0 %3465
  %3469 = vrot.lane.b32.xlu0 %v3443, 6
  %v3470 = vpop.permute.xlu0 %3469
  %3473 = vrot.lane.b32.xlu0 %v3447, 9
  %v3474 = vpop.permute.xlu0 %3473
  %3477 = vrot.lane.b32.xlu0 %v3451, 12
  %v3478 = vpop.permute.xlu0 %3477
  %3481 = vrot.lane.b32.xlu0 %v3455, 15
  %v3482 = vpop.permute.xlu0 %3481
  %3485 = vrot.lane.b32.xlu0 %v3459, 18
  %v3486 = vpop.permute.xlu0 %3485
  %3489 = vrot.lane.b32.xlu0 %v3463, 21
  %v3490 = vpop.permute.xlu0 %3489
  %v3492 = vsel %vm3425, %v3436, %v3466
  %v3493 = vsel %vm2789, %v3492, %v3470
  %vm3494 = vcmask 72704
  %v3495 = vsel %vm3494, %v3493, %v3474
  %v3496 = vsel %vm1775, %v3495, %v3478
  %vm3497 = vcmask 121856
  %v3498 = vsel %vm3497, %v3496, %v3482
  %vm3499 = vcmask 146432
  %v3500 = vsel %vm3499, %v3498, %v3486
  %v3501 = vsel %vm445, %v3500, %v3490
  %v3502 = vld [vmem:[%s10] sm:$0xff]
  %v3503 = vld [vmem:[%s10 + $0x8] sm:$0xff]
  %v3504 = vld [vmem:[%s10 + $0x10] sm:$0xff]
  %v3505 = vld [vmem:[%s11] sm:$0x1]
  %v3507 = vlaneseq
  %v3508 = vshrl.u32 %v3507, 7
  %v3509 = vsub.s32 0, %v3508
  %v3510 = vrot.slane %v3505, %v3509
  %vm3512 = vcmask 195584
  %v3514 = vsel %vm3512, %v3501, 0
  %3516 = vmatprep.subr.mxu0 0.0
  %3517 = vmatpush1.msra.mxu0 %v3502
  %3518 = vmatprep.subr.mxu0 0.0
  %3519 = vmatpush1.msra.mxu0 %v3503
  %3520 = vmatprep.subr.mxu0 0.0
  %3521 = vmatpush1.msra.mxu0 %v3504
  %3522 = vmatprep.subr.mxu0 0.0
  %3523 = vmatpush1.msra.mxu0 0.0
  %3524 = vmatprep.subr.mxu0 0.0
  %3525 = vmatpush1.msra.mxu0 0.0
  %3526 = vmatprep.subr.mxu0 0.0
  %3527 = vmatpush1.msra.mxu0 0.0
  %3528 = vmatprep.subr.mxu0 0.0
  %3529 = vmatpush1.msra.mxu0 0.0
  %3530 = vmatprep.subr.mxu0 0.0
  %3531 = vmatpush1.msra.mxu0 0.0
  %3532 = vmatprep.subr.mxu0 0.0
  %3533 = vmatpush1.msra.mxu0 0.0
  %3534 = vmatprep.subr.mxu0 0.0
  %3535 = vmatpush1.msra.mxu0 0.0
  %3536 = vmatprep.subr.mxu0 0.0
  %3537 = vmatpush1.msra.mxu0 0.0
  %3538 = vmatprep.subr.mxu0 0.0
  %3539 = vmatpush1.msra.mxu0 0.0
  %3540 = vmatprep.subr.mxu0 0.0
  %3541 = vmatpush1.msra.mxu0 0.0
  %3542 = vmatprep.subr.mxu0 0.0
  %3543 = vmatpush1.msra.mxu0 0.0
  %3544 = vmatprep.subr.mxu0 0.0
  %3545 = vmatpush1.msra.mxu0 0.0
  %3546 = vmatprep.subr.mxu0 0.0
  %3547 = vmatpush1.msra.mxu0 0.0
  %3548 = vmatprep.subr.mxu0 0.0
  %3549 = vmatpush1.msra.mxu0 0.0
  %3550 = vmatprep.subr.mxu0 0.0
  %3551 = vmatpush1.msra.mxu0 0.0
  %3552 = vmatprep.subr.mxu0 0.0
  %3553 = vmatpush1.msra.mxu0 0.0
  %3554 = vmatprep.subr.mxu0 0.0
  %3555 = vmatpush1.msra.mxu0 0.0
  %3556 = vmatprep.subr.mxu0 0.0
  %3557 = vmatpush1.msra.mxu0 0.0
  %3558 = vmatprep.subr.mxu0 0.0
  %3559 = vmatpush1.msra.mxu0 0.0
  %3560 = vmatprep.subr.mxu0 0.0
  %3561 = vmatpush1.msra.mxu0 0.0
  %3562 = vmatprep.subr.mxu0 0.0
  %3563 = vmatpush1.msra.mxu0 0.0
  %3564 = vmatprep.subr.mxu0 0.0
  %3565 = vmatpush1.msra.mxu0 0.0
  %3566 = vmatprep.subr.mxu0 0.0
  %3567 = vmatpush1.msra.mxu0 0.0
  %3568 = vmatprep.subr.mxu0 0.0
  %3569 = vmatpush1.msra.mxu0 0.0
  %3570 = vmatprep.subr.mxu0 0.0
  %3571 = vmatpush1.msra.mxu0 0.0
  %3572 = vmatprep.subr.mxu0 0.0
  %3573 = vmatpush1.msra.mxu0 0.0
  %3574 = vmatprep.subr.mxu0 0.0
  %3575 = vmatpush1.msra.mxu0 0.0
  %3576 = vmatprep.subr.mxu0 0.0
  %3577 = vmatpush1.msra.mxu0 0.0
  %3578 = vmatprep.subr.mxu0 0.0
  %3579 = vmatpush1.msra.mxu0 0.0
  %3580 = vmatprep.mubr.f32.mxu0 0.0
  %3581 = vmatmul.mubr.f32.gmra.mrb[0].mxu0 %v3514
  %v3582 = vpop.f32.mrb[0].mxu0
  %v3583 = vadd.f32 %v3510, %v3582
  %v3584 = vpop.f32.mrb[0].mxu0
  %3585 = vdwg.mxu0
  %v3586 = vmax.f32 %v3583, 0.0
  %v3587 = vld [vmem:[%s12] sm:$0xff]
  %v3588 = vld [vmem:[%s12 + $0x8] sm:$0xff]
  %v3589 = vld [vmem:[%s12 + $0x10] sm:$0xff]
  %v3590 = vld [vmem:[%s12 + $0x18] sm:$0xff]
  %v3591 = vld [vmem:[%s12 + $0x20] sm:$0xff]
  %v3592 = vld [vmem:[%s12 + $0x28] sm:$0xff]
  %v3593 = vld [vmem:[%s12 + $0x30] sm:$0xff]
  %v3594 = vld [vmem:[%s12 + $0x38] sm:$0xff]
  %v3595 = vld [vmem:[%s13] sm:$0x1]
  %v3597 = vlaneseq
  %v3598 = vshrl.u32 %v3597, 7
  %v3599 = vsub.s32 0, %v3598
  %v3600 = vrot.slane %v3595, %v3599
  %vm3602 = vcmask 523264
  %v3604 = vsel %vm3602, %v3586, 0
  %3606 = vmatprep.subr.mxu0 0.0
  %3607 = vmatpush1.msra.mxu0 %v3587
  %3608 = vmatprep.subr.mxu0 0.0
  %3609 = vmatpush1.msra.mxu0 %v3588
  %3610 = vmatprep.subr.mxu0 0.0
  %3611 = vmatpush1.msra.mxu0 %v3589
  %3612 = vmatprep.subr.mxu0 0.0
  %3613 = vmatpush1.msra.mxu0 %v3590
  %3614 = vmatprep.subr.mxu0 0.0
  %3615 = vmatpush1.msra.mxu0 %v3591
  %3616 = vmatprep.subr.mxu0 0.0
  %3617 = vmatpush1.msra.mxu0 %v3592
  %3618 = vmatprep.subr.mxu0 0.0
  %3619 = vmatpush1.msra.mxu0 %v3593
  %3620 = vmatprep.subr.mxu0 0.0
  %3621 = vmatpush1.msra.mxu0 %v3594
  %3622 = vmatprep.subr.mxu0 0.0
  %3623 = vmatpush1.msra.mxu0 0.0
  %3624 = vmatprep.subr.mxu0 0.0
  %3625 = vmatpush1.msra.mxu0 0.0
  %3626 = vmatprep.subr.mxu0 0.0
  %3627 = vmatpush1.msra.mxu0 0.0
  %3628 = vmatprep.subr.mxu0 0.0
  %3629 = vmatpush1.msra.mxu0 0.0
  %3630 = vmatprep.subr.mxu0 0.0
  %3631 = vmatpush1.msra.mxu0 0.0
  %3632 = vmatprep.subr.mxu0 0.0
  %3633 = vmatpush1.msra.mxu0 0.0
  %3634 = vmatprep.subr.mxu0 0.0
  %3635 = vmatpush1.msra.mxu0 0.0
  %3636 = vmatprep.subr.mxu0 0.0
  %3637 = vmatpush1.msra.mxu0 0.0
  %3638 = vmatprep.subr.mxu0 0.0
  %3639 = vmatpush1.msra.mxu0 0.0
  %3640 = vmatprep.subr.mxu0 0.0
  %3641 = vmatpush1.msra.mxu0 0.0
  %3642 = vmatprep.subr.mxu0 0.0
  %3643 = vmatpush1.msra.mxu0 0.0
  %3644 = vmatprep.subr.mxu0 0.0
  %3645 = vmatpush1.msra.mxu0 0.0
  %3646 = vmatprep.subr.mxu0 0.0
  %3647 = vmatpush1.msra.mxu0 0.0
  %3648 = vmatprep.subr.mxu0 0.0
  %3649 = vmatpush1.msra.mxu0 0.0
  %3650 = vmatprep.subr.mxu0 0.0
  %3651 = vmatpush1.msra.mxu0 0.0
  %3652 = vmatprep.subr.mxu0 0.0
  %3653 = vmatpush1.msra.mxu0 0.0
  %3654 = vmatprep.subr.mxu0 0.0
  %3655 = vmatpush1.msra.mxu0 0.0
  %3656 = vmatprep.subr.mxu0 0.0
  %3657 = vmatpush1.msra.mxu0 0.0
  %3658 = vmatprep.subr.mxu0 0.0
  %3659 = vmatpush1.msra.mxu0 0.0
  %3660 = vmatprep.subr.mxu0 0.0
  %3661 = vmatpush1.msra.mxu0 0.0
  %3662 = vmatprep.subr.mxu0 0.0
  %3663 = vmatpush1.msra.mxu0 0.0
  %3664 = vmatprep.subr.mxu0 0.0
  %3665 = vmatpush1.msra.mxu0 0.0
  %3666 = vmatprep.subr.mxu0 0.0
  %3667 = vmatpush1.msra.mxu0 0.0
  %3668 = vmatprep.subr.mxu0 0.0
  %3669 = vmatpush1.msra.mxu0 0.0
  %3670 = vmatprep.mubr.f32.mxu0 0.0
  %3671 = vmatmul.mubr.f32.gmra.mrb[0].mxu0 %v3604
  %v3672 = vpop.f32.mrb[0].mxu0
  %v3673 = vadd.f32 %v3600, %v3672
  %v3674 = vpop.f32.mrb[0].mxu0
  %3675 = vdwg.mxu0
  %v3676 = vmax.f32 %v3673, 0.0
  %v3677 = vld [vmem:[%s14] sm:$0xff]
  %v3678 = vld [vmem:[%s14 + $0x8] sm:$0xff]
  %v3679 = vld [vmem:[%s14 + $0x10] sm:$0xff]
  %v3680 = vld [vmem:[%s14 + $0x18] sm:$0xff]
  %v3681 = vld [vmem:[%s15] sm:$0x1]
  %v3683 = vlaneseq
  %v3684 = vshrl.u32 %v3683, 7
  %v3685 = vsub.s32 0, %v3684
  %v3686 = vrot.slane %v3681, %v3685
  %vm3688 = vcmask 261120
  %v3690 = vsel %vm3688, %v3676, 0
  %3692 = vmatprep.subr.mxu0 0.0
  %3693 = vmatpush1.msra.mxu0 %v3677
  %3694 = vmatprep.subr.mxu0 0.0
  %3695 = vmatpush1.msra.mxu0 %v3678
  %3696 = vmatprep.subr.mxu0 0.0
  %3697 = vmatpush1.msra.mxu0 %v3679
  %3698 = vmatprep.subr.mxu0 0.0
  %3699 = vmatpush1.msra.mxu0 %v3680
  %3700 = vmatprep.subr.mxu0 0.0
  %3701 = vmatpush1.msra.mxu0 0.0
  %3702 = vmatprep.subr.mxu0 0.0
  %3703 = vmatpush1.msra.mxu0 0.0
  %3704 = vmatprep.subr.mxu0 0.0
  %3705 = vmatpush1.msra.mxu0 0.0
  %3706 = vmatprep.subr.mxu0 0.0
  %3707 = vmatpush1.msra.mxu0 0.0
  %3708 = vmatprep.subr.mxu0 0.0
  %3709 = vmatpush1.msra.mxu0 0.0
  %3710 = vmatprep.subr.mxu0 0.0
  %3711 = vmatpush1.msra.mxu0 0.0
  %3712 = vmatprep.subr.mxu0 0.0
  %3713 = vmatpush1.msra.mxu0 0.0
  %3714 = vmatprep.subr.mxu0 0.0
  %3715 = vmatpush1.msra.mxu0 0.0
  %3716 = vmatprep.subr.mxu0 0.0
  %3717 = vmatpush1.msra.mxu0 0.0
  %3718 = vmatprep.subr.mxu0 0.0
  %3719 = vmatpush1.msra.mxu0 0.0
  %3720 = vmatprep.subr.mxu0 0.0
  %3721 = vmatpush1.msra.mxu0 0.0
  %3722 = vmatprep.subr.mxu0 0.0
  %3723 = vmatpush1.msra.mxu0 0.0
  %3724 = vmatprep.subr.mxu0 0.0
  %3725 = vmatpush1.msra.mxu0 0.0
  %3726 = vmatprep.subr.mxu0 0.0
  %3727 = vmatpush1.msra.mxu0 0.0
  %3728 = vmatprep.subr.mxu0 0.0
  %3729 = vmatpush1.msra.mxu0 0.0
  %3730 = vmatprep.subr.mxu0 0.0
  %3731 = vmatpush1.msra.mxu0 0.0
  %3732 = vmatprep.subr.mxu0 0.0
  %3733 = vmatpush1.msra.mxu0 0.0
  %3734 = vmatprep.subr.mxu0 0.0
  %3735 = vmatpush1.msra.mxu0 0.0
  %3736 = vmatprep.subr.mxu0 0.0
  %3737 = vmatpush1.msra.mxu0 0.0
  %3738 = vmatprep.subr.mxu0 0.0
  %3739 = vmatpush1.msra.mxu0 0.0
  %3740 = vmatprep.subr.mxu0 0.0
  %3741 = vmatpush1.msra.mxu0 0.0
  %3742 = vmatprep.subr.mxu0 0.0
  %3743 = vmatpush1.msra.mxu0 0.0
  %3744 = vmatprep.subr.mxu0 0.0
  %3745 = vmatpush1.msra.mxu0 0.0
  %3746 = vmatprep.subr.mxu0 0.0
  %3747 = vmatpush1.msra.mxu0 0.0
  %3748 = vmatprep.subr.mxu0 0.0
  %3749 = vmatpush1.msra.mxu0 0.0
  %3750 = vmatprep.subr.mxu0 0.0
  %3751 = vmatpush1.msra.mxu0 0.0
  %3752 = vmatprep.subr.mxu0 0.0
  %3753 = vmatpush1.msra.mxu0 0.0
  %3754 = vmatprep.subr.mxu0 0.0
  %3755 = vmatpush1.msra.mxu0 0.0
  %3756 = vmatprep.mubr.f32.mxu0 0.0
  %3757 = vmatmul.mubr.f32.gmra.mrb[0].mxu0 %v3690
  %v3758 = vpop.f32.mrb[0].mxu0
  %v3759 = vadd.f32 %v3686, %v3758
  %v3760 = vpop.f32.mrb[0].mxu0
  %3761 = vdwg.mxu0
  %vm3762 = vcmask 15360
  %3763 = vst.msk [vmem:[%s16] sm:$0xff] %vm3762, %v3759
  // Predicated region
  $region66: #{cnn_ground_aav_forward.1} parent=0 // pred_check
    _
  $region67: #{cnn_ground_aav_forward.1} parent=0 // pred_check_branch
    %3765 = sbr.rel (0) target = $region69
  $region68: #{cnn_ground_aav_forward.1} parent=0 // pred_region
    _
  $region69: #{cnn_ground_aav_forward.1} parent=0 // pred_fallthru
    _
  // Predicated region
  $region70: #{cnn_ground_aav_forward.1} parent=0 // pred_check
    _
  $region71: #{cnn_ground_aav_forward.1} parent=0 // pred_check_branch
    %3767 = sbr.rel (0) target = $region73
  $region72: #{cnn_ground_aav_forward.1} parent=0 // pred_region
    _
  $region73: #{cnn_ground_aav_forward.1} parent=0 // pred_fallthru
    _

</llo_original>
